<compile_context>
chip_gen: v6e
topology: v6e:2x2x1
jax: 0.10.0
libtpu: 0.0.40
codegen_flags: <defaults>
</compile_context>

<pallas_src>
import jax
import jax.numpy as jnp
from jax import lax
from jax.experimental import pallas as pl
from jax.experimental.pallas import tpu as pltpu

INPUT_SIZE = 1
HID = 50            # real hidden size (PyTorch hidden_size=50)
NUM_LAYERS = 2
BATCH = 2
SEQ = 8

HP = 128            # padded hidden size (one full 128-lane vreg)
GP = 4 * HP         # padded gate width, one 128-lane slot per gate

# Packed gate order is [i | f | o | g]: the three sigmoid gates are contiguous
# so one wide sigmoid covers lanes [0, 3*HP) and tanh only touches the g slot.
# PyTorch's LSTM gate order is (i, f, g, o); GATE_SLOT maps source chunk ->
# packed slot.
GATE_SLOT = (0, 1, 3, 2)

# Row offsets inside the packed weight buffer `wbuf` (shape (WBUF_ROWS, GP)).
R_WHH0 = 0              # [0, HP)        layer-0 recurrent weight   (HP, GP)
R_WIH1 = HP             # [HP, 2*HP)     layer-1 input weight       (HP, GP)
R_WHH1 = 2 * HP         # [2*HP, 3*HP)   layer-1 recurrent weight   (HP, GP)
R_B1 = 3 * HP           # 1 row          layer-1 bias (b_ih1 + b_hh1)
R_WIH0 = 3 * HP + 1     # 1 row          layer-0 input weight (input_size==1)
R_B0 = 3 * HP + 2       # 1 row          layer-0 bias (b_ih0 + b_hh0)
R_WFC = 3 * HP + 3      # 1 row          fc weight (first HID lanes used)
R_BFC = 3 * HP + 4      # 1 row          fc bias (lane 0)
WBUF_ROWS = 3 * HP + 5


def lstm_kernel(x_ref,     # (B, T)  raw inputs (input_size == 1)
                w_ref,     # (WBUF_ROWS, GP) packed, pre-padded weights
                out_ref):  # (B, 1)
    B, T = x_ref.shape

    def apply_gates(gates, c):
        # One wide sigmoid over the contiguous [i|f|o] block, implemented as
        # a single EUP tanh + VPU fma; tanh only on the g slot.  All slices
        # are lane-aligned 128-wide windows.
        sig = 0.5 * jnp.tanh(0.5 * gates[:, 0:3 * HP]) + 0.5
        i = sig[:, 0 * HP:1 * HP]
        f = sig[:, 1 * HP:2 * HP]
        o = sig[:, 2 * HP:3 * HP]
        g = jnp.tanh(gates[:, 3 * HP:4 * HP])
        c_new = f * c + i * g
        h_new = o * jnp.tanh(c_new)
        return h_new, c_new

    xs = x_ref[...]                           # (B, T): one tiny load
    wih0 = w_ref[R_WIH0:R_WIH0 + 1, :]        # (1, GP)
    b0 = w_ref[R_B0:R_B0 + 1, :]              # (1, GP)
    b1 = w_ref[R_B1:R_B1 + 1, :]              # (1, GP)

    zeros = jnp.zeros((B, HP), jnp.float32)
    h0, c0, h1, c1 = zeros, zeros, zeros, zeros
    # h1_{t-1} @ W_hh1, computed one step ahead (h1_{-1} == 0).
    hh1 = jnp.zeros((B, GP), jnp.float32)

    # T is a compile-time constant (=8): fully unroll so adjacent cells can
    # interleave across MXU / EUP / VPU slots.  Weight slices are taken
    # (statically) right next to their matmul use to keep live ranges short.
    for t in range(T):
        # ---- layer 0 ----
        # Input projection (K=1): VPU broadcast-multiply; no recurrent
        # dependency, so the scheduler hoists it off the critical path.
        xg0 = xs[:, t:t + 1] * wih0 + b0
        g0 = xg0 + jnp.dot(h0, w_ref[R_WHH0:R_WHH0 + HP, :],
                           preferred_element_type=jnp.float32)
        h0, c0 = apply_gates(g0, c0)

        # ---- layer 1 (un-fused) ----
        # The h1_{t-1} @ W_hh1 half was already issued at the end of the
        # previous step, so only the h0_t @ W_ih1 dot sits on the chain here.
        g1 = jnp.dot(h0, w_ref[R_WIH1:R_WIH1 + HP, :],
                     preferred_element_type=jnp.float32) + hh1 + b1
        h1, c1 = apply_gates(g1, c1)

        if t + 1 < T:
            # Off-chain: depends only on h1_t, overlaps the next layer-0 cell.
            hh1 = jnp.dot(h1, w_ref[R_WHH1:R_WHH1 + HP, :],
                          preferred_element_type=jnp.float32)

    # Final FC (out_features=1): VPU multiply + lane reduce, no MXU.
    wfc = w_ref[R_WFC:R_WFC + 1, 0:HP]        # (1, HP), zero beyond HID
    bfc = w_ref[R_BFC:R_BFC + 1, 0:1]         # (1, 1)
    out = jnp.sum(h1 * wfc, axis=-1, keepdims=True) + bfc
    out_ref[...] = out.astype(out_ref.dtype)


def lstm_model_forward(x, wbuf):
    """x: (batch, seq, input_size=1) float32.  Returns (batch, 1) float32."""
    B, T, _ = x.shape
    x2 = x.reshape(B, T)      # input_size == 1: drop the trailing dim

    vmem = pl.BlockSpec(memory_space=pltpu.MemorySpace.VMEM)
    return pl.pallas_call(
        lstm_kernel,
        out_shape=jax.ShapeDtypeStruct((B, 1), jnp.float32),
        in_specs=[vmem, vmem],
        out_specs=vmem,
    )(x2, wbuf)


def init_raw_params(key, input_size=INPUT_SIZE, hidden=HID):
    """Deterministic synthetic parameters in PyTorch nn.LSTM / nn.Linear layout."""
    k = 1.0 / jnp.sqrt(jnp.float32(hidden))
    keys = jax.random.split(key, 10)

    def u(kk, shape):
        return jax.random.uniform(kk, shape, jnp.float32, -k, k)

    return (
        u(keys[0], (4 * hidden, input_size)),   # weight_ih_l0
        u(keys[1], (4 * hidden, hidden)),       # weight_hh_l0
        u(keys[2], (4 * hidden,)),              # bias_ih_l0
        u(keys[3], (4 * hidden,)),              # bias_hh_l0
        u(keys[4], (4 * hidden, hidden)),       # weight_ih_l1
        u(keys[5], (4 * hidden, hidden)),       # weight_hh_l1
        u(keys[6], (4 * hidden,)),              # bias_ih_l1
        u(keys[7], (4 * hidden,)),              # bias_hh_l1
        u(keys[8], (1, hidden)),                # fc.weight
        u(keys[9], (1,)),                       # fc.bias
    )


def pack_params(raw):
    """Pre-transpose, pad each gate to a 128-lane slot (order i|f|o|g), and
    pack everything into a single (WBUF_ROWS, GP) buffer.  Pad lanes/rows are
    exactly zero, which keeps the h/c pad-lane-stays-zero invariant."""
    (w_ih0, w_hh0, b_ih0, b_hh0,
     w_ih1, w_hh1, b_ih1, b_hh1, w_fc, b_fc) = raw
    H = HID

    def pad_gate_cols(m):
        # m: (rows, 4H) in PyTorch gate order i,f,g,o -> (rows, GP) where the
        # packed gate slot order is [i | f | o | g]; pad lanes are zero.
        out = jnp.zeros((m.shape[0], GP), jnp.float32)
        for src, dst in enumerate(GATE_SLOT):
            out = out.at[:, dst * HP:dst * HP + H].set(m[:, src * H:(src + 1) * H])
        return out

    def pad_rows(m, rows):
        return jnp.zeros((rows, m.shape[1]), jnp.float32).at[:m.shape[0]].set(m)

    whh0_p = pad_rows(pad_gate_cols(w_hh0.T), HP)        # (HP, GP)
    wih1_p = pad_rows(pad_gate_cols(w_ih1.T), HP)        # (HP, GP)
    whh1_p = pad_rows(pad_gate_cols(w_hh1.T), HP)        # (HP, GP)
    b1_row = pad_gate_cols((b_ih1 + b_hh1)[None, :])     # (1, GP)
    wih0_row = pad_gate_cols(w_ih0.T)                    # (1, GP) (input_size==1)
    b0_row = pad_gate_cols((b_ih0 + b_hh0)[None, :])     # (1, GP)
    wfc_row = jnp.zeros((1, GP), jnp.float32).at[0, :H].set(w_fc[0])
    bfc_row = jnp.zeros((1, GP), jnp.float32).at[0, 0].set(b_fc[0])

    wbuf = jnp.concatenate(
        [whh0_p, wih1_p, whh1_p, b1_row, wih0_row, b0_row, wfc_row, bfc_row],
        axis=0)
    assert wbuf.shape == (WBUF_ROWS, GP)
    return wbuf


def reference_forward(x, raw):
    """Pure-JAX reference with PyTorch semantics (for correctness checking)."""
    (w_ih0, w_hh0, b_ih0, b_hh0,
     w_ih1, w_hh1, b_ih1, b_hh1, w_fc, b_fc) = raw
    H = HID
    hi = lax.Precision.HIGHEST

    def cell(x_t, h, c, w_ih, w_hh, b):
        g = (jnp.dot(x_t, w_ih.T, precision=hi)
             + jnp.dot(h, w_hh.T, precision=hi) + b)
        i = jax.nn.sigmoid(g[:, 0 * H:1 * H])
        f = jax.nn.sigmoid(g[:, 1 * H:2 * H])
        gg = jnp.tanh(g[:, 2 * H:3 * H])
        o = jax.nn.sigmoid(g[:, 3 * H:4 * H])
        c = f * c + i * gg
        h = o * jnp.tanh(c)
        return h, c

    def step(carry, x_t):
        h0, c0, h1, c1 = carry
        h0, c0 = cell(x_t, h0, c0, w_ih0, w_hh0, b_ih0 + b_hh0)
        h1, c1 = cell(h0, h1, c1, w_ih1, w_hh1, b_ih1 + b_hh1)
        return (h0, c0, h1, c1), None

    B = x.shape[0]
    z = jnp.zeros((B, H), jnp.float32)
    (h0, c0, h1, c1), _ = lax.scan(step, (z, z, z, z),
                                   jnp.transpose(x, (1, 0, 2)))
    return jnp.dot(h1, w_fc.T, precision=hi) + b_fc


if __name__ == "__main__":
    key = jax.random.PRNGKey(0)
    k_x, k_p = jax.random.split(key)

    # x: (batch, seq, input_size) — matches nn.LSTM(batch_first=True)
    x = jax.random.normal(k_x, (BATCH, SEQ, INPUT_SIZE), jnp.float32)
    raw = init_raw_params(k_p)
    wbuf = pack_params(raw)

    fwd = jax.jit(lstm_model_forward)
    out = jax.block_until_ready(fwd(x, wbuf))
    ref = jax.block_until_ready(reference_forward(x, raw))

    assert out.shape == (BATCH, 1)
    assert jnp.allclose(out, ref, atol=2e-4, rtol=2e-4), (out, ref)

    print("KERNEL_OK")
</pallas_src>

<mosaic_0001>
module attributes {stable_mosaic.version = 11 : i64} {
  func.func @lstm_kernel(%arg0: memref<2x8xf32, #tpu.memory_space<vmem>>, %arg1: memref<389x512xf32, #tpu.memory_space<vmem>>, %arg2: memref<2x1xf32, #tpu.memory_space<vmem>>) attributes {dimension_semantics = [], scalar_prefetch = 0 : i64, scratch_operands = 0 : i64, tpu.core_type = #tpu.core_type<tc>} {
    %c0 = arith.constant 0 : index
    %c0_0 = arith.constant 0 : index
    %0 = vector.load %arg0[%c0, %c0_0] : memref<2x8xf32, #tpu.memory_space<vmem>>, vector<2x8xf32>
    %c385 = arith.constant 385 : index
    %c0_1 = arith.constant 0 : index
    %1 = vector.load %arg1[%c385, %c0_1] : memref<389x512xf32, #tpu.memory_space<vmem>>, vector<1x512xf32>
    %c386 = arith.constant 386 : index
    %c0_2 = arith.constant 0 : index
    %2 = vector.load %arg1[%c386, %c0_2] : memref<389x512xf32, #tpu.memory_space<vmem>>, vector<1x512xf32>
    %c384 = arith.constant 384 : index
    %c0_3 = arith.constant 0 : index
    %3 = vector.load %arg1[%c384, %c0_3] : memref<389x512xf32, #tpu.memory_space<vmem>>, vector<1x512xf32>
    %cst = arith.constant 0.000000e+00 : f32
    %4 = vector.broadcast %cst : f32 to vector<2x128xf32>
    %cst_4 = arith.constant 0.000000e+00 : f32
    %5 = vector.broadcast %cst_4 : f32 to vector<2x512xf32>
    %6 = vector.extract_strided_slice %0 {offsets = [0, 0], sizes = [2, 1], strides = [1, 1]} : vector<2x8xf32> to vector<2x1xf32>
    %7 = vector.broadcast %6 : vector<2x1xf32> to vector<2x512xf32>
    %8 = vector.broadcast %1 : vector<1x512xf32> to vector<2x512xf32>
    %9 = arith.mulf %7, %8 : vector<2x512xf32>
    %10 = vector.broadcast %2 : vector<1x512xf32> to vector<2x512xf32>
    %11 = arith.addf %9, %10 : vector<2x512xf32>
    %c0_5 = arith.constant 0 : index
    %c0_6 = arith.constant 0 : index
    %12 = vector.load %arg1[%c0_5, %c0_6] : memref<389x512xf32, #tpu.memory_space<vmem>>, vector<128x512xf32>
    %cst_7 = arith.constant dense<0.000000e+00> : vector<2x512xf32>
    %13 = tpu.matmul %4, %12, %cst_7 {dimension_numbers = #tpu.dot_dimension_numbers<[1], [0], [0], [1], [0, 0, 1, 1], [], []>} : vector<2x128xf32>, vector<128x512xf32>, vector<2x512xf32> -> vector<2x512xf32>
    %14 = arith.addf %11, %13 : vector<2x512xf32>
    %15 = vector.extract_strided_slice %14 {offsets = [0, 0], sizes = [2, 384], strides = [1, 1]} : vector<2x512xf32> to vector<2x384xf32>
    %cst_8 = arith.constant 5.000000e-01 : f32
    %16 = vector.broadcast %cst_8 : f32 to vector<2x384xf32>
    %17 = arith.mulf %16, %15 : vector<2x384xf32>
    %18 = math.tanh %17 : vector<2x384xf32>
    %cst_9 = arith.constant 5.000000e-01 : f32
    %19 = vector.broadcast %cst_9 : f32 to vector<2x384xf32>
    %20 = arith.mulf %19, %18 : vector<2x384xf32>
    %cst_10 = arith.constant 5.000000e-01 : f32
    %21 = vector.broadcast %cst_10 : f32 to vector<2x384xf32>
    %22 = arith.addf %20, %21 : vector<2x384xf32>
    %23 = vector.extract_strided_slice %22 {offsets = [0, 0], sizes = [2, 128], strides = [1, 1]} : vector<2x384xf32> to vector<2x128xf32>
    %24 = vector.extract_strided_slice %22 {offsets = [0, 128], sizes = [2, 128], strides = [1, 1]} : vector<2x384xf32> to vector<2x128xf32>
    %25 = vector.extract_strided_slice %22 {offsets = [0, 256], sizes = [2, 128], strides = [1, 1]} : vector<2x384xf32> to vector<2x128xf32>
    %26 = vector.extract_strided_slice %14 {offsets = [0, 384], sizes = [2, 128], strides = [1, 1]} : vector<2x512xf32> to vector<2x128xf32>
    %27 = math.tanh %26 : vector<2x128xf32>
    %28 = arith.mulf %24, %4 : vector<2x128xf32>
    %29 = arith.mulf %23, %27 : vector<2x128xf32>
    %30 = arith.addf %28, %29 : vector<2x128xf32>
    %31 = math.tanh %30 : vector<2x128xf32>
    %32 = arith.mulf %25, %31 : vector<2x128xf32>
    %c128 = arith.constant 128 : index
    %c0_11 = arith.constant 0 : index
    %33 = vector.load %arg1[%c128, %c0_11] : memref<389x512xf32, #tpu.memory_space<vmem>>, vector<128x512xf32>
    %cst_12 = arith.constant dense<0.000000e+00> : vector<2x512xf32>
    %34 = tpu.matmul %32, %33, %cst_12 {dimension_numbers = #tpu.dot_dimension_numbers<[1], [0], [0], [1], [0, 0, 1, 1], [], []>} : vector<2x128xf32>, vector<128x512xf32>, vector<2x512xf32> -> vector<2x512xf32>
    %35 = arith.addf %34, %5 : vector<2x512xf32>
    %36 = vector.broadcast %3 : vector<1x512xf32> to vector<2x512xf32>
    %37 = arith.addf %35, %36 : vector<2x512xf32>
    %38 = vector.extract_strided_slice %37 {offsets = [0, 0], sizes = [2, 384], strides = [1, 1]} : vector<2x512xf32> to vector<2x384xf32>
    %cst_13 = arith.constant 5.000000e-01 : f32
    %39 = vector.broadcast %cst_13 : f32 to vector<2x384xf32>
    %40 = arith.mulf %39, %38 : vector<2x384xf32>
    %41 = math.tanh %40 : vector<2x384xf32>
    %cst_14 = arith.constant 5.000000e-01 : f32
    %42 = vector.broadcast %cst_14 : f32 to vector<2x384xf32>
    %43 = arith.mulf %42, %41 : vector<2x384xf32>
    %cst_15 = arith.constant 5.000000e-01 : f32
    %44 = vector.broadcast %cst_15 : f32 to vector<2x384xf32>
    %45 = arith.addf %43, %44 : vector<2x384xf32>
    %46 = vector.extract_strided_slice %45 {offsets = [0, 0], sizes = [2, 128], strides = [1, 1]} : vector<2x384xf32> to vector<2x128xf32>
    %47 = vector.extract_strided_slice %45 {offsets = [0, 128], sizes = [2, 128], strides = [1, 1]} : vector<2x384xf32> to vector<2x128xf32>
    %48 = vector.extract_strided_slice %45 {offsets = [0, 256], sizes = [2, 128], strides = [1, 1]} : vector<2x384xf32> to vector<2x128xf32>
    %49 = vector.extract_strided_slice %37 {offsets = [0, 384], sizes = [2, 128], strides = [1, 1]} : vector<2x512xf32> to vector<2x128xf32>
    %50 = math.tanh %49 : vector<2x128xf32>
    %51 = arith.mulf %47, %4 : vector<2x128xf32>
    %52 = arith.mulf %46, %50 : vector<2x128xf32>
    %53 = arith.addf %51, %52 : vector<2x128xf32>
    %54 = math.tanh %53 : vector<2x128xf32>
    %55 = arith.mulf %48, %54 : vector<2x128xf32>
    %c256 = arith.constant 256 : index
    %c0_16 = arith.constant 0 : index
    %56 = vector.load %arg1[%c256, %c0_16] : memref<389x512xf32, #tpu.memory_space<vmem>>, vector<128x512xf32>
    %cst_17 = arith.constant dense<0.000000e+00> : vector<2x512xf32>
    %57 = tpu.matmul %55, %56, %cst_17 {dimension_numbers = #tpu.dot_dimension_numbers<[1], [0], [0], [1], [0, 0, 1, 1], [], []>} : vector<2x128xf32>, vector<128x512xf32>, vector<2x512xf32> -> vector<2x512xf32>
    %58 = vector.extract_strided_slice %0 {offsets = [0, 1], sizes = [2, 1], strides = [1, 1]} : vector<2x8xf32> to vector<2x1xf32>
    %59 = vector.broadcast %58 : vector<2x1xf32> to vector<2x512xf32>
    %60 = vector.broadcast %1 : vector<1x512xf32> to vector<2x512xf32>
    %61 = arith.mulf %59, %60 : vector<2x512xf32>
    %62 = vector.broadcast %2 : vector<1x512xf32> to vector<2x512xf32>
    %63 = arith.addf %61, %62 : vector<2x512xf32>
    %c0_18 = arith.constant 0 : index
    %c0_19 = arith.constant 0 : index
    %64 = vector.load %arg1[%c0_18, %c0_19] : memref<389x512xf32, #tpu.memory_space<vmem>>, vector<128x512xf32>
    %cst_20 = arith.constant dense<0.000000e+00> : vector<2x512xf32>
    %65 = tpu.matmul %32, %64, %cst_20 {dimension_numbers = #tpu.dot_dimension_numbers<[1], [0], [0], [1], [0, 0, 1, 1], [], []>} : vector<2x128xf32>, vector<128x512xf32>, vector<2x512xf32> -> vector<2x512xf32>
    %66 = arith.addf %63, %65 : vector<2x512xf32>
    %67 = vector.extract_strided_slice %66 {offsets = [0, 0], sizes = [2, 384], strides = [1, 1]} : vector<2x512xf32> to vector<2x384xf32>
    %cst_21 = arith.constant 5.000000e-01 : f32
    %68 = vector.broadcast %cst_21 : f32 to vector<2x384xf32>
    %69 = arith.mulf %68, %67 : vector<2x384xf32>
    %70 = math.tanh %69 : vector<2x384xf32>
    %cst_22 = arith.constant 5.000000e-01 : f32
    %71 = vector.broadcast %cst_22 : f32 to vector<2x384xf32>
    %72 = arith.mulf %71, %70 : vector<2x384xf32>
    %cst_23 = arith.constant 5.000000e-01 : f32
    %73 = vector.broadcast %cst_23 : f32 to vector<2x384xf32>
    %74 = arith.addf %72, %73 : vector<2x384xf32>
    %75 = vector.extract_strided_slice %74 {offsets = [0, 0], sizes = [2, 128], strides = [1, 1]} : vector<2x384xf32> to vector<2x128xf32>
    %76 = vector.extract_strided_slice %74 {offsets = [0, 128], sizes = [2, 128], strides = [1, 1]} : vector<2x384xf32> to vector<2x128xf32>
    %77 = vector.extract_strided_slice %74 {offsets = [0, 256], sizes = [2, 128], strides = [1, 1]} : vector<2x384xf32> to vector<2x128xf32>
    %78 = vector.extract_strided_slice %66 {offsets = [0, 384], sizes = [2, 128], strides = [1, 1]} : vector<2x512xf32> to vector<2x128xf32>
    %79 = math.tanh %78 : vector<2x128xf32>
    %80 = arith.mulf %76, %30 : vector<2x128xf32>
    %81 = arith.mulf %75, %79 : vector<2x128xf32>
    %82 = arith.addf %80, %81 : vector<2x128xf32>
    %83 = math.tanh %82 : vector<2x128xf32>
    %84 = arith.mulf %77, %83 : vector<2x128xf32>
    %c128_24 = arith.constant 128 : index
    %c0_25 = arith.constant 0 : index
    %85 = vector.load %arg1[%c128_24, %c0_25] : memref<389x512xf32, #tpu.memory_space<vmem>>, vector<128x512xf32>
    %cst_26 = arith.constant dense<0.000000e+00> : vector<2x512xf32>
    %86 = tpu.matmul %84, %85, %cst_26 {dimension_numbers = #tpu.dot_dimension_numbers<[1], [0], [0], [1], [0, 0, 1, 1], [], []>} : vector<2x128xf32>, vector<128x512xf32>, vector<2x512xf32> -> vector<2x512xf32>
    %87 = arith.addf %86, %57 : vector<2x512xf32>
    %88 = vector.broadcast %3 : vector<1x512xf32> to vector<2x512xf32>
    %89 = arith.addf %87, %88 : vector<2x512xf32>
    %90 = vector.extract_strided_slice %89 {offsets = [0, 0], sizes = [2, 384], strides = [1, 1]} : vector<2x512xf32> to vector<2x384xf32>
    %cst_27 = arith.constant 5.000000e-01 : f32
    %91 = vector.broadcast %cst_27 : f32 to vector<2x384xf32>
    %92 = arith.mulf %91, %90 : vector<2x384xf32>
    %93 = math.tanh %92 : vector<2x384xf32>
    %cst_28 = arith.constant 5.000000e-01 : f32
    %94 = vector.broadcast %cst_28 : f32 to vector<2x384xf32>
    %95 = arith.mulf %94, %93 : vector<2x384xf32>
    %cst_29 = arith.constant 5.000000e-01 : f32
    %96 = vector.broadcast %cst_29 : f32 to vector<2x384xf32>
    %97 = arith.addf %95, %96 : vector<2x384xf32>
    %98 = vector.extract_strided_slice %97 {offsets = [0, 0], sizes = [2, 128], strides = [1, 1]} : vector<2x384xf32> to vector<2x128xf32>
    %99 = vector.extract_strided_slice %97 {offsets = [0, 128], sizes = [2, 128], strides = [1, 1]} : vector<2x384xf32> to vector<2x128xf32>
    %100 = vector.extract_strided_slice %97 {offsets = [0, 256], sizes = [2, 128], strides = [1, 1]} : vector<2x384xf32> to vector<2x128xf32>
    %101 = vector.extract_strided_slice %89 {offsets = [0, 384], sizes = [2, 128], strides = [1, 1]} : vector<2x512xf32> to vector<2x128xf32>
    %102 = math.tanh %101 : vector<2x128xf32>
    %103 = arith.mulf %99, %53 : vector<2x128xf32>
    %104 = arith.mulf %98, %102 : vector<2x128xf32>
    %105 = arith.addf %103, %104 : vector<2x128xf32>
    %106 = math.tanh %105 : vector<2x128xf32>
    %107 = arith.mulf %100, %106 : vector<2x128xf32>
    %c256_30 = arith.constant 256 : index
    %c0_31 = arith.constant 0 : index
    %108 = vector.load %arg1[%c256_30, %c0_31] : memref<389x512xf32, #tpu.memory_space<vmem>>, vector<128x512xf32>
    %cst_32 = arith.constant dense<0.000000e+00> : vector<2x512xf32>
    %109 = tpu.matmul %107, %108, %cst_32 {dimension_numbers = #tpu.dot_dimension_numbers<[1], [0], [0], [1], [0, 0, 1, 1], [], []>} : vector<2x128xf32>, vector<128x512xf32>, vector<2x512xf32> -> vector<2x512xf32>
    %110 = vector.extract_strided_slice %0 {offsets = [0, 2], sizes = [2, 1], strides = [1, 1]} : vector<2x8xf32> to vector<2x1xf32>
    %111 = vector.broadcast %110 : vector<2x1xf32> to vector<2x512xf32>
    %112 = vector.broadcast %1 : vector<1x512xf32> to vector<2x512xf32>
    %113 = arith.mulf %111, %112 : vector<2x512xf32>
    %114 = vector.broadcast %2 : vector<1x512xf32> to vector<2x512xf32>
    %115 = arith.addf %113, %114 : vector<2x512xf32>
    %c0_33 = arith.constant 0 : index
    %c0_34 = arith.constant 0 : index
    %116 = vector.load %arg1[%c0_33, %c0_34] : memref<389x512xf32, #tpu.memory_space<vmem>>, vector<128x512xf32>
    %cst_35 = arith.constant dense<0.000000e+00> : vector<2x512xf32>
    %117 = tpu.matmul %84, %116, %cst_35 {dimension_numbers = #tpu.dot_dimension_numbers<[1], [0], [0], [1], [0, 0, 1, 1], [], []>} : vector<2x128xf32>, vector<128x512xf32>, vector<2x512xf32> -> vector<2x512xf32>
    %118 = arith.addf %115, %117 : vector<2x512xf32>
    %119 = vector.extract_strided_slice %118 {offsets = [0, 0], sizes = [2, 384], strides = [1, 1]} : vector<2x512xf32> to vector<2x384xf32>
    %cst_36 = arith.constant 5.000000e-01 : f32
    %120 = vector.broadcast %cst_36 : f32 to vector<2x384xf32>
    %121 = arith.mulf %120, %119 : vector<2x384xf32>
    %122 = math.tanh %121 : vector<2x384xf32>
    %cst_37 = arith.constant 5.000000e-01 : f32
    %123 = vector.broadcast %cst_37 : f32 to vector<2x384xf32>
    %124 = arith.mulf %123, %122 : vector<2x384xf32>
    %cst_38 = arith.constant 5.000000e-01 : f32
    %125 = vector.broadcast %cst_38 : f32 to vector<2x384xf32>
    %126 = arith.addf %124, %125 : vector<2x384xf32>
    %127 = vector.extract_strided_slice %126 {offsets = [0, 0], sizes = [2, 128], strides = [1, 1]} : vector<2x384xf32> to vector<2x128xf32>
    %128 = vector.extract_strided_slice %126 {offsets = [0, 128], sizes = [2, 128], strides = [1, 1]} : vector<2x384xf32> to vector<2x128xf32>
    %129 = vector.extract_strided_slice %126 {offsets = [0, 256], sizes = [2, 128], strides = [1, 1]} : vector<2x384xf32> to vector<2x128xf32>
    %130 = vector.extract_strided_slice %118 {offsets = [0, 384], sizes = [2, 128], strides = [1, 1]} : vector<2x512xf32> to vector<2x128xf32>
    %131 = math.tanh %130 : vector<2x128xf32>
    %132 = arith.mulf %128, %82 : vector<2x128xf32>
    %133 = arith.mulf %127, %131 : vector<2x128xf32>
    %134 = arith.addf %132, %133 : vector<2x128xf32>
    %135 = math.tanh %134 : vector<2x128xf32>
    %136 = arith.mulf %129, %135 : vector<2x128xf32>
    %c128_39 = arith.constant 128 : index
    %c0_40 = arith.constant 0 : index
    %137 = vector.load %arg1[%c128_39, %c0_40] : memref<389x512xf32, #tpu.memory_space<vmem>>, vector<128x512xf32>
    %cst_41 = arith.constant dense<0.000000e+00> : vector<2x512xf32>
    %138 = tpu.matmul %136, %137, %cst_41 {dimension_numbers = #tpu.dot_dimension_numbers<[1], [0], [0], [1], [0, 0, 1, 1], [], []>} : vector<2x128xf32>, vector<128x512xf32>, vector<2x512xf32> -> vector<2x512xf32>
    %139 = arith.addf %138, %109 : vector<2x512xf32>
    %140 = vector.broadcast %3 : vector<1x512xf32> to vector<2x512xf32>
    %141 = arith.addf %139, %140 : vector<2x512xf32>
    %142 = vector.extract_strided_slice %141 {offsets = [0, 0], sizes = [2, 384], strides = [1, 1]} : vector<2x512xf32> to vector<2x384xf32>
    %cst_42 = arith.constant 5.000000e-01 : f32
    %143 = vector.broadcast %cst_42 : f32 to vector<2x384xf32>
    %144 = arith.mulf %143, %142 : vector<2x384xf32>
    %145 = math.tanh %144 : vector<2x384xf32>
    %cst_43 = arith.constant 5.000000e-01 : f32
    %146 = vector.broadcast %cst_43 : f32 to vector<2x384xf32>
    %147 = arith.mulf %146, %145 : vector<2x384xf32>
    %cst_44 = arith.constant 5.000000e-01 : f32
    %148 = vector.broadcast %cst_44 : f32 to vector<2x384xf32>
    %149 = arith.addf %147, %148 : vector<2x384xf32>
    %150 = vector.extract_strided_slice %149 {offsets = [0, 0], sizes = [2, 128], strides = [1, 1]} : vector<2x384xf32> to vector<2x128xf32>
    %151 = vector.extract_strided_slice %149 {offsets = [0, 128], sizes = [2, 128], strides = [1, 1]} : vector<2x384xf32> to vector<2x128xf32>
    %152 = vector.extract_strided_slice %149 {offsets = [0, 256], sizes = [2, 128], strides = [1, 1]} : vector<2x384xf32> to vector<2x128xf32>
    %153 = vector.extract_strided_slice %141 {offsets = [0, 384], sizes = [2, 128], strides = [1, 1]} : vector<2x512xf32> to vector<2x128xf32>
    %154 = math.tanh %153 : vector<2x128xf32>
    %155 = arith.mulf %151, %105 : vector<2x128xf32>
    %156 = arith.mulf %150, %154 : vector<2x128xf32>
    %157 = arith.addf %155, %156 : vector<2x128xf32>
    %158 = math.tanh %157 : vector<2x128xf32>
    %159 = arith.mulf %152, %158 : vector<2x128xf32>
    %c256_45 = arith.constant 256 : index
    %c0_46 = arith.constant 0 : index
    %160 = vector.load %arg1[%c256_45, %c0_46] : memref<389x512xf32, #tpu.memory_space<vmem>>, vector<128x512xf32>
    %cst_47 = arith.constant dense<0.000000e+00> : vector<2x512xf32>
    %161 = tpu.matmul %159, %160, %cst_47 {dimension_numbers = #tpu.dot_dimension_numbers<[1], [0], [0], [1], [0, 0, 1, 1], [], []>} : vector<2x128xf32>, vector<128x512xf32>, vector<2x512xf32> -> vector<2x512xf32>
    %162 = vector.extract_strided_slice %0 {offsets = [0, 3], sizes = [2, 1], strides = [1, 1]} : vector<2x8xf32> to vector<2x1xf32>
    %163 = vector.broadcast %162 : vector<2x1xf32> to vector<2x512xf32>
    %164 = vector.broadcast %1 : vector<1x512xf32> to vector<2x512xf32>
    %165 = arith.mulf %163, %164 : vector<2x512xf32>
    %166 = vector.broadcast %2 : vector<1x512xf32> to vector<2x512xf32>
    %167 = arith.addf %165, %166 : vector<2x512xf32>
    %c0_48 = arith.constant 0 : index
    %c0_49 = arith.constant 0 : index
    %168 = vector.load %arg1[%c0_48, %c0_49] : memref<389x512xf32, #tpu.memory_space<vmem>>, vector<128x512xf32>
    %cst_50 = arith.constant dense<0.000000e+00> : vector<2x512xf32>
    %169 = tpu.matmul %136, %168, %cst_50 {dimension_numbers = #tpu.dot_dimension_numbers<[1], [0], [0], [1], [0, 0, 1, 1], [], []>} : vector<2x128xf32>, vector<128x512xf32>, vector<2x512xf32> -> vector<2x512xf32>
    %170 = arith.addf %167, %169 : vector<2x512xf32>
    %171 = vector.extract_strided_slice %170 {offsets = [0, 0], sizes = [2, 384], strides = [1, 1]} : vector<2x512xf32> to vector<2x384xf32>
    %cst_51 = arith.constant 5.000000e-01 : f32
    %172 = vector.broadcast %cst_51 : f32 to vector<2x384xf32>
    %173 = arith.mulf %172, %171 : vector<2x384xf32>
    %174 = math.tanh %173 : vector<2x384xf32>
    %cst_52 = arith.constant 5.000000e-01 : f32
    %175 = vector.broadcast %cst_52 : f32 to vector<2x384xf32>
    %176 = arith.mulf %175, %174 : vector<2x384xf32>
    %cst_53 = arith.constant 5.000000e-01 : f32
    %177 = vector.broadcast %cst_53 : f32 to vector<2x384xf32>
    %178 = arith.addf %176, %177 : vector<2x384xf32>
    %179 = vector.extract_strided_slice %178 {offsets = [0, 0], sizes = [2, 128], strides = [1, 1]} : vector<2x384xf32> to vector<2x128xf32>
    %180 = vector.extract_strided_slice %178 {offsets = [0, 128], sizes = [2, 128], strides = [1, 1]} : vector<2x384xf32> to vector<2x128xf32>
    %181 = vector.extract_strided_slice %178 {offsets = [0, 256], sizes = [2, 128], strides = [1, 1]} : vector<2x384xf32> to vector<2x128xf32>
    %182 = vector.extract_strided_slice %170 {offsets = [0, 384], sizes = [2, 128], strides = [1, 1]} : vector<2x512xf32> to vector<2x128xf32>
    %183 = math.tanh %182 : vector<2x128xf32>
    %184 = arith.mulf %180, %134 : vector<2x128xf32>
    %185 = arith.mulf %179, %183 : vector<2x128xf32>
    %186 = arith.addf %184, %185 : vector<2x128xf32>
    %187 = math.tanh %186 : vector<2x128xf32>
    %188 = arith.mulf %181, %187 : vector<2x128xf32>
    %c128_54 = arith.constant 128 : index
    %c0_55 = arith.constant 0 : index
    %189 = vector.load %arg1[%c128_54, %c0_55] : memref<389x512xf32, #tpu.memory_space<vmem>>, vector<128x512xf32>
    %cst_56 = arith.constant dense<0.000000e+00> : vector<2x512xf32>
    %190 = tpu.matmul %188, %189, %cst_56 {dimension_numbers = #tpu.dot_dimension_numbers<[1], [0], [0], [1], [0, 0, 1, 1], [], []>} : vector<2x128xf32>, vector<128x512xf32>, vector<2x512xf32> -> vector<2x512xf32>
    %191 = arith.addf %190, %161 : vector<2x512xf32>
    %192 = vector.broadcast %3 : vector<1x512xf32> to vector<2x512xf32>
    %193 = arith.addf %191, %192 : vector<2x512xf32>
    %194 = vector.extract_strided_slice %193 {offsets = [0, 0], sizes = [2, 384], strides = [1, 1]} : vector<2x512xf32> to vector<2x384xf32>
    %cst_57 = arith.constant 5.000000e-01 : f32
    %195 = vector.broadcast %cst_57 : f32 to vector<2x384xf32>
    %196 = arith.mulf %195, %194 : vector<2x384xf32>
    %197 = math.tanh %196 : vector<2x384xf32>
    %cst_58 = arith.constant 5.000000e-01 : f32
    %198 = vector.broadcast %cst_58 : f32 to vector<2x384xf32>
    %199 = arith.mulf %198, %197 : vector<2x384xf32>
    %cst_59 = arith.constant 5.000000e-01 : f32
    %200 = vector.broadcast %cst_59 : f32 to vector<2x384xf32>
    %201 = arith.addf %199, %200 : vector<2x384xf32>
    %202 = vector.extract_strided_slice %201 {offsets = [0, 0], sizes = [2, 128], strides = [1, 1]} : vector<2x384xf32> to vector<2x128xf32>
    %203 = vector.extract_strided_slice %201 {offsets = [0, 128], sizes = [2, 128], strides = [1, 1]} : vector<2x384xf32> to vector<2x128xf32>
    %204 = vector.extract_strided_slice %201 {offsets = [0, 256], sizes = [2, 128], strides = [1, 1]} : vector<2x384xf32> to vector<2x128xf32>
    %205 = vector.extract_strided_slice %193 {offsets = [0, 384], sizes = [2, 128], strides = [1, 1]} : vector<2x512xf32> to vector<2x128xf32>
    %206 = math.tanh %205 : vector<2x128xf32>
    %207 = arith.mulf %203, %157 : vector<2x128xf32>
    %208 = arith.mulf %202, %206 : vector<2x128xf32>
    %209 = arith.addf %207, %208 : vector<2x128xf32>
    %210 = math.tanh %209 : vector<2x128xf32>
    %211 = arith.mulf %204, %210 : vector<2x128xf32>
    %c256_60 = arith.constant 256 : index
    %c0_61 = arith.constant 0 : index
    %212 = vector.load %arg1[%c256_60, %c0_61] : memref<389x512xf32, #tpu.memory_space<vmem>>, vector<128x512xf32>
    %cst_62 = arith.constant dense<0.000000e+00> : vector<2x512xf32>
    %213 = tpu.matmul %211, %212, %cst_62 {dimension_numbers = #tpu.dot_dimension_numbers<[1], [0], [0], [1], [0, 0, 1, 1], [], []>} : vector<2x128xf32>, vector<128x512xf32>, vector<2x512xf32> -> vector<2x512xf32>
    %214 = vector.extract_strided_slice %0 {offsets = [0, 4], sizes = [2, 1], strides = [1, 1]} : vector<2x8xf32> to vector<2x1xf32>
    %215 = vector.broadcast %214 : vector<2x1xf32> to vector<2x512xf32>
    %216 = vector.broadcast %1 : vector<1x512xf32> to vector<2x512xf32>
    %217 = arith.mulf %215, %216 : vector<2x512xf32>
    %218 = vector.broadcast %2 : vector<1x512xf32> to vector<2x512xf32>
    %219 = arith.addf %217, %218 : vector<2x512xf32>
    %c0_63 = arith.constant 0 : index
    %c0_64 = arith.constant 0 : index
    %220 = vector.load %arg1[%c0_63, %c0_64] : memref<389x512xf32, #tpu.memory_space<vmem>>, vector<128x512xf32>
    %cst_65 = arith.constant dense<0.000000e+00> : vector<2x512xf32>
    %221 = tpu.matmul %188, %220, %cst_65 {dimension_numbers = #tpu.dot_dimension_numbers<[1], [0], [0], [1], [0, 0, 1, 1], [], []>} : vector<2x128xf32>, vector<128x512xf32>, vector<2x512xf32> -> vector<2x512xf32>
    %222 = arith.addf %219, %221 : vector<2x512xf32>
    %223 = vector.extract_strided_slice %222 {offsets = [0, 0], sizes = [2, 384], strides = [1, 1]} : vector<2x512xf32> to vector<2x384xf32>
    %cst_66 = arith.constant 5.000000e-01 : f32
    %224 = vector.broadcast %cst_66 : f32 to vector<2x384xf32>
    %225 = arith.mulf %224, %223 : vector<2x384xf32>
    %226 = math.tanh %225 : vector<2x384xf32>
    %cst_67 = arith.constant 5.000000e-01 : f32
    %227 = vector.broadcast %cst_67 : f32 to vector<2x384xf32>
    %228 = arith.mulf %227, %226 : vector<2x384xf32>
    %cst_68 = arith.constant 5.000000e-01 : f32
    %229 = vector.broadcast %cst_68 : f32 to vector<2x384xf32>
    %230 = arith.addf %228, %229 : vector<2x384xf32>
    %231 = vector.extract_strided_slice %230 {offsets = [0, 0], sizes = [2, 128], strides = [1, 1]} : vector<2x384xf32> to vector<2x128xf32>
    %232 = vector.extract_strided_slice %230 {offsets = [0, 128], sizes = [2, 128], strides = [1, 1]} : vector<2x384xf32> to vector<2x128xf32>
    %233 = vector.extract_strided_slice %230 {offsets = [0, 256], sizes = [2, 128], strides = [1, 1]} : vector<2x384xf32> to vector<2x128xf32>
    %234 = vector.extract_strided_slice %222 {offsets = [0, 384], sizes = [2, 128], strides = [1, 1]} : vector<2x512xf32> to vector<2x128xf32>
    %235 = math.tanh %234 : vector<2x128xf32>
    %236 = arith.mulf %232, %186 : vector<2x128xf32>
    %237 = arith.mulf %231, %235 : vector<2x128xf32>
    %238 = arith.addf %236, %237 : vector<2x128xf32>
    %239 = math.tanh %238 : vector<2x128xf32>
    %240 = arith.mulf %233, %239 : vector<2x128xf32>
    %c128_69 = arith.constant 128 : index
    %c0_70 = arith.constant 0 : index
    %241 = vector.load %arg1[%c128_69, %c0_70] : memref<389x512xf32, #tpu.memory_space<vmem>>, vector<128x512xf32>
    %cst_71 = arith.constant dense<0.000000e+00> : vector<2x512xf32>
    %242 = tpu.matmul %240, %241, %cst_71 {dimension_numbers = #tpu.dot_dimension_numbers<[1], [0], [0], [1], [0, 0, 1, 1], [], []>} : vector<2x128xf32>, vector<128x512xf32>, vector<2x512xf32> -> vector<2x512xf32>
    %243 = arith.addf %242, %213 : vector<2x512xf32>
    %244 = vector.broadcast %3 : vector<1x512xf32> to vector<2x512xf32>
    %245 = arith.addf %243, %244 : vector<2x512xf32>
    %246 = vector.extract_strided_slice %245 {offsets = [0, 0], sizes = [2, 384], strides = [1, 1]} : vector<2x512xf32> to vector<2x384xf32>
    %cst_72 = arith.constant 5.000000e-01 : f32
    %247 = vector.broadcast %cst_72 : f32 to vector<2x384xf32>
    %248 = arith.mulf %247, %246 : vector<2x384xf32>
    %249 = math.tanh %248 : vector<2x384xf32>
    %cst_73 = arith.constant 5.000000e-01 : f32
    %250 = vector.broadcast %cst_73 : f32 to vector<2x384xf32>
    %251 = arith.mulf %250, %249 : vector<2x384xf32>
    %cst_74 = arith.constant 5.000000e-01 : f32
    %252 = vector.broadcast %cst_74 : f32 to vector<2x384xf32>
    %253 = arith.addf %251, %252 : vector<2x384xf32>
    %254 = vector.extract_strided_slice %253 {offsets = [0, 0], sizes = [2, 128], strides = [1, 1]} : vector<2x384xf32> to vector<2x128xf32>
    %255 = vector.extract_strided_slice %253 {offsets = [0, 128], sizes = [2, 128], strides = [1, 1]} : vector<2x384xf32> to vector<2x128xf32>
    %256 = vector.extract_strided_slice %253 {offsets = [0, 256], sizes = [2, 128], strides = [1, 1]} : vector<2x384xf32> to vector<2x128xf32>
    %257 = vector.extract_strided_slice %245 {offsets = [0, 384], sizes = [2, 128], strides = [1, 1]} : vector<2x512xf32> to vector<2x128xf32>
    %258 = math.tanh %257 : vector<2x128xf32>
    %259 = arith.mulf %255, %209 : vector<2x128xf32>
    %260 = arith.mulf %254, %258 : vector<2x128xf32>
    %261 = arith.addf %259, %260 : vector<2x128xf32>
    %262 = math.tanh %261 : vector<2x128xf32>
    %263 = arith.mulf %256, %262 : vector<2x128xf32>
    %c256_75 = arith.constant 256 : index
    %c0_76 = arith.constant 0 : index
    %264 = vector.load %arg1[%c256_75, %c0_76] : memref<389x512xf32, #tpu.memory_space<vmem>>, vector<128x512xf32>
    %cst_77 = arith.constant dense<0.000000e+00> : vector<2x512xf32>
    %265 = tpu.matmul %263, %264, %cst_77 {dimension_numbers = #tpu.dot_dimension_numbers<[1], [0], [0], [1], [0, 0, 1, 1], [], []>} : vector<2x128xf32>, vector<128x512xf32>, vector<2x512xf32> -> vector<2x512xf32>
    %266 = vector.extract_strided_slice %0 {offsets = [0, 5], sizes = [2, 1], strides = [1, 1]} : vector<2x8xf32> to vector<2x1xf32>
    %267 = vector.broadcast %266 : vector<2x1xf32> to vector<2x512xf32>
    %268 = vector.broadcast %1 : vector<1x512xf32> to vector<2x512xf32>
    %269 = arith.mulf %267, %268 : vector<2x512xf32>
    %270 = vector.broadcast %2 : vector<1x512xf32> to vector<2x512xf32>
    %271 = arith.addf %269, %270 : vector<2x512xf32>
    %c0_78 = arith.constant 0 : index
    %c0_79 = arith.constant 0 : index
    %272 = vector.load %arg1[%c0_78, %c0_79] : memref<389x512xf32, #tpu.memory_space<vmem>>, vector<128x512xf32>
    %cst_80 = arith.constant dense<0.000000e+00> : vector<2x512xf32>
    %273 = tpu.matmul %240, %272, %cst_80 {dimension_numbers = #tpu.dot_dimension_numbers<[1], [0], [0], [1], [0, 0, 1, 1], [], []>} : vector<2x128xf32>, vector<128x512xf32>, vector<2x512xf32> -> vector<2x512xf32>
    %274 = arith.addf %271, %273 : vector<2x512xf32>
    %275 = vector.extract_strided_slice %274 {offsets = [0, 0], sizes = [2, 384], strides = [1, 1]} : vector<2x512xf32> to vector<2x384xf32>
    %cst_81 = arith.constant 5.000000e-01 : f32
    %276 = vector.broadcast %cst_81 : f32 to vector<2x384xf32>
    %277 = arith.mulf %276, %275 : vector<2x384xf32>
    %278 = math.tanh %277 : vector<2x384xf32>
    %cst_82 = arith.constant 5.000000e-01 : f32
    %279 = vector.broadcast %cst_82 : f32 to vector<2x384xf32>
    %280 = arith.mulf %279, %278 : vector<2x384xf32>
    %cst_83 = arith.constant 5.000000e-01 : f32
    %281 = vector.broadcast %cst_83 : f32 to vector<2x384xf32>
    %282 = arith.addf %280, %281 : vector<2x384xf32>
    %283 = vector.extract_strided_slice %282 {offsets = [0, 0], sizes = [2, 128], strides = [1, 1]} : vector<2x384xf32> to vector<2x128xf32>
    %284 = vector.extract_strided_slice %282 {offsets = [0, 128], sizes = [2, 128], strides = [1, 1]} : vector<2x384xf32> to vector<2x128xf32>
    %285 = vector.extract_strided_slice %282 {offsets = [0, 256], sizes = [2, 128], strides = [1, 1]} : vector<2x384xf32> to vector<2x128xf32>
    %286 = vector.extract_strided_slice %274 {offsets = [0, 384], sizes = [2, 128], strides = [1, 1]} : vector<2x512xf32> to vector<2x128xf32>
    %287 = math.tanh %286 : vector<2x128xf32>
    %288 = arith.mulf %284, %238 : vector<2x128xf32>
    %289 = arith.mulf %283, %287 : vector<2x128xf32>
    %290 = arith.addf %288, %289 : vector<2x128xf32>
    %291 = math.tanh %290 : vector<2x128xf32>
    %292 = arith.mulf %285, %291 : vector<2x128xf32>
    %c128_84 = arith.constant 128 : index
    %c0_85 = arith.constant 0 : index
    %293 = vector.load %arg1[%c128_84, %c0_85] : memref<389x512xf32, #tpu.memory_space<vmem>>, vector<128x512xf32>
    %cst_86 = arith.constant dense<0.000000e+00> : vector<2x512xf32>
    %294 = tpu.matmul %292, %293, %cst_86 {dimension_numbers = #tpu.dot_dimension_numbers<[1], [0], [0], [1], [0, 0, 1, 1], [], []>} : vector<2x128xf32>, vector<128x512xf32>, vector<2x512xf32> -> vector<2x512xf32>
    %295 = arith.addf %294, %265 : vector<2x512xf32>
    %296 = vector.broadcast %3 : vector<1x512xf32> to vector<2x512xf32>
    %297 = arith.addf %295, %296 : vector<2x512xf32>
    %298 = vector.extract_strided_slice %297 {offsets = [0, 0], sizes = [2, 384], strides = [1, 1]} : vector<2x512xf32> to vector<2x384xf32>
    %cst_87 = arith.constant 5.000000e-01 : f32
    %299 = vector.broadcast %cst_87 : f32 to vector<2x384xf32>
    %300 = arith.mulf %299, %298 : vector<2x384xf32>
    %301 = math.tanh %300 : vector<2x384xf32>
    %cst_88 = arith.constant 5.000000e-01 : f32
    %302 = vector.broadcast %cst_88 : f32 to vector<2x384xf32>
    %303 = arith.mulf %302, %301 : vector<2x384xf32>
    %cst_89 = arith.constant 5.000000e-01 : f32
    %304 = vector.broadcast %cst_89 : f32 to vector<2x384xf32>
    %305 = arith.addf %303, %304 : vector<2x384xf32>
    %306 = vector.extract_strided_slice %305 {offsets = [0, 0], sizes = [2, 128], strides = [1, 1]} : vector<2x384xf32> to vector<2x128xf32>
    %307 = vector.extract_strided_slice %305 {offsets = [0, 128], sizes = [2, 128], strides = [1, 1]} : vector<2x384xf32> to vector<2x128xf32>
    %308 = vector.extract_strided_slice %305 {offsets = [0, 256], sizes = [2, 128], strides = [1, 1]} : vector<2x384xf32> to vector<2x128xf32>
    %309 = vector.extract_strided_slice %297 {offsets = [0, 384], sizes = [2, 128], strides = [1, 1]} : vector<2x512xf32> to vector<2x128xf32>
    %310 = math.tanh %309 : vector<2x128xf32>
    %311 = arith.mulf %307, %261 : vector<2x128xf32>
    %312 = arith.mulf %306, %310 : vector<2x128xf32>
    %313 = arith.addf %311, %312 : vector<2x128xf32>
    %314 = math.tanh %313 : vector<2x128xf32>
    %315 = arith.mulf %308, %314 : vector<2x128xf32>
    %c256_90 = arith.constant 256 : index
    %c0_91 = arith.constant 0 : index
    %316 = vector.load %arg1[%c256_90, %c0_91] : memref<389x512xf32, #tpu.memory_space<vmem>>, vector<128x512xf32>
    %cst_92 = arith.constant dense<0.000000e+00> : vector<2x512xf32>
    %317 = tpu.matmul %315, %316, %cst_92 {dimension_numbers = #tpu.dot_dimension_numbers<[1], [0], [0], [1], [0, 0, 1, 1], [], []>} : vector<2x128xf32>, vector<128x512xf32>, vector<2x512xf32> -> vector<2x512xf32>
    %318 = vector.extract_strided_slice %0 {offsets = [0, 6], sizes = [2, 1], strides = [1, 1]} : vector<2x8xf32> to vector<2x1xf32>
    %319 = vector.broadcast %318 : vector<2x1xf32> to vector<2x512xf32>
    %320 = vector.broadcast %1 : vector<1x512xf32> to vector<2x512xf32>
    %321 = arith.mulf %319, %320 : vector<2x512xf32>
    %322 = vector.broadcast %2 : vector<1x512xf32> to vector<2x512xf32>
    %323 = arith.addf %321, %322 : vector<2x512xf32>
    %c0_93 = arith.constant 0 : index
    %c0_94 = arith.constant 0 : index
    %324 = vector.load %arg1[%c0_93, %c0_94] : memref<389x512xf32, #tpu.memory_space<vmem>>, vector<128x512xf32>
    %cst_95 = arith.constant dense<0.000000e+00> : vector<2x512xf32>
    %325 = tpu.matmul %292, %324, %cst_95 {dimension_numbers = #tpu.dot_dimension_numbers<[1], [0], [0], [1], [0, 0, 1, 1], [], []>} : vector<2x128xf32>, vector<128x512xf32>, vector<2x512xf32> -> vector<2x512xf32>
    %326 = arith.addf %323, %325 : vector<2x512xf32>
    %327 = vector.extract_strided_slice %326 {offsets = [0, 0], sizes = [2, 384], strides = [1, 1]} : vector<2x512xf32> to vector<2x384xf32>
    %cst_96 = arith.constant 5.000000e-01 : f32
    %328 = vector.broadcast %cst_96 : f32 to vector<2x384xf32>
    %329 = arith.mulf %328, %327 : vector<2x384xf32>
    %330 = math.tanh %329 : vector<2x384xf32>
    %cst_97 = arith.constant 5.000000e-01 : f32
    %331 = vector.broadcast %cst_97 : f32 to vector<2x384xf32>
    %332 = arith.mulf %331, %330 : vector<2x384xf32>
    %cst_98 = arith.constant 5.000000e-01 : f32
    %333 = vector.broadcast %cst_98 : f32 to vector<2x384xf32>
    %334 = arith.addf %332, %333 : vector<2x384xf32>
    %335 = vector.extract_strided_slice %334 {offsets = [0, 0], sizes = [2, 128], strides = [1, 1]} : vector<2x384xf32> to vector<2x128xf32>
    %336 = vector.extract_strided_slice %334 {offsets = [0, 128], sizes = [2, 128], strides = [1, 1]} : vector<2x384xf32> to vector<2x128xf32>
    %337 = vector.extract_strided_slice %334 {offsets = [0, 256], sizes = [2, 128], strides = [1, 1]} : vector<2x384xf32> to vector<2x128xf32>
    %338 = vector.extract_strided_slice %326 {offsets = [0, 384], sizes = [2, 128], strides = [1, 1]} : vector<2x512xf32> to vector<2x128xf32>
    %339 = math.tanh %338 : vector<2x128xf32>
    %340 = arith.mulf %336, %290 : vector<2x128xf32>
    %341 = arith.mulf %335, %339 : vector<2x128xf32>
    %342 = arith.addf %340, %341 : vector<2x128xf32>
    %343 = math.tanh %342 : vector<2x128xf32>
    %344 = arith.mulf %337, %343 : vector<2x128xf32>
    %c128_99 = arith.constant 128 : index
    %c0_100 = arith.constant 0 : index
    %345 = vector.load %arg1[%c128_99, %c0_100] : memref<389x512xf32, #tpu.memory_space<vmem>>, vector<128x512xf32>
    %cst_101 = arith.constant dense<0.000000e+00> : vector<2x512xf32>
    %346 = tpu.matmul %344, %345, %cst_101 {dimension_numbers = #tpu.dot_dimension_numbers<[1], [0], [0], [1], [0, 0, 1, 1], [], []>} : vector<2x128xf32>, vector<128x512xf32>, vector<2x512xf32> -> vector<2x512xf32>
    %347 = arith.addf %346, %317 : vector<2x512xf32>
    %348 = vector.broadcast %3 : vector<1x512xf32> to vector<2x512xf32>
    %349 = arith.addf %347, %348 : vector<2x512xf32>
    %350 = vector.extract_strided_slice %349 {offsets = [0, 0], sizes = [2, 384], strides = [1, 1]} : vector<2x512xf32> to vector<2x384xf32>
    %cst_102 = arith.constant 5.000000e-01 : f32
    %351 = vector.broadcast %cst_102 : f32 to vector<2x384xf32>
    %352 = arith.mulf %351, %350 : vector<2x384xf32>
    %353 = math.tanh %352 : vector<2x384xf32>
    %cst_103 = arith.constant 5.000000e-01 : f32
    %354 = vector.broadcast %cst_103 : f32 to vector<2x384xf32>
    %355 = arith.mulf %354, %353 : vector<2x384xf32>
    %cst_104 = arith.constant 5.000000e-01 : f32
    %356 = vector.broadcast %cst_104 : f32 to vector<2x384xf32>
    %357 = arith.addf %355, %356 : vector<2x384xf32>
    %358 = vector.extract_strided_slice %357 {offsets = [0, 0], sizes = [2, 128], strides = [1, 1]} : vector<2x384xf32> to vector<2x128xf32>
    %359 = vector.extract_strided_slice %357 {offsets = [0, 128], sizes = [2, 128], strides = [1, 1]} : vector<2x384xf32> to vector<2x128xf32>
    %360 = vector.extract_strided_slice %357 {offsets = [0, 256], sizes = [2, 128], strides = [1, 1]} : vector<2x384xf32> to vector<2x128xf32>
    %361 = vector.extract_strided_slice %349 {offsets = [0, 384], sizes = [2, 128], strides = [1, 1]} : vector<2x512xf32> to vector<2x128xf32>
    %362 = math.tanh %361 : vector<2x128xf32>
    %363 = arith.mulf %359, %313 : vector<2x128xf32>
    %364 = arith.mulf %358, %362 : vector<2x128xf32>
    %365 = arith.addf %363, %364 : vector<2x128xf32>
    %366 = math.tanh %365 : vector<2x128xf32>
    %367 = arith.mulf %360, %366 : vector<2x128xf32>
    %c256_105 = arith.constant 256 : index
    %c0_106 = arith.constant 0 : index
    %368 = vector.load %arg1[%c256_105, %c0_106] : memref<389x512xf32, #tpu.memory_space<vmem>>, vector<128x512xf32>
    %cst_107 = arith.constant dense<0.000000e+00> : vector<2x512xf32>
    %369 = tpu.matmul %367, %368, %cst_107 {dimension_numbers = #tpu.dot_dimension_numbers<[1], [0], [0], [1], [0, 0, 1, 1], [], []>} : vector<2x128xf32>, vector<128x512xf32>, vector<2x512xf32> -> vector<2x512xf32>
    %370 = vector.extract_strided_slice %0 {offsets = [0, 7], sizes = [2, 1], strides = [1, 1]} : vector<2x8xf32> to vector<2x1xf32>
    %371 = vector.broadcast %370 : vector<2x1xf32> to vector<2x512xf32>
    %372 = vector.broadcast %1 : vector<1x512xf32> to vector<2x512xf32>
    %373 = arith.mulf %371, %372 : vector<2x512xf32>
    %374 = vector.broadcast %2 : vector<1x512xf32> to vector<2x512xf32>
    %375 = arith.addf %373, %374 : vector<2x512xf32>
    %c0_108 = arith.constant 0 : index
    %c0_109 = arith.constant 0 : index
    %376 = vector.load %arg1[%c0_108, %c0_109] : memref<389x512xf32, #tpu.memory_space<vmem>>, vector<128x512xf32>
    %cst_110 = arith.constant dense<0.000000e+00> : vector<2x512xf32>
    %377 = tpu.matmul %344, %376, %cst_110 {dimension_numbers = #tpu.dot_dimension_numbers<[1], [0], [0], [1], [0, 0, 1, 1], [], []>} : vector<2x128xf32>, vector<128x512xf32>, vector<2x512xf32> -> vector<2x512xf32>
    %378 = arith.addf %375, %377 : vector<2x512xf32>
    %379 = vector.extract_strided_slice %378 {offsets = [0, 0], sizes = [2, 384], strides = [1, 1]} : vector<2x512xf32> to vector<2x384xf32>
    %cst_111 = arith.constant 5.000000e-01 : f32
    %380 = vector.broadcast %cst_111 : f32 to vector<2x384xf32>
    %381 = arith.mulf %380, %379 : vector<2x384xf32>
    %382 = math.tanh %381 : vector<2x384xf32>
    %cst_112 = arith.constant 5.000000e-01 : f32
    %383 = vector.broadcast %cst_112 : f32 to vector<2x384xf32>
    %384 = arith.mulf %383, %382 : vector<2x384xf32>
    %cst_113 = arith.constant 5.000000e-01 : f32
    %385 = vector.broadcast %cst_113 : f32 to vector<2x384xf32>
    %386 = arith.addf %384, %385 : vector<2x384xf32>
    %387 = vector.extract_strided_slice %386 {offsets = [0, 0], sizes = [2, 128], strides = [1, 1]} : vector<2x384xf32> to vector<2x128xf32>
    %388 = vector.extract_strided_slice %386 {offsets = [0, 128], sizes = [2, 128], strides = [1, 1]} : vector<2x384xf32> to vector<2x128xf32>
    %389 = vector.extract_strided_slice %386 {offsets = [0, 256], sizes = [2, 128], strides = [1, 1]} : vector<2x384xf32> to vector<2x128xf32>
    %390 = vector.extract_strided_slice %378 {offsets = [0, 384], sizes = [2, 128], strides = [1, 1]} : vector<2x512xf32> to vector<2x128xf32>
    %391 = math.tanh %390 : vector<2x128xf32>
    %392 = arith.mulf %388, %342 : vector<2x128xf32>
    %393 = arith.mulf %387, %391 : vector<2x128xf32>
    %394 = arith.addf %392, %393 : vector<2x128xf32>
    %395 = math.tanh %394 : vector<2x128xf32>
    %396 = arith.mulf %389, %395 : vector<2x128xf32>
    %c128_114 = arith.constant 128 : index
    %c0_115 = arith.constant 0 : index
    %397 = vector.load %arg1[%c128_114, %c0_115] : memref<389x512xf32, #tpu.memory_space<vmem>>, vector<128x512xf32>
    %cst_116 = arith.constant dense<0.000000e+00> : vector<2x512xf32>
    %398 = tpu.matmul %396, %397, %cst_116 {dimension_numbers = #tpu.dot_dimension_numbers<[1], [0], [0], [1], [0, 0, 1, 1], [], []>} : vector<2x128xf32>, vector<128x512xf32>, vector<2x512xf32> -> vector<2x512xf32>
    %399 = arith.addf %398, %369 : vector<2x512xf32>
    %400 = vector.broadcast %3 : vector<1x512xf32> to vector<2x512xf32>
    %401 = arith.addf %399, %400 : vector<2x512xf32>
    %402 = vector.extract_strided_slice %401 {offsets = [0, 0], sizes = [2, 384], strides = [1, 1]} : vector<2x512xf32> to vector<2x384xf32>
    %cst_117 = arith.constant 5.000000e-01 : f32
    %403 = vector.broadcast %cst_117 : f32 to vector<2x384xf32>
    %404 = arith.mulf %403, %402 : vector<2x384xf32>
    %405 = math.tanh %404 : vector<2x384xf32>
    %cst_118 = arith.constant 5.000000e-01 : f32
    %406 = vector.broadcast %cst_118 : f32 to vector<2x384xf32>
    %407 = arith.mulf %406, %405 : vector<2x384xf32>
    %cst_119 = arith.constant 5.000000e-01 : f32
    %408 = vector.broadcast %cst_119 : f32 to vector<2x384xf32>
    %409 = arith.addf %407, %408 : vector<2x384xf32>
    %410 = vector.extract_strided_slice %409 {offsets = [0, 0], sizes = [2, 128], strides = [1, 1]} : vector<2x384xf32> to vector<2x128xf32>
    %411 = vector.extract_strided_slice %409 {offsets = [0, 128], sizes = [2, 128], strides = [1, 1]} : vector<2x384xf32> to vector<2x128xf32>
    %412 = vector.extract_strided_slice %409 {offsets = [0, 256], sizes = [2, 128], strides = [1, 1]} : vector<2x384xf32> to vector<2x128xf32>
    %413 = vector.extract_strided_slice %401 {offsets = [0, 384], sizes = [2, 128], strides = [1, 1]} : vector<2x512xf32> to vector<2x128xf32>
    %414 = math.tanh %413 : vector<2x128xf32>
    %415 = arith.mulf %411, %365 : vector<2x128xf32>
    %416 = arith.mulf %410, %414 : vector<2x128xf32>
    %417 = arith.addf %415, %416 : vector<2x128xf32>
    %418 = math.tanh %417 : vector<2x128xf32>
    %419 = arith.mulf %412, %418 : vector<2x128xf32>
    %c387 = arith.constant 387 : index
    %c0_120 = arith.constant 0 : index
    %420 = vector.load %arg1[%c387, %c0_120] : memref<389x512xf32, #tpu.memory_space<vmem>>, vector<1x128xf32>
    %c388 = arith.constant 388 : index
    %c0_121 = arith.constant 0 : index
    %421 = vector.load %arg1[%c388, %c0_121] : memref<389x512xf32, #tpu.memory_space<vmem>>, vector<1x1xf32>
    %422 = vector.broadcast %420 : vector<1x128xf32> to vector<2x128xf32>
    %423 = arith.mulf %419, %422 : vector<2x128xf32>
    %cst_122 = arith.constant dense<0.000000e+00> : vector<2xf32>
    %424 = vector.multi_reduction <add>, %423, %cst_122 [1] : vector<2x128xf32> to vector<2xf32>
    %425 = vector.shape_cast %424 : vector<2xf32> to vector<2x1xf32>
    %426 = vector.broadcast %421 : vector<1x1xf32> to vector<2x1xf32>
    %427 = arith.addf %425, %426 : vector<2x1xf32>
    %c0_123 = arith.constant 0 : index
    %c0_124 = arith.constant 0 : index
    %428 = vector.load %arg2[%c0_123, %c0_124] : memref<2x1xf32, #tpu.memory_space<vmem>>, vector<2x1xf32>
    tpu.vector_store %arg2[%c0_123, %c0_124], %427 {strides = array<i32>} : memref<2x1xf32, #tpu.memory_space<vmem>>, vector<2x1xf32>,
    return
  }
}

</mosaic_0001>

<llo_original>
// kernel: lstm_model_forward.1
$region0: #{lstm_model_forward.1}
  #allocation0 [shape = 'u32[]', space=smem, size = 0x4, offset = 0x4, fixed_abs, tag = 'smem constant byte address 0x4 - core index']
  #allocation1 [shape = 'u32[144,128]{1,0:T(1,128)}', space=vmem, size = 0x12000, scoped, tag = 'internal scratch']
  %s0 = inlined_call_operand.hbm [shape: f32[2,8], index: 0, kind: input, shape index: {}]
  %s1 = inlined_call_operand.hbm [shape: f32[389,512], index: 1, kind: input, shape index: {}]
  %s2 = inlined_call_operand.vmem [shape: f32[2,1], index: 2, kind: output, shape index: {}]
  %s3 = sld [smem:[#allocation0]]
  $region26: #{lstm_model_forward.1} parent=0
    _
  %s5 = ssub.s32 1, %s3
  %s6 = scalar_select 0, %s5, %s3
  $region1: #{lstm_model_forward.1} parent=0
    #allocation2 [shape = 'u8[1024]{0}', space=vmem, size = 0x400, scoped, tag = 'input window, operand 0, single buffered']
    #allocation3 [shape = 's32[1]{0}', space=sflag, size = 0x4, scoped, tag = 'scoped memory for lstm_model_forward.1']
    #allocation4 [shape = 'u8[802816]{0}', space=vmem, size = 0xc4000, scoped, tag = 'input window, operand 1, single buffered']
    #allocation5 [shape = 's32[1]{0}', space=sflag, size = 0x4, scoped, tag = 'scoped memory for lstm_model_forward.1']
    %7 = vsyncpa [#allocation3], 0
    %8 = vsyncpa [#allocation5], 0
    // Predicated region
    $region2: #{lstm_model_forward.1} parent=1 // pred_check
      _
    $region3: #{lstm_model_forward.1} parent=1 // pred_check_branch
      %10 = sbr.rel (0) target = $region5
    $region4: #{lstm_model_forward.1} parent=1 // pred_region
      %s12 = ssub.s32 32, 32
      %13 = vsyncadd [#allocation3], %s12
      %s15 = sshll.u32 [#allocation2], 4
      %s16 = int_to_ptr.vmem [resolvable:$true] %s15
      %18 = dma.hbm_to_vmem [thread:$0]  %s0, 32, %s16, [#allocation3]
    $region5: #{lstm_model_forward.1} parent=1 // pred_fallthru
      _
    // Predicated region
    $region6: #{lstm_model_forward.1} parent=1 // pred_check
      _
    $region7: #{lstm_model_forward.1} parent=1 // pred_check_branch
      %20 = sbr.rel (0) target = $region9
    $region8: #{lstm_model_forward.1} parent=1 // pred_region
      %s22 = ssub.s32 25088, 25088
      %23 = vsyncadd [#allocation5], %s22
      %s24 = sshll.u32 [#allocation4], 4
      %s25 = int_to_ptr.vmem [resolvable:$true] %s24
      %30 = dma.hbm_to_vmem [thread:$0]  %s1, 25088, %s25, [#allocation5], 512, 512, 32
    $region9: #{lstm_model_forward.1} parent=1 // pred_fallthru
      _
    // Predicated region
    $region10: #{lstm_model_forward.1} parent=1 // pred_check
      _
    $region11: #{lstm_model_forward.1} parent=1 // pred_check_branch
      %32 = sbr.rel (0) target = $region13
    $region12: #{lstm_model_forward.1} parent=1 // pred_region
      %33 = dma.done [#allocation3], 32
    $region13: #{lstm_model_forward.1} parent=1 // pred_fallthru
      _
    // Predicated region
    $region14: #{lstm_model_forward.1} parent=1 // pred_check
      _
    $region15: #{lstm_model_forward.1} parent=1 // pred_check_branch
      %35 = sbr.rel (0) target = $region17
    $region16: #{lstm_model_forward.1} parent=1 // pred_region
      %36 = dma.done [#allocation5], 25088
    $region17: #{lstm_model_forward.1} parent=1 // pred_fallthru
      _
    %v37 = vld [vmem:[#allocation2] sm:$0x3]
    %s38 = scalar_lea.vmem [#allocation4], 1537
    %v39 = vld [vmem:[%s38] ss:$8 sm:$0xf]
    %s40 = scalar_lea.vmem [#allocation4], 1538
    %v41 = vld [vmem:[%s40] ss:$8 sm:$0xf]
    %s42 = scalar_lea.vmem [#allocation4], 1536
    %v43 = vld [vmem:[%s42] ss:$8 sm:$0xf]
    %45 = vset.pattern.permute.xlu0 0
    %46 = vperm.xlu0 %45, %v37
    %v47 = vpop.permute.xlu0 %46
    %v50 = vlaneseq
    %v51 = vshrl.u32 %v50, 7
    %v52 = vsub.s32 0, %v51
    %v53 = vrot.slane %v39, %v52
    %v54 = vlaneseq
    %v55 = vshrl.u32 %v54, 7
    %v56 = vsub.s32 1, %v55
    %v57 = vrot.slane %v39, %v56
    %v58 = vlaneseq
    %v59 = vshrl.u32 %v58, 7
    %v60 = vsub.s32 2, %v59
    %v61 = vrot.slane %v39, %v60
    %v62 = vlaneseq
    %v63 = vshrl.u32 %v62, 7
    %v64 = vsub.s32 3, %v63
    %v65 = vrot.slane %v39, %v64
    %v70 = vmul.f32 %v47, %v53
    %v71 = vmul.f32 %v47, %v57
    %v72 = vmul.f32 %v47, %v61
    %v73 = vmul.f32 %v47, %v65
    %v75 = vlaneseq
    %v76 = vshrl.u32 %v75, 7
    %v77 = vsub.s32 0, %v76
    %v78 = vrot.slane %v41, %v77
    %v79 = vlaneseq
    %v80 = vshrl.u32 %v79, 7
    %v81 = vsub.s32 1, %v80
    %v82 = vrot.slane %v41, %v81
    %v83 = vlaneseq
    %v84 = vshrl.u32 %v83, 7
    %v85 = vsub.s32 2, %v84
    %v86 = vrot.slane %v41, %v85
    %v87 = vlaneseq
    %v88 = vshrl.u32 %v87, 7
    %v89 = vsub.s32 3, %v88
    %v90 = vrot.slane %v41, %v89
    %v95 = vadd.f32 %v70, %v78
    %v96 = vadd.f32 %v71, %v82
    %v97 = vadd.f32 %v72, %v86
    %v98 = vadd.f32 %v73, %v90
    %v99 = vld [vmem:[#allocation4] sm:$0xff]
    %v100 = vld [vmem:[#allocation4 + $0x8] sm:$0xff]
    %v101 = vld [vmem:[#allocation4 + $0x10] sm:$0xff]
    %v102 = vld [vmem:[#allocation4 + $0x18] sm:$0xff]
    %v103 = vld [vmem:[#allocation4 + $0x20] sm:$0xff]
    %v104 = vld [vmem:[#allocation4 + $0x28] sm:$0xff]
    %v105 = vld [vmem:[#allocation4 + $0x30] sm:$0xff]
    %v106 = vld [vmem:[#allocation4 + $0x38] sm:$0xff]
    %v107 = vld [vmem:[#allocation4 + $0x40] sm:$0xff]
    %v108 = vld [vmem:[#allocation4 + $0x48] sm:$0xff]
    %v109 = vld [vmem:[#allocation4 + $0x50] sm:$0xff]
    %v110 = vld [vmem:[#allocation4 + $0x58] sm:$0xff]
    %v111 = vld [vmem:[#allocation4 + $0x60] sm:$0xff]
    %v112 = vld [vmem:[#allocation4 + $0x68] sm:$0xff]
    %v113 = vld [vmem:[#allocation4 + $0x70] sm:$0xff]
    %v114 = vld [vmem:[#allocation4 + $0x78] sm:$0xff]
    %v115 = vld [vmem:[#allocation4 + $0x80] sm:$0xff]
    %v116 = vld [vmem:[#allocation4 + $0x88] sm:$0xff]
    %v117 = vld [vmem:[#allocation4 + $0x90] sm:$0xff]
    %v118 = vld [vmem:[#allocation4 + $0x98] sm:$0xff]
    %v119 = vld [vmem:[#allocation4 + $0xa0] sm:$0xff]
    %v120 = vld [vmem:[#allocation4 + $0xa8] sm:$0xff]
    %v121 = vld [vmem:[#allocation4 + $0xb0] sm:$0xff]
    %v122 = vld [vmem:[#allocation4 + $0xb8] sm:$0xff]
    %v123 = vld [vmem:[#allocation4 + $0xc0] sm:$0xff]
    %v124 = vld [vmem:[#allocation4 + $0xc8] sm:$0xff]
    %v125 = vld [vmem:[#allocation4 + $0xd0] sm:$0xff]
    %v126 = vld [vmem:[#allocation4 + $0xd8] sm:$0xff]
    %v127 = vld [vmem:[#allocation4 + $0xe0] sm:$0xff]
    %v128 = vld [vmem:[#allocation4 + $0xe8] sm:$0xff]
    %v129 = vld [vmem:[#allocation4 + $0xf0] sm:$0xff]
    %v130 = vld [vmem:[#allocation4 + $0xf8] sm:$0xff]
    %v131 = vld [vmem:[#allocation4 + $0x100] sm:$0xff]
    %v132 = vld [vmem:[#allocation4 + $0x108] sm:$0xff]
    %v133 = vld [vmem:[#allocation4 + $0x110] sm:$0xff]
    %v134 = vld [vmem:[#allocation4 + $0x118] sm:$0xff]
    %v135 = vld [vmem:[#allocation4 + $0x120] sm:$0xff]
    %v136 = vld [vmem:[#allocation4 + $0x128] sm:$0xff]
    %v137 = vld [vmem:[#allocation4 + $0x130] sm:$0xff]
    %v138 = vld [vmem:[#allocation4 + $0x138] sm:$0xff]
    %v139 = vld [vmem:[#allocation4 + $0x140] sm:$0xff]
    %v140 = vld [vmem:[#allocation4 + $0x148] sm:$0xff]
    %v141 = vld [vmem:[#allocation4 + $0x150] sm:$0xff]
    %v142 = vld [vmem:[#allocation4 + $0x158] sm:$0xff]
    %v143 = vld [vmem:[#allocation4 + $0x160] sm:$0xff]
    %v144 = vld [vmem:[#allocation4 + $0x168] sm:$0xff]
    %v145 = vld [vmem:[#allocation4 + $0x170] sm:$0xff]
    %v146 = vld [vmem:[#allocation4 + $0x178] sm:$0xff]
    %v147 = vld [vmem:[#allocation4 + $0x180] sm:$0xff]
    %v148 = vld [vmem:[#allocation4 + $0x188] sm:$0xff]
    %v149 = vld [vmem:[#allocation4 + $0x190] sm:$0xff]
    %v150 = vld [vmem:[#allocation4 + $0x198] sm:$0xff]
    %v151 = vld [vmem:[#allocation4 + $0x1a0] sm:$0xff]
    %v152 = vld [vmem:[#allocation4 + $0x1a8] sm:$0xff]
    %v153 = vld [vmem:[#allocation4 + $0x1b0] sm:$0xff]
    %v154 = vld [vmem:[#allocation4 + $0x1b8] sm:$0xff]
    %v155 = vld [vmem:[#allocation4 + $0x1c0] sm:$0xff]
    %v156 = vld [vmem:[#allocation4 + $0x1c8] sm:$0xff]
    %v157 = vld [vmem:[#allocation4 + $0x1d0] sm:$0xff]
    %v158 = vld [vmem:[#allocation4 + $0x1d8] sm:$0xff]
    %v159 = vld [vmem:[#allocation4 + $0x1e0] sm:$0xff]
    %v160 = vld [vmem:[#allocation4 + $0x1e8] sm:$0xff]
    %v161 = vld [vmem:[#allocation4 + $0x1f0] sm:$0xff]
    %v162 = vld [vmem:[#allocation4 + $0x1f8] sm:$0xff]
    %163 = vmatprep.subr.mxu0 %v160
    %164 = vmatpush1.msra.mxu0 %v159
    %165 = vmatprep.subr.mxu0 %v156
    %166 = vmatpush1.msra.mxu0 %v155
    %167 = vmatprep.subr.mxu0 %v152
    %168 = vmatpush1.msra.mxu0 %v151
    %169 = vmatprep.subr.mxu0 %v148
    %170 = vmatpush1.msra.mxu0 %v147
    %171 = vmatprep.subr.mxu0 %v144
    %172 = vmatpush1.msra.mxu0 %v143
    %173 = vmatprep.subr.mxu0 %v140
    %174 = vmatpush1.msra.mxu0 %v139
    %175 = vmatprep.subr.mxu0 %v136
    %176 = vmatpush1.msra.mxu0 %v135
    %177 = vmatprep.subr.mxu0 %v132
    %178 = vmatpush1.msra.mxu0 %v131
    %179 = vmatprep.subr.mxu0 %v128
    %180 = vmatpush1.msra.mxu0 %v127
    %181 = vmatprep.subr.mxu0 %v124
    %182 = vmatpush1.msra.mxu0 %v123
    %183 = vmatprep.subr.mxu0 %v120
    %184 = vmatpush1.msra.mxu0 %v119
    %185 = vmatprep.subr.mxu0 %v116
    %186 = vmatpush1.msra.mxu0 %v115
    %187 = vmatprep.subr.mxu0 %v112
    %188 = vmatpush1.msra.mxu0 %v111
    %189 = vmatprep.subr.mxu0 %v108
    %190 = vmatpush1.msra.mxu0 %v107
    %191 = vmatprep.subr.mxu0 %v104
    %192 = vmatpush1.msra.mxu0 %v103
    %193 = vmatprep.subr.mxu0 %v100
    %194 = vmatpush1.msra.mxu0 %v99
    %195 = vmatprep.subr.mxu0 0.0
    %196 = vmatpush2.msra.mxu0 0.0
    %197 = vmatprep.subr.mxu0 0.0
    %198 = vmatpush2.msra.mxu0 0.0
    %199 = vmatprep.subr.mxu0 0.0
    %200 = vmatpush2.msra.mxu0 0.0
    %201 = vmatprep.subr.mxu0 0.0
    %202 = vmatpush2.msra.mxu0 0.0
    %203 = vmatprep.subr.mxu0 0.0
    %204 = vmatpush2.msra.mxu0 0.0
    %205 = vmatprep.subr.mxu0 0.0
    %206 = vmatpush2.msra.mxu0 0.0
    %207 = vmatprep.subr.mxu0 0.0
    %208 = vmatpush2.msra.mxu0 0.0
    %209 = vmatprep.subr.mxu0 0.0
    %210 = vmatpush2.msra.mxu0 0.0
    %211 = vmatprep.subr.mxu0 0.0
    %212 = vmatpush2.msra.mxu0 0.0
    %213 = vmatprep.subr.mxu0 0.0
    %214 = vmatpush2.msra.mxu0 0.0
    %215 = vmatprep.subr.mxu0 0.0
    %216 = vmatpush2.msra.mxu0 0.0
    %217 = vmatprep.subr.mxu0 0.0
    %218 = vmatpush2.msra.mxu0 0.0
    %219 = vmatprep.subr.mxu0 0.0
    %220 = vmatpush2.msra.mxu0 0.0
    %221 = vmatprep.subr.mxu0 0.0
    %222 = vmatpush2.msra.mxu0 0.0
    %223 = vmatprep.subr.mxu0 0.0
    %224 = vmatpush2.msra.mxu0 0.0
    %225 = vmatprep.subr.mxu0 0.0
    %226 = vmatpush2.msra.mxu0 0.0
    %227 = vmatprep.mubr.f32.mxu0 0.0
    %228 = vmatmul.mubr.f32.gmra.mxu0 0.0
    %v229 = vpop.f32.mrf.mxu0
    %v230 = vadd.f32 0.0, %v229
    %v231 = vpop.f32.mrf.mxu0
    %v232 = vadd.f32 0.0, %v231
    %233 = vdwg.mxu0
    %234 = vmatprep.subr.mxu0 %v162
    %235 = vmatpush1.msra.mxu0 %v161
    %236 = vmatprep.subr.mxu0 %v158
    %237 = vmatpush1.msra.mxu0 %v157
    %238 = vmatprep.subr.mxu0 %v154
    %239 = vmatpush1.msra.mxu0 %v153
    %240 = vmatprep.subr.mxu0 %v150
    %241 = vmatpush1.msra.mxu0 %v149
    %242 = vmatprep.subr.mxu0 %v146
    %243 = vmatpush1.msra.mxu0 %v145
    %244 = vmatprep.subr.mxu0 %v142
    %245 = vmatpush1.msra.mxu0 %v141
    %246 = vmatprep.subr.mxu0 %v138
    %247 = vmatpush1.msra.mxu0 %v137
    %248 = vmatprep.subr.mxu0 %v134
    %249 = vmatpush1.msra.mxu0 %v133
    %250 = vmatprep.subr.mxu0 %v130
    %251 = vmatpush1.msra.mxu0 %v129
    %252 = vmatprep.subr.mxu0 %v126
    %253 = vmatpush1.msra.mxu0 %v125
    %254 = vmatprep.subr.mxu0 %v122
    %255 = vmatpush1.msra.mxu0 %v121
    %256 = vmatprep.subr.mxu0 %v118
    %257 = vmatpush1.msra.mxu0 %v117
    %258 = vmatprep.subr.mxu0 %v114
    %259 = vmatpush1.msra.mxu0 %v113
    %260 = vmatprep.subr.mxu0 %v110
    %261 = vmatpush1.msra.mxu0 %v109
    %262 = vmatprep.subr.mxu0 %v106
    %263 = vmatpush1.msra.mxu0 %v105
    %264 = vmatprep.subr.mxu0 %v102
    %265 = vmatpush1.msra.mxu0 %v101
    %266 = vmatprep.subr.mxu0 0.0
    %267 = vmatpush2.msra.mxu0 0.0
    %268 = vmatprep.subr.mxu0 0.0
    %269 = vmatpush2.msra.mxu0 0.0
    %270 = vmatprep.subr.mxu0 0.0
    %271 = vmatpush2.msra.mxu0 0.0
    %272 = vmatprep.subr.mxu0 0.0
    %273 = vmatpush2.msra.mxu0 0.0
    %274 = vmatprep.subr.mxu0 0.0
    %275 = vmatpush2.msra.mxu0 0.0
    %276 = vmatprep.subr.mxu0 0.0
    %277 = vmatpush2.msra.mxu0 0.0
    %278 = vmatprep.subr.mxu0 0.0
    %279 = vmatpush2.msra.mxu0 0.0
    %280 = vmatprep.subr.mxu0 0.0
    %281 = vmatpush2.msra.mxu0 0.0
    %282 = vmatprep.subr.mxu0 0.0
    %283 = vmatpush2.msra.mxu0 0.0
    %284 = vmatprep.subr.mxu0 0.0
    %285 = vmatpush2.msra.mxu0 0.0
    %286 = vmatprep.subr.mxu0 0.0
    %287 = vmatpush2.msra.mxu0 0.0
    %288 = vmatprep.subr.mxu0 0.0
    %289 = vmatpush2.msra.mxu0 0.0
    %290 = vmatprep.subr.mxu0 0.0
    %291 = vmatpush2.msra.mxu0 0.0
    %292 = vmatprep.subr.mxu0 0.0
    %293 = vmatpush2.msra.mxu0 0.0
    %294 = vmatprep.subr.mxu0 0.0
    %295 = vmatpush2.msra.mxu0 0.0
    %296 = vmatprep.subr.mxu0 0.0
    %297 = vmatpush2.msra.mxu0 0.0
    %298 = vmatprep.mubr.f32.mxu0 0.0
    %299 = vmatmul.mubr.f32.gmra.mxu0 0.0
    %v300 = vpop.f32.mrf.mxu0
    %v301 = vadd.f32 0.0, %v300
    %v302 = vpop.f32.mrf.mxu0
    %v303 = vadd.f32 0.0, %v302
    %304 = vdwg.mxu0
    %v305 = vadd.f32 %v95, %v230
    %v306 = vadd.f32 %v96, %v232
    %v307 = vadd.f32 %v97, %v301
    %v308 = vadd.f32 %v98, %v303
    %v309 = vmul.f32 %v305, 0.5
    %v310 = vmul.f32 %v306, 0.5
    %v311 = vmul.f32 %v307, 0.5
    %v312 = vtanh.pop %v309
    %v313 = vtanh.pop %v310
    %v314 = vtanh.pop %v311
    %v315 = vmul.f32 %v312, 0.5
    %v316 = vmul.f32 %v313, 0.5
    %v317 = vmul.f32 %v314, 0.5
    %v318 = vadd.f32 %v315, 0.5
    %v319 = vadd.f32 %v316, 0.5
    %v320 = vadd.f32 %v317, 0.5
    %v321 = vtanh.pop %v308
    %v322 = vmul.f32 %v319, 0.0
    %v323 = vmul.f32 %v318, %v321
    %v324 = vadd.f32 %v322, %v323
    %v325 = vtanh.pop %v324
    %v326 = vmul.f32 %v320, %v325
    %v327 = vld [vmem:[#allocation4 + $0x200] sm:$0xff]
    %v328 = vld [vmem:[#allocation4 + $0x208] sm:$0xff]
    %v329 = vld [vmem:[#allocation4 + $0x210] sm:$0xff]
    %v330 = vld [vmem:[#allocation4 + $0x218] sm:$0xff]
    %v331 = vld [vmem:[#allocation4 + $0x220] sm:$0xff]
    %v332 = vld [vmem:[#allocation4 + $0x228] sm:$0xff]
    %v333 = vld [vmem:[#allocation4 + $0x230] sm:$0xff]
    %v334 = vld [vmem:[#allocation4 + $0x238] sm:$0xff]
    %v335 = vld [vmem:[#allocation4 + $0x240] sm:$0xff]
    %v336 = vld [vmem:[#allocation4 + $0x248] sm:$0xff]
    %v337 = vld [vmem:[#allocation4 + $0x250] sm:$0xff]
    %v338 = vld [vmem:[#allocation4 + $0x258] sm:$0xff]
    %v339 = vld [vmem:[#allocation4 + $0x260] sm:$0xff]
    %v340 = vld [vmem:[#allocation4 + $0x268] sm:$0xff]
    %v341 = vld [vmem:[#allocation4 + $0x270] sm:$0xff]
    %v342 = vld [vmem:[#allocation4 + $0x278] sm:$0xff]
    %v343 = vld [vmem:[#allocation4 + $0x280] sm:$0xff]
    %v344 = vld [vmem:[#allocation4 + $0x288] sm:$0xff]
    %v345 = vld [vmem:[#allocation4 + $0x290] sm:$0xff]
    %v346 = vld [vmem:[#allocation4 + $0x298] sm:$0xff]
    %v347 = vld [vmem:[#allocation4 + $0x2a0] sm:$0xff]
    %v348 = vld [vmem:[#allocation4 + $0x2a8] sm:$0xff]
    %v349 = vld [vmem:[#allocation4 + $0x2b0] sm:$0xff]
    %v350 = vld [vmem:[#allocation4 + $0x2b8] sm:$0xff]
    %v351 = vld [vmem:[#allocation4 + $0x2c0] sm:$0xff]
    %v352 = vld [vmem:[#allocation4 + $0x2c8] sm:$0xff]
    %v353 = vld [vmem:[#allocation4 + $0x2d0] sm:$0xff]
    %v354 = vld [vmem:[#allocation4 + $0x2d8] sm:$0xff]
    %v355 = vld [vmem:[#allocation4 + $0x2e0] sm:$0xff]
    %v356 = vld [vmem:[#allocation4 + $0x2e8] sm:$0xff]
    %v357 = vld [vmem:[#allocation4 + $0x2f0] sm:$0xff]
    %v358 = vld [vmem:[#allocation4 + $0x2f8] sm:$0xff]
    %v359 = vld [vmem:[#allocation4 + $0x300] sm:$0xff]
    %v360 = vld [vmem:[#allocation4 + $0x308] sm:$0xff]
    %v361 = vld [vmem:[#allocation4 + $0x310] sm:$0xff]
    %v362 = vld [vmem:[#allocation4 + $0x318] sm:$0xff]
    %v363 = vld [vmem:[#allocation4 + $0x320] sm:$0xff]
    %v364 = vld [vmem:[#allocation4 + $0x328] sm:$0xff]
    %v365 = vld [vmem:[#allocation4 + $0x330] sm:$0xff]
    %v366 = vld [vmem:[#allocation4 + $0x338] sm:$0xff]
    %v367 = vld [vmem:[#allocation4 + $0x340] sm:$0xff]
    %v368 = vld [vmem:[#allocation4 + $0x348] sm:$0xff]
    %v369 = vld [vmem:[#allocation4 + $0x350] sm:$0xff]
    %v370 = vld [vmem:[#allocation4 + $0x358] sm:$0xff]
    %v371 = vld [vmem:[#allocation4 + $0x360] sm:$0xff]
    %v372 = vld [vmem:[#allocation4 + $0x368] sm:$0xff]
    %v373 = vld [vmem:[#allocation4 + $0x370] sm:$0xff]
    %v374 = vld [vmem:[#allocation4 + $0x378] sm:$0xff]
    %v375 = vld [vmem:[#allocation4 + $0x380] sm:$0xff]
    %v376 = vld [vmem:[#allocation4 + $0x388] sm:$0xff]
    %v377 = vld [vmem:[#allocation4 + $0x390] sm:$0xff]
    %v378 = vld [vmem:[#allocation4 + $0x398] sm:$0xff]
    %v379 = vld [vmem:[#allocation4 + $0x3a0] sm:$0xff]
    %v380 = vld [vmem:[#allocation4 + $0x3a8] sm:$0xff]
    %v381 = vld [vmem:[#allocation4 + $0x3b0] sm:$0xff]
    %v382 = vld [vmem:[#allocation4 + $0x3b8] sm:$0xff]
    %v383 = vld [vmem:[#allocation4 + $0x3c0] sm:$0xff]
    %v384 = vld [vmem:[#allocation4 + $0x3c8] sm:$0xff]
    %v385 = vld [vmem:[#allocation4 + $0x3d0] sm:$0xff]
    %v386 = vld [vmem:[#allocation4 + $0x3d8] sm:$0xff]
    %v387 = vld [vmem:[#allocation4 + $0x3e0] sm:$0xff]
    %v388 = vld [vmem:[#allocation4 + $0x3e8] sm:$0xff]
    %v389 = vld [vmem:[#allocation4 + $0x3f0] sm:$0xff]
    %v390 = vld [vmem:[#allocation4 + $0x3f8] sm:$0xff]
    %v392 = vlaneseq
    %v393 = vshrl.u32 %v392, 7
    %v394 = vsub.s32 0, %v393
    %v395 = vrot.slane %v43, %v394
    %v396 = vlaneseq
    %v397 = vshrl.u32 %v396, 7
    %v398 = vsub.s32 1, %v397
    %v399 = vrot.slane %v43, %v398
    %v400 = vlaneseq
    %v401 = vshrl.u32 %v400, 7
    %v402 = vsub.s32 2, %v401
    %v403 = vrot.slane %v43, %v402
    %v404 = vlaneseq
    %v405 = vshrl.u32 %v404, 7
    %v406 = vsub.s32 3, %v405
    %v407 = vrot.slane %v43, %v406
    %412 = vmatprep.subr.mxu0 %v388
    %413 = vmatpush1.msra.mxu0 %v387
    %414 = vmatprep.subr.mxu0 %v384
    %415 = vmatpush1.msra.mxu0 %v383
    %416 = vmatprep.subr.mxu0 %v380
    %417 = vmatpush1.msra.mxu0 %v379
    %418 = vmatprep.subr.mxu0 %v376
    %419 = vmatpush1.msra.mxu0 %v375
    %420 = vmatprep.subr.mxu0 %v372
    %421 = vmatpush1.msra.mxu0 %v371
    %422 = vmatprep.subr.mxu0 %v368
    %423 = vmatpush1.msra.mxu0 %v367
    %424 = vmatprep.subr.mxu0 %v364
    %425 = vmatpush1.msra.mxu0 %v363
    %426 = vmatprep.subr.mxu0 %v360
    %427 = vmatpush1.msra.mxu0 %v359
    %428 = vmatprep.subr.mxu0 %v356
    %429 = vmatpush1.msra.mxu0 %v355
    %430 = vmatprep.subr.mxu0 %v352
    %431 = vmatpush1.msra.mxu0 %v351
    %432 = vmatprep.subr.mxu0 %v348
    %433 = vmatpush1.msra.mxu0 %v347
    %434 = vmatprep.subr.mxu0 %v344
    %435 = vmatpush1.msra.mxu0 %v343
    %436 = vmatprep.subr.mxu0 %v340
    %437 = vmatpush1.msra.mxu0 %v339
    %438 = vmatprep.subr.mxu0 %v336
    %439 = vmatpush1.msra.mxu0 %v335
    %440 = vmatprep.subr.mxu0 %v332
    %441 = vmatpush1.msra.mxu0 %v331
    %442 = vmatprep.subr.mxu0 %v328
    %443 = vmatpush1.msra.mxu0 %v327
    %444 = vmatprep.subr.mxu0 0.0
    %445 = vmatpush2.msra.mxu0 0.0
    %446 = vmatprep.subr.mxu0 0.0
    %447 = vmatpush2.msra.mxu0 0.0
    %448 = vmatprep.subr.mxu0 0.0
    %449 = vmatpush2.msra.mxu0 0.0
    %450 = vmatprep.subr.mxu0 0.0
    %451 = vmatpush2.msra.mxu0 0.0
    %452 = vmatprep.subr.mxu0 0.0
    %453 = vmatpush2.msra.mxu0 0.0
    %454 = vmatprep.subr.mxu0 0.0
    %455 = vmatpush2.msra.mxu0 0.0
    %456 = vmatprep.subr.mxu0 0.0
    %457 = vmatpush2.msra.mxu0 0.0
    %458 = vmatprep.subr.mxu0 0.0
    %459 = vmatpush2.msra.mxu0 0.0
    %460 = vmatprep.subr.mxu0 0.0
    %461 = vmatpush2.msra.mxu0 0.0
    %462 = vmatprep.subr.mxu0 0.0
    %463 = vmatpush2.msra.mxu0 0.0
    %464 = vmatprep.subr.mxu0 0.0
    %465 = vmatpush2.msra.mxu0 0.0
    %466 = vmatprep.subr.mxu0 0.0
    %467 = vmatpush2.msra.mxu0 0.0
    %468 = vmatprep.subr.mxu0 0.0
    %469 = vmatpush2.msra.mxu0 0.0
    %470 = vmatprep.subr.mxu0 0.0
    %471 = vmatpush2.msra.mxu0 0.0
    %472 = vmatprep.subr.mxu0 0.0
    %473 = vmatpush2.msra.mxu0 0.0
    %474 = vmatprep.subr.mxu0 0.0
    %475 = vmatpush2.msra.mxu0 0.0
    %476 = vmatprep.mubr.f32.mxu0 0.0
    %477 = vmatmul.mubr.f32.gmra.mxu0 %v326
    %v478 = vpop.f32.mrf.mxu0
    %v479 = vadd.f32 %v395, %v478
    %v480 = vpop.f32.mrf.mxu0
    %v481 = vadd.f32 %v399, %v480
    %482 = vdwg.mxu0
    %483 = vmatprep.subr.mxu0 %v390
    %484 = vmatpush1.msra.mxu0 %v389
    %485 = vmatprep.subr.mxu0 %v386
    %486 = vmatpush1.msra.mxu0 %v385
    %487 = vmatprep.subr.mxu0 %v382
    %488 = vmatpush1.msra.mxu0 %v381
    %489 = vmatprep.subr.mxu0 %v378
    %490 = vmatpush1.msra.mxu0 %v377
    %491 = vmatprep.subr.mxu0 %v374
    %492 = vmatpush1.msra.mxu0 %v373
    %493 = vmatprep.subr.mxu0 %v370
    %494 = vmatpush1.msra.mxu0 %v369
    %495 = vmatprep.subr.mxu0 %v366
    %496 = vmatpush1.msra.mxu0 %v365
    %497 = vmatprep.subr.mxu0 %v362
    %498 = vmatpush1.msra.mxu0 %v361
    %499 = vmatprep.subr.mxu0 %v358
    %500 = vmatpush1.msra.mxu0 %v357
    %501 = vmatprep.subr.mxu0 %v354
    %502 = vmatpush1.msra.mxu0 %v353
    %503 = vmatprep.subr.mxu0 %v350
    %504 = vmatpush1.msra.mxu0 %v349
    %505 = vmatprep.subr.mxu0 %v346
    %506 = vmatpush1.msra.mxu0 %v345
    %507 = vmatprep.subr.mxu0 %v342
    %508 = vmatpush1.msra.mxu0 %v341
    %509 = vmatprep.subr.mxu0 %v338
    %510 = vmatpush1.msra.mxu0 %v337
    %511 = vmatprep.subr.mxu0 %v334
    %512 = vmatpush1.msra.mxu0 %v333
    %513 = vmatprep.subr.mxu0 %v330
    %514 = vmatpush1.msra.mxu0 %v329
    %515 = vmatprep.subr.mxu0 0.0
    %516 = vmatpush2.msra.mxu0 0.0
    %517 = vmatprep.subr.mxu0 0.0
    %518 = vmatpush2.msra.mxu0 0.0
    %519 = vmatprep.subr.mxu0 0.0
    %520 = vmatpush2.msra.mxu0 0.0
    %521 = vmatprep.subr.mxu0 0.0
    %522 = vmatpush2.msra.mxu0 0.0
    %523 = vmatprep.subr.mxu0 0.0
    %524 = vmatpush2.msra.mxu0 0.0
    %525 = vmatprep.subr.mxu0 0.0
    %526 = vmatpush2.msra.mxu0 0.0
    %527 = vmatprep.subr.mxu0 0.0
    %528 = vmatpush2.msra.mxu0 0.0
    %529 = vmatprep.subr.mxu0 0.0
    %530 = vmatpush2.msra.mxu0 0.0
    %531 = vmatprep.subr.mxu0 0.0
    %532 = vmatpush2.msra.mxu0 0.0
    %533 = vmatprep.subr.mxu0 0.0
    %534 = vmatpush2.msra.mxu0 0.0
    %535 = vmatprep.subr.mxu0 0.0
    %536 = vmatpush2.msra.mxu0 0.0
    %537 = vmatprep.subr.mxu0 0.0
    %538 = vmatpush2.msra.mxu0 0.0
    %539 = vmatprep.subr.mxu0 0.0
    %540 = vmatpush2.msra.mxu0 0.0
    %541 = vmatprep.subr.mxu0 0.0
    %542 = vmatpush2.msra.mxu0 0.0
    %543 = vmatprep.subr.mxu0 0.0
    %544 = vmatpush2.msra.mxu0 0.0
    %545 = vmatprep.subr.mxu0 0.0
    %546 = vmatpush2.msra.mxu0 0.0
    %547 = vmatprep.mubr.f32.mxu0 0.0
    %548 = vmatmul.mubr.f32.gmra.mxu0 %v326
    %v549 = vpop.f32.mrf.mxu0
    %v550 = vadd.f32 %v403, %v549
    %v551 = vpop.f32.mrf.mxu0
    %v552 = vadd.f32 %v407, %v551
    %553 = vdwg.mxu0
    %v554 = vmul.f32 %v479, 0.5
    %v555 = vmul.f32 %v481, 0.5
    %v556 = vmul.f32 %v550, 0.5
    %v557 = vtanh.pop %v554
    %v558 = vtanh.pop %v555
    %v559 = vtanh.pop %v556
    %v560 = vmul.f32 %v557, 0.5
    %v561 = vmul.f32 %v558, 0.5
    %v562 = vmul.f32 %v559, 0.5
    %v563 = vadd.f32 %v560, 0.5
    %v564 = vadd.f32 %v561, 0.5
    %v565 = vadd.f32 %v562, 0.5
    %v566 = vtanh.pop %v552
    %v567 = vmul.f32 %v564, 0.0
    %v568 = vmul.f32 %v563, %v566
    %v569 = vadd.f32 %v567, %v568
    %v570 = vtanh.pop %v569
    %v571 = vmul.f32 %v565, %v570
    %v572 = vld [vmem:[#allocation4 + $0x400] sm:$0xff]
    %v573 = vld [vmem:[#allocation4 + $0x408] sm:$0xff]
    %v574 = vld [vmem:[#allocation4 + $0x410] sm:$0xff]
    %v575 = vld [vmem:[#allocation4 + $0x418] sm:$0xff]
    %v576 = vld [vmem:[#allocation4 + $0x420] sm:$0xff]
    %v577 = vld [vmem:[#allocation4 + $0x428] sm:$0xff]
    %v578 = vld [vmem:[#allocation4 + $0x430] sm:$0xff]
    %v579 = vld [vmem:[#allocation4 + $0x438] sm:$0xff]
    %v580 = vld [vmem:[#allocation4 + $0x440] sm:$0xff]
    %v581 = vld [vmem:[#allocation4 + $0x448] sm:$0xff]
    %v582 = vld [vmem:[#allocation4 + $0x450] sm:$0xff]
    %v583 = vld [vmem:[#allocation4 + $0x458] sm:$0xff]
    %v584 = vld [vmem:[#allocation4 + $0x460] sm:$0xff]
    %v585 = vld [vmem:[#allocation4 + $0x468] sm:$0xff]
    %v586 = vld [vmem:[#allocation4 + $0x470] sm:$0xff]
    %v587 = vld [vmem:[#allocation4 + $0x478] sm:$0xff]
    %v588 = vld [vmem:[#allocation4 + $0x480] sm:$0xff]
    %v589 = vld [vmem:[#allocation4 + $0x488] sm:$0xff]
    %v590 = vld [vmem:[#allocation4 + $0x490] sm:$0xff]
    %v591 = vld [vmem:[#allocation4 + $0x498] sm:$0xff]
    %v592 = vld [vmem:[#allocation4 + $0x4a0] sm:$0xff]
    %v593 = vld [vmem:[#allocation4 + $0x4a8] sm:$0xff]
    %v594 = vld [vmem:[#allocation4 + $0x4b0] sm:$0xff]
    %v595 = vld [vmem:[#allocation4 + $0x4b8] sm:$0xff]
    %v596 = vld [vmem:[#allocation4 + $0x4c0] sm:$0xff]
    %v597 = vld [vmem:[#allocation4 + $0x4c8] sm:$0xff]
    %v598 = vld [vmem:[#allocation4 + $0x4d0] sm:$0xff]
    %v599 = vld [vmem:[#allocation4 + $0x4d8] sm:$0xff]
    %v600 = vld [vmem:[#allocation4 + $0x4e0] sm:$0xff]
    %v601 = vld [vmem:[#allocation4 + $0x4e8] sm:$0xff]
    %v602 = vld [vmem:[#allocation4 + $0x4f0] sm:$0xff]
    %v603 = vld [vmem:[#allocation4 + $0x4f8] sm:$0xff]
    %v604 = vld [vmem:[#allocation4 + $0x500] sm:$0xff]
    %v605 = vld [vmem:[#allocation4 + $0x508] sm:$0xff]
    %v606 = vld [vmem:[#allocation4 + $0x510] sm:$0xff]
    %v607 = vld [vmem:[#allocation4 + $0x518] sm:$0xff]
    %v608 = vld [vmem:[#allocation4 + $0x520] sm:$0xff]
    %v609 = vld [vmem:[#allocation4 + $0x528] sm:$0xff]
    %v610 = vld [vmem:[#allocation4 + $0x530] sm:$0xff]
    %v611 = vld [vmem:[#allocation4 + $0x538] sm:$0xff]
    %v612 = vld [vmem:[#allocation4 + $0x540] sm:$0xff]
    %v613 = vld [vmem:[#allocation4 + $0x548] sm:$0xff]
    %v614 = vld [vmem:[#allocation4 + $0x550] sm:$0xff]
    %v615 = vld [vmem:[#allocation4 + $0x558] sm:$0xff]
    %v616 = vld [vmem:[#allocation4 + $0x560] sm:$0xff]
    %v617 = vld [vmem:[#allocation4 + $0x568] sm:$0xff]
    %v618 = vld [vmem:[#allocation4 + $0x570] sm:$0xff]
    %v619 = vld [vmem:[#allocation4 + $0x578] sm:$0xff]
    %v620 = vld [vmem:[#allocation4 + $0x580] sm:$0xff]
    %v621 = vld [vmem:[#allocation4 + $0x588] sm:$0xff]
    %v622 = vld [vmem:[#allocation4 + $0x590] sm:$0xff]
    %v623 = vld [vmem:[#allocation4 + $0x598] sm:$0xff]
    %v624 = vld [vmem:[#allocation4 + $0x5a0] sm:$0xff]
    %v625 = vld [vmem:[#allocation4 + $0x5a8] sm:$0xff]
    %v626 = vld [vmem:[#allocation4 + $0x5b0] sm:$0xff]
    %v627 = vld [vmem:[#allocation4 + $0x5b8] sm:$0xff]
    %v628 = vld [vmem:[#allocation4 + $0x5c0] sm:$0xff]
    %v629 = vld [vmem:[#allocation4 + $0x5c8] sm:$0xff]
    %v630 = vld [vmem:[#allocation4 + $0x5d0] sm:$0xff]
    %v631 = vld [vmem:[#allocation4 + $0x5d8] sm:$0xff]
    %v632 = vld [vmem:[#allocation4 + $0x5e0] sm:$0xff]
    %v633 = vld [vmem:[#allocation4 + $0x5e8] sm:$0xff]
    %v634 = vld [vmem:[#allocation4 + $0x5f0] sm:$0xff]
    %v635 = vld [vmem:[#allocation4 + $0x5f8] sm:$0xff]
    %636 = vmatprep.subr.mxu0 %v633
    %637 = vmatpush1.msra.mxu0 %v632
    %638 = vmatprep.subr.mxu0 %v629
    %639 = vmatpush1.msra.mxu0 %v628
    %640 = vmatprep.subr.mxu0 %v625
    %641 = vmatpush1.msra.mxu0 %v624
    %642 = vmatprep.subr.mxu0 %v621
    %643 = vmatpush1.msra.mxu0 %v620
    %644 = vmatprep.subr.mxu0 %v617
    %645 = vmatpush1.msra.mxu0 %v616
    %646 = vmatprep.subr.mxu0 %v613
    %647 = vmatpush1.msra.mxu0 %v612
    %648 = vmatprep.subr.mxu0 %v609
    %649 = vmatpush1.msra.mxu0 %v608
    %650 = vmatprep.subr.mxu0 %v605
    %651 = vmatpush1.msra.mxu0 %v604
    %652 = vmatprep.subr.mxu0 %v601
    %653 = vmatpush1.msra.mxu0 %v600
    %654 = vmatprep.subr.mxu0 %v597
    %655 = vmatpush1.msra.mxu0 %v596
    %656 = vmatprep.subr.mxu0 %v593
    %657 = vmatpush1.msra.mxu0 %v592
    %658 = vmatprep.subr.mxu0 %v589
    %659 = vmatpush1.msra.mxu0 %v588
    %660 = vmatprep.subr.mxu0 %v585
    %661 = vmatpush1.msra.mxu0 %v584
    %662 = vmatprep.subr.mxu0 %v581
    %663 = vmatpush1.msra.mxu0 %v580
    %664 = vmatprep.subr.mxu0 %v577
    %665 = vmatpush1.msra.mxu0 %v576
    %666 = vmatprep.subr.mxu0 %v573
    %667 = vmatpush1.msra.mxu0 %v572
    %668 = vmatprep.subr.mxu0 0.0
    %669 = vmatpush2.msra.mxu0 0.0
    %670 = vmatprep.subr.mxu0 0.0
    %671 = vmatpush2.msra.mxu0 0.0
    %672 = vmatprep.subr.mxu0 0.0
    %673 = vmatpush2.msra.mxu0 0.0
    %674 = vmatprep.subr.mxu0 0.0
    %675 = vmatpush2.msra.mxu0 0.0
    %676 = vmatprep.subr.mxu0 0.0
    %677 = vmatpush2.msra.mxu0 0.0
    %678 = vmatprep.subr.mxu0 0.0
    %679 = vmatpush2.msra.mxu0 0.0
    %680 = vmatprep.subr.mxu0 0.0
    %681 = vmatpush2.msra.mxu0 0.0
    %682 = vmatprep.subr.mxu0 0.0
    %683 = vmatpush2.msra.mxu0 0.0
    %684 = vmatprep.subr.mxu0 0.0
    %685 = vmatpush2.msra.mxu0 0.0
    %686 = vmatprep.subr.mxu0 0.0
    %687 = vmatpush2.msra.mxu0 0.0
    %688 = vmatprep.subr.mxu0 0.0
    %689 = vmatpush2.msra.mxu0 0.0
    %690 = vmatprep.subr.mxu0 0.0
    %691 = vmatpush2.msra.mxu0 0.0
    %692 = vmatprep.subr.mxu0 0.0
    %693 = vmatpush2.msra.mxu0 0.0
    %694 = vmatprep.subr.mxu0 0.0
    %695 = vmatpush2.msra.mxu0 0.0
    %696 = vmatprep.subr.mxu0 0.0
    %697 = vmatpush2.msra.mxu0 0.0
    %698 = vmatprep.subr.mxu0 0.0
    %699 = vmatpush2.msra.mxu0 0.0
    %700 = vmatprep.mubr.f32.mxu0 0.0
    %701 = vmatmul.mubr.f32.gmra.mxu0 %v571
    %v702 = vpop.f32.mrf.mxu0
    %v703 = vadd.f32 0.0, %v702
    %v704 = vpop.f32.mrf.mxu0
    %v705 = vadd.f32 0.0, %v704
    %706 = vdwg.mxu0
    %707 = vmatprep.subr.mxu0 %v635
    %708 = vmatpush1.msra.mxu0 %v634
    %709 = vmatprep.subr.mxu0 %v631
    %710 = vmatpush1.msra.mxu0 %v630
    %711 = vmatprep.subr.mxu0 %v627
    %712 = vmatpush1.msra.mxu0 %v626
    %713 = vmatprep.subr.mxu0 %v623
    %714 = vmatpush1.msra.mxu0 %v622
    %715 = vmatprep.subr.mxu0 %v619
    %716 = vmatpush1.msra.mxu0 %v618
    %717 = vmatprep.subr.mxu0 %v615
    %718 = vmatpush1.msra.mxu0 %v614
    %719 = vmatprep.subr.mxu0 %v611
    %720 = vmatpush1.msra.mxu0 %v610
    %721 = vmatprep.subr.mxu0 %v607
    %722 = vmatpush1.msra.mxu0 %v606
    %723 = vmatprep.subr.mxu0 %v603
    %724 = vmatpush1.msra.mxu0 %v602
    %725 = vmatprep.subr.mxu0 %v599
    %726 = vmatpush1.msra.mxu0 %v598
    %727 = vmatprep.subr.mxu0 %v595
    %728 = vmatpush1.msra.mxu0 %v594
    %729 = vmatprep.subr.mxu0 %v591
    %730 = vmatpush1.msra.mxu0 %v590
    %731 = vmatprep.subr.mxu0 %v587
    %732 = vmatpush1.msra.mxu0 %v586
    %733 = vmatprep.subr.mxu0 %v583
    %734 = vmatpush1.msra.mxu0 %v582
    %735 = vmatprep.subr.mxu0 %v579
    %736 = vmatpush1.msra.mxu0 %v578
    %737 = vmatprep.subr.mxu0 %v575
    %738 = vmatpush1.msra.mxu0 %v574
    %739 = vmatprep.subr.mxu0 0.0
    %740 = vmatpush2.msra.mxu0 0.0
    %741 = vmatprep.subr.mxu0 0.0
    %742 = vmatpush2.msra.mxu0 0.0
    %743 = vmatprep.subr.mxu0 0.0
    %744 = vmatpush2.msra.mxu0 0.0
    %745 = vmatprep.subr.mxu0 0.0
    %746 = vmatpush2.msra.mxu0 0.0
    %747 = vmatprep.subr.mxu0 0.0
    %748 = vmatpush2.msra.mxu0 0.0
    %749 = vmatprep.subr.mxu0 0.0
    %750 = vmatpush2.msra.mxu0 0.0
    %751 = vmatprep.subr.mxu0 0.0
    %752 = vmatpush2.msra.mxu0 0.0
    %753 = vmatprep.subr.mxu0 0.0
    %754 = vmatpush2.msra.mxu0 0.0
    %755 = vmatprep.subr.mxu0 0.0
    %756 = vmatpush2.msra.mxu0 0.0
    %757 = vmatprep.subr.mxu0 0.0
    %758 = vmatpush2.msra.mxu0 0.0
    %759 = vmatprep.subr.mxu0 0.0
    %760 = vmatpush2.msra.mxu0 0.0
    %761 = vmatprep.subr.mxu0 0.0
    %762 = vmatpush2.msra.mxu0 0.0
    %763 = vmatprep.subr.mxu0 0.0
    %764 = vmatpush2.msra.mxu0 0.0
    %765 = vmatprep.subr.mxu0 0.0
    %766 = vmatpush2.msra.mxu0 0.0
    %767 = vmatprep.subr.mxu0 0.0
    %768 = vmatpush2.msra.mxu0 0.0
    %769 = vmatprep.subr.mxu0 0.0
    %770 = vmatpush2.msra.mxu0 0.0
    %771 = vmatprep.mubr.f32.mxu0 0.0
    %772 = vmatmul.mubr.f32.gmra.mxu0 %v571
    %v773 = vpop.f32.mrf.mxu0
    %v774 = vadd.f32 0.0, %v773
    %v775 = vpop.f32.mrf.mxu0
    %v776 = vadd.f32 0.0, %v775
    %777 = vdwg.mxu0
    %778 = vset.pattern.permute.xlu0 1
    %779 = vperm.xlu0 %778, %v37
    %v780 = vpop.permute.xlu0 %779
    %v782 = vmul.f32 %v780, %v53
    %v783 = vmul.f32 %v780, %v57
    %v784 = vmul.f32 %v780, %v61
    %v785 = vmul.f32 %v780, %v65
    %v786 = vadd.f32 %v782, %v78
    %v787 = vadd.f32 %v783, %v82
    %v788 = vadd.f32 %v784, %v86
    %v789 = vadd.f32 %v785, %v90
    %790 = vmatprep.subr.mxu0 %v160
    %791 = vmatpush1.msra.mxu0 %v159
    %792 = vmatprep.subr.mxu0 %v156
    %793 = vmatpush1.msra.mxu0 %v155
    %794 = vmatprep.subr.mxu0 %v152
    %795 = vmatpush1.msra.mxu0 %v151
    %796 = vmatprep.subr.mxu0 %v148
    %797 = vmatpush1.msra.mxu0 %v147
    %798 = vmatprep.subr.mxu0 %v144
    %799 = vmatpush1.msra.mxu0 %v143
    %800 = vmatprep.subr.mxu0 %v140
    %801 = vmatpush1.msra.mxu0 %v139
    %802 = vmatprep.subr.mxu0 %v136
    %803 = vmatpush1.msra.mxu0 %v135
    %804 = vmatprep.subr.mxu0 %v132
    %805 = vmatpush1.msra.mxu0 %v131
    %806 = vmatprep.subr.mxu0 %v128
    %807 = vmatpush1.msra.mxu0 %v127
    %808 = vmatprep.subr.mxu0 %v124
    %809 = vmatpush1.msra.mxu0 %v123
    %810 = vmatprep.subr.mxu0 %v120
    %811 = vmatpush1.msra.mxu0 %v119
    %812 = vmatprep.subr.mxu0 %v116
    %813 = vmatpush1.msra.mxu0 %v115
    %814 = vmatprep.subr.mxu0 %v112
    %815 = vmatpush1.msra.mxu0 %v111
    %816 = vmatprep.subr.mxu0 %v108
    %817 = vmatpush1.msra.mxu0 %v107
    %818 = vmatprep.subr.mxu0 %v104
    %819 = vmatpush1.msra.mxu0 %v103
    %820 = vmatprep.subr.mxu0 %v100
    %821 = vmatpush1.msra.mxu0 %v99
    %822 = vmatprep.subr.mxu0 0.0
    %823 = vmatpush2.msra.mxu0 0.0
    %824 = vmatprep.subr.mxu0 0.0
    %825 = vmatpush2.msra.mxu0 0.0
    %826 = vmatprep.subr.mxu0 0.0
    %827 = vmatpush2.msra.mxu0 0.0
    %828 = vmatprep.subr.mxu0 0.0
    %829 = vmatpush2.msra.mxu0 0.0
    %830 = vmatprep.subr.mxu0 0.0
    %831 = vmatpush2.msra.mxu0 0.0
    %832 = vmatprep.subr.mxu0 0.0
    %833 = vmatpush2.msra.mxu0 0.0
    %834 = vmatprep.subr.mxu0 0.0
    %835 = vmatpush2.msra.mxu0 0.0
    %836 = vmatprep.subr.mxu0 0.0
    %837 = vmatpush2.msra.mxu0 0.0
    %838 = vmatprep.subr.mxu0 0.0
    %839 = vmatpush2.msra.mxu0 0.0
    %840 = vmatprep.subr.mxu0 0.0
    %841 = vmatpush2.msra.mxu0 0.0
    %842 = vmatprep.subr.mxu0 0.0
    %843 = vmatpush2.msra.mxu0 0.0
    %844 = vmatprep.subr.mxu0 0.0
    %845 = vmatpush2.msra.mxu0 0.0
    %846 = vmatprep.subr.mxu0 0.0
    %847 = vmatpush2.msra.mxu0 0.0
    %848 = vmatprep.subr.mxu0 0.0
    %849 = vmatpush2.msra.mxu0 0.0
    %850 = vmatprep.subr.mxu0 0.0
    %851 = vmatpush2.msra.mxu0 0.0
    %852 = vmatprep.subr.mxu0 0.0
    %853 = vmatpush2.msra.mxu0 0.0
    %854 = vmatprep.mubr.f32.mxu0 0.0
    %855 = vmatmul.mubr.f32.gmra.mxu0 %v326
    %v856 = vpop.f32.mrf.mxu0
    %v857 = vadd.f32 0.0, %v856
    %v858 = vpop.f32.mrf.mxu0
    %v859 = vadd.f32 0.0, %v858
    %860 = vdwg.mxu0
    %861 = vmatprep.subr.mxu0 %v162
    %862 = vmatpush1.msra.mxu0 %v161
    %863 = vmatprep.subr.mxu0 %v158
    %864 = vmatpush1.msra.mxu0 %v157
    %865 = vmatprep.subr.mxu0 %v154
    %866 = vmatpush1.msra.mxu0 %v153
    %867 = vmatprep.subr.mxu0 %v150
    %868 = vmatpush1.msra.mxu0 %v149
    %869 = vmatprep.subr.mxu0 %v146
    %870 = vmatpush1.msra.mxu0 %v145
    %871 = vmatprep.subr.mxu0 %v142
    %872 = vmatpush1.msra.mxu0 %v141
    %873 = vmatprep.subr.mxu0 %v138
    %874 = vmatpush1.msra.mxu0 %v137
    %875 = vmatprep.subr.mxu0 %v134
    %876 = vmatpush1.msra.mxu0 %v133
    %877 = vmatprep.subr.mxu0 %v130
    %878 = vmatpush1.msra.mxu0 %v129
    %879 = vmatprep.subr.mxu0 %v126
    %880 = vmatpush1.msra.mxu0 %v125
    %881 = vmatprep.subr.mxu0 %v122
    %882 = vmatpush1.msra.mxu0 %v121
    %883 = vmatprep.subr.mxu0 %v118
    %884 = vmatpush1.msra.mxu0 %v117
    %885 = vmatprep.subr.mxu0 %v114
    %886 = vmatpush1.msra.mxu0 %v113
    %887 = vmatprep.subr.mxu0 %v110
    %888 = vmatpush1.msra.mxu0 %v109
    %889 = vmatprep.subr.mxu0 %v106
    %890 = vmatpush1.msra.mxu0 %v105
    %891 = vmatprep.subr.mxu0 %v102
    %892 = vmatpush1.msra.mxu0 %v101
    %893 = vmatprep.subr.mxu0 0.0
    %894 = vmatpush2.msra.mxu0 0.0
    %895 = vmatprep.subr.mxu0 0.0
    %896 = vmatpush2.msra.mxu0 0.0
    %897 = vmatprep.subr.mxu0 0.0
    %898 = vmatpush2.msra.mxu0 0.0
    %899 = vmatprep.subr.mxu0 0.0
    %900 = vmatpush2.msra.mxu0 0.0
    %901 = vmatprep.subr.mxu0 0.0
    %902 = vmatpush2.msra.mxu0 0.0
    %903 = vmatprep.subr.mxu0 0.0
    %904 = vmatpush2.msra.mxu0 0.0
    %905 = vmatprep.subr.mxu0 0.0
    %906 = vmatpush2.msra.mxu0 0.0
    %907 = vmatprep.subr.mxu0 0.0
    %908 = vmatpush2.msra.mxu0 0.0
    %909 = vmatprep.subr.mxu0 0.0
    %910 = vmatpush2.msra.mxu0 0.0
    %911 = vmatprep.subr.mxu0 0.0
    %912 = vmatpush2.msra.mxu0 0.0
    %913 = vmatprep.subr.mxu0 0.0
    %914 = vmatpush2.msra.mxu0 0.0
    %915 = vmatprep.subr.mxu0 0.0
    %916 = vmatpush2.msra.mxu0 0.0
    %917 = vmatprep.subr.mxu0 0.0
    %918 = vmatpush2.msra.mxu0 0.0
    %919 = vmatprep.subr.mxu0 0.0
    %920 = vmatpush2.msra.mxu0 0.0
    %921 = vmatprep.subr.mxu0 0.0
    %922 = vmatpush2.msra.mxu0 0.0
    %923 = vmatprep.subr.mxu0 0.0
    %924 = vmatpush2.msra.mxu0 0.0
    %925 = vmatprep.mubr.f32.mxu0 0.0
    %926 = vmatmul.mubr.f32.gmra.mxu0 %v326
    %v927 = vpop.f32.mrf.mxu0
    %v928 = vadd.f32 0.0, %v927
    %v929 = vpop.f32.mrf.mxu0
    %v930 = vadd.f32 0.0, %v929
    %931 = vdwg.mxu0
    %v932 = vadd.f32 %v786, %v857
    %v933 = vadd.f32 %v787, %v859
    %v934 = vadd.f32 %v788, %v928
    %v935 = vadd.f32 %v789, %v930
    %v936 = vmul.f32 %v932, 0.5
    %v937 = vmul.f32 %v933, 0.5
    %v938 = vmul.f32 %v934, 0.5
    %v939 = vtanh.pop %v936
    %v940 = vtanh.pop %v937
    %v941 = vtanh.pop %v938
    %v942 = vmul.f32 %v939, 0.5
    %v943 = vmul.f32 %v940, 0.5
    %v944 = vmul.f32 %v941, 0.5
    %v945 = vadd.f32 %v942, 0.5
    %v946 = vadd.f32 %v943, 0.5
    %v947 = vadd.f32 %v944, 0.5
    %v948 = vtanh.pop %v935
    %v949 = vmul.f32 %v946, %v324
    %v950 = vmul.f32 %v945, %v948
    %v951 = vadd.f32 %v949, %v950
    %v952 = vtanh.pop %v951
    %v953 = vmul.f32 %v947, %v952
    %954 = vmatprep.subr.mxu0 %v388
    %955 = vmatpush1.msra.mxu0 %v387
    %956 = vmatprep.subr.mxu0 %v384
    %957 = vmatpush1.msra.mxu0 %v383
    %958 = vmatprep.subr.mxu0 %v380
    %959 = vmatpush1.msra.mxu0 %v379
    %960 = vmatprep.subr.mxu0 %v376
    %961 = vmatpush1.msra.mxu0 %v375
    %962 = vmatprep.subr.mxu0 %v372
    %963 = vmatpush1.msra.mxu0 %v371
    %964 = vmatprep.subr.mxu0 %v368
    %965 = vmatpush1.msra.mxu0 %v367
    %966 = vmatprep.subr.mxu0 %v364
    %967 = vmatpush1.msra.mxu0 %v363
    %968 = vmatprep.subr.mxu0 %v360
    %969 = vmatpush1.msra.mxu0 %v359
    %970 = vmatprep.subr.mxu0 %v356
    %971 = vmatpush1.msra.mxu0 %v355
    %972 = vmatprep.subr.mxu0 %v352
    %973 = vmatpush1.msra.mxu0 %v351
    %974 = vmatprep.subr.mxu0 %v348
    %975 = vmatpush1.msra.mxu0 %v347
    %976 = vmatprep.subr.mxu0 %v344
    %977 = vmatpush1.msra.mxu0 %v343
    %978 = vmatprep.subr.mxu0 %v340
    %979 = vmatpush1.msra.mxu0 %v339
    %980 = vmatprep.subr.mxu0 %v336
    %981 = vmatpush1.msra.mxu0 %v335
    %982 = vmatprep.subr.mxu0 %v332
    %983 = vmatpush1.msra.mxu0 %v331
    %984 = vmatprep.subr.mxu0 %v328
    %985 = vmatpush1.msra.mxu0 %v327
    %986 = vmatprep.subr.mxu0 0.0
    %987 = vmatpush2.msra.mxu0 0.0
    %988 = vmatprep.subr.mxu0 0.0
    %989 = vmatpush2.msra.mxu0 0.0
    %990 = vmatprep.subr.mxu0 0.0
    %991 = vmatpush2.msra.mxu0 0.0
    %992 = vmatprep.subr.mxu0 0.0
    %993 = vmatpush2.msra.mxu0 0.0
    %994 = vmatprep.subr.mxu0 0.0
    %995 = vmatpush2.msra.mxu0 0.0
    %996 = vmatprep.subr.mxu0 0.0
    %997 = vmatpush2.msra.mxu0 0.0
    %998 = vmatprep.subr.mxu0 0.0
    %999 = vmatpush2.msra.mxu0 0.0
    %1000 = vmatprep.subr.mxu0 0.0
    %1001 = vmatpush2.msra.mxu0 0.0
    %1002 = vmatprep.subr.mxu0 0.0
    %1003 = vmatpush2.msra.mxu0 0.0
    %1004 = vmatprep.subr.mxu0 0.0
    %1005 = vmatpush2.msra.mxu0 0.0
    %1006 = vmatprep.subr.mxu0 0.0
    %1007 = vmatpush2.msra.mxu0 0.0
    %1008 = vmatprep.subr.mxu0 0.0
    %1009 = vmatpush2.msra.mxu0 0.0
    %1010 = vmatprep.subr.mxu0 0.0
    %1011 = vmatpush2.msra.mxu0 0.0
    %1012 = vmatprep.subr.mxu0 0.0
    %1013 = vmatpush2.msra.mxu0 0.0
    %1014 = vmatprep.subr.mxu0 0.0
    %1015 = vmatpush2.msra.mxu0 0.0
    %1016 = vmatprep.subr.mxu0 0.0
    %1017 = vmatpush2.msra.mxu0 0.0
    %1018 = vmatprep.mubr.f32.mxu0 0.0
    %1019 = vmatmul.mubr.f32.gmra.mxu0 %v953
    %v1020 = vpop.f32.mrf.mxu0
    %v1021 = vadd.f32 %v703, %v1020
    %v1022 = vpop.f32.mrf.mxu0
    %v1023 = vadd.f32 %v705, %v1022
    %1024 = vdwg.mxu0
    %1025 = vmatprep.subr.mxu0 %v390
    %1026 = vmatpush1.msra.mxu0 %v389
    %1027 = vmatprep.subr.mxu0 %v386
    %1028 = vmatpush1.msra.mxu0 %v385
    %1029 = vmatprep.subr.mxu0 %v382
    %1030 = vmatpush1.msra.mxu0 %v381
    %1031 = vmatprep.subr.mxu0 %v378
    %1032 = vmatpush1.msra.mxu0 %v377
    %1033 = vmatprep.subr.mxu0 %v374
    %1034 = vmatpush1.msra.mxu0 %v373
    %1035 = vmatprep.subr.mxu0 %v370
    %1036 = vmatpush1.msra.mxu0 %v369
    %1037 = vmatprep.subr.mxu0 %v366
    %1038 = vmatpush1.msra.mxu0 %v365
    %1039 = vmatprep.subr.mxu0 %v362
    %1040 = vmatpush1.msra.mxu0 %v361
    %1041 = vmatprep.subr.mxu0 %v358
    %1042 = vmatpush1.msra.mxu0 %v357
    %1043 = vmatprep.subr.mxu0 %v354
    %1044 = vmatpush1.msra.mxu0 %v353
    %1045 = vmatprep.subr.mxu0 %v350
    %1046 = vmatpush1.msra.mxu0 %v349
    %1047 = vmatprep.subr.mxu0 %v346
    %1048 = vmatpush1.msra.mxu0 %v345
    %1049 = vmatprep.subr.mxu0 %v342
    %1050 = vmatpush1.msra.mxu0 %v341
    %1051 = vmatprep.subr.mxu0 %v338
    %1052 = vmatpush1.msra.mxu0 %v337
    %1053 = vmatprep.subr.mxu0 %v334
    %1054 = vmatpush1.msra.mxu0 %v333
    %1055 = vmatprep.subr.mxu0 %v330
    %1056 = vmatpush1.msra.mxu0 %v329
    %1057 = vmatprep.subr.mxu0 0.0
    %1058 = vmatpush2.msra.mxu0 0.0
    %1059 = vmatprep.subr.mxu0 0.0
    %1060 = vmatpush2.msra.mxu0 0.0
    %1061 = vmatprep.subr.mxu0 0.0
    %1062 = vmatpush2.msra.mxu0 0.0
    %1063 = vmatprep.subr.mxu0 0.0
    %1064 = vmatpush2.msra.mxu0 0.0
    %1065 = vmatprep.subr.mxu0 0.0
    %1066 = vmatpush2.msra.mxu0 0.0
    %1067 = vmatprep.subr.mxu0 0.0
    %1068 = vmatpush2.msra.mxu0 0.0
    %1069 = vmatprep.subr.mxu0 0.0
    %1070 = vmatpush2.msra.mxu0 0.0
    %1071 = vmatprep.subr.mxu0 0.0
    %1072 = vmatpush2.msra.mxu0 0.0
    %1073 = vmatprep.subr.mxu0 0.0
    %1074 = vmatpush2.msra.mxu0 0.0
    %1075 = vmatprep.subr.mxu0 0.0
    %1076 = vmatpush2.msra.mxu0 0.0
    %1077 = vmatprep.subr.mxu0 0.0
    %1078 = vmatpush2.msra.mxu0 0.0
    %1079 = vmatprep.subr.mxu0 0.0
    %1080 = vmatpush2.msra.mxu0 0.0
    %1081 = vmatprep.subr.mxu0 0.0
    %1082 = vmatpush2.msra.mxu0 0.0
    %1083 = vmatprep.subr.mxu0 0.0
    %1084 = vmatpush2.msra.mxu0 0.0
    %1085 = vmatprep.subr.mxu0 0.0
    %1086 = vmatpush2.msra.mxu0 0.0
    %1087 = vmatprep.subr.mxu0 0.0
    %1088 = vmatpush2.msra.mxu0 0.0
    %1089 = vmatprep.mubr.f32.mxu0 0.0
    %1090 = vmatmul.mubr.f32.gmra.mxu0 %v953
    %v1091 = vpop.f32.mrf.mxu0
    %v1092 = vadd.f32 %v774, %v1091
    %v1093 = vpop.f32.mrf.mxu0
    %v1094 = vadd.f32 %v776, %v1093
    %1095 = vdwg.mxu0
    %v1096 = vadd.f32 %v1021, %v395
    %v1097 = vadd.f32 %v1023, %v399
    %v1098 = vadd.f32 %v1092, %v403
    %v1099 = vadd.f32 %v1094, %v407
    %v1100 = vmul.f32 %v1096, 0.5
    %v1101 = vmul.f32 %v1097, 0.5
    %v1102 = vmul.f32 %v1098, 0.5
    %v1103 = vtanh.pop %v1100
    %v1104 = vtanh.pop %v1101
    %v1105 = vtanh.pop %v1102
    %v1106 = vmul.f32 %v1103, 0.5
    %v1107 = vmul.f32 %v1104, 0.5
    %v1108 = vmul.f32 %v1105, 0.5
    %v1109 = vadd.f32 %v1106, 0.5
    %v1110 = vadd.f32 %v1107, 0.5
    %v1111 = vadd.f32 %v1108, 0.5
    %v1112 = vtanh.pop %v1099
    %v1113 = vmul.f32 %v1110, %v569
    %v1114 = vmul.f32 %v1109, %v1112
    %v1115 = vadd.f32 %v1113, %v1114
    %v1116 = vtanh.pop %v1115
    %v1117 = vmul.f32 %v1111, %v1116
    %1118 = vmatprep.subr.mxu0 %v633
    %1119 = vmatpush1.msra.mxu0 %v632
    %1120 = vmatprep.subr.mxu0 %v629
    %1121 = vmatpush1.msra.mxu0 %v628
    %1122 = vmatprep.subr.mxu0 %v625
    %1123 = vmatpush1.msra.mxu0 %v624
    %1124 = vmatprep.subr.mxu0 %v621
    %1125 = vmatpush1.msra.mxu0 %v620
    %1126 = vmatprep.subr.mxu0 %v617
    %1127 = vmatpush1.msra.mxu0 %v616
    %1128 = vmatprep.subr.mxu0 %v613
    %1129 = vmatpush1.msra.mxu0 %v612
    %1130 = vmatprep.subr.mxu0 %v609
    %1131 = vmatpush1.msra.mxu0 %v608
    %1132 = vmatprep.subr.mxu0 %v605
    %1133 = vmatpush1.msra.mxu0 %v604
    %1134 = vmatprep.subr.mxu0 %v601
    %1135 = vmatpush1.msra.mxu0 %v600
    %1136 = vmatprep.subr.mxu0 %v597
    %1137 = vmatpush1.msra.mxu0 %v596
    %1138 = vmatprep.subr.mxu0 %v593
    %1139 = vmatpush1.msra.mxu0 %v592
    %1140 = vmatprep.subr.mxu0 %v589
    %1141 = vmatpush1.msra.mxu0 %v588
    %1142 = vmatprep.subr.mxu0 %v585
    %1143 = vmatpush1.msra.mxu0 %v584
    %1144 = vmatprep.subr.mxu0 %v581
    %1145 = vmatpush1.msra.mxu0 %v580
    %1146 = vmatprep.subr.mxu0 %v577
    %1147 = vmatpush1.msra.mxu0 %v576
    %1148 = vmatprep.subr.mxu0 %v573
    %1149 = vmatpush1.msra.mxu0 %v572
    %1150 = vmatprep.subr.mxu0 0.0
    %1151 = vmatpush2.msra.mxu0 0.0
    %1152 = vmatprep.subr.mxu0 0.0
    %1153 = vmatpush2.msra.mxu0 0.0
    %1154 = vmatprep.subr.mxu0 0.0
    %1155 = vmatpush2.msra.mxu0 0.0
    %1156 = vmatprep.subr.mxu0 0.0
    %1157 = vmatpush2.msra.mxu0 0.0
    %1158 = vmatprep.subr.mxu0 0.0
    %1159 = vmatpush2.msra.mxu0 0.0
    %1160 = vmatprep.subr.mxu0 0.0
    %1161 = vmatpush2.msra.mxu0 0.0
    %1162 = vmatprep.subr.mxu0 0.0
    %1163 = vmatpush2.msra.mxu0 0.0
    %1164 = vmatprep.subr.mxu0 0.0
    %1165 = vmatpush2.msra.mxu0 0.0
    %1166 = vmatprep.subr.mxu0 0.0
    %1167 = vmatpush2.msra.mxu0 0.0
    %1168 = vmatprep.subr.mxu0 0.0
    %1169 = vmatpush2.msra.mxu0 0.0
    %1170 = vmatprep.subr.mxu0 0.0
    %1171 = vmatpush2.msra.mxu0 0.0
    %1172 = vmatprep.subr.mxu0 0.0
    %1173 = vmatpush2.msra.mxu0 0.0
    %1174 = vmatprep.subr.mxu0 0.0
    %1175 = vmatpush2.msra.mxu0 0.0
    %1176 = vmatprep.subr.mxu0 0.0
    %1177 = vmatpush2.msra.mxu0 0.0
    %1178 = vmatprep.subr.mxu0 0.0
    %1179 = vmatpush2.msra.mxu0 0.0
    %1180 = vmatprep.subr.mxu0 0.0
    %1181 = vmatpush2.msra.mxu0 0.0
    %1182 = vmatprep.mubr.f32.mxu0 0.0
    %1183 = vmatmul.mubr.f32.gmra.mxu0 %v1117
    %v1184 = vpop.f32.mrf.mxu0
    %v1185 = vadd.f32 0.0, %v1184
    %v1186 = vpop.f32.mrf.mxu0
    %v1187 = vadd.f32 0.0, %v1186
    %1188 = vdwg.mxu0
    %1189 = vmatprep.subr.mxu0 %v635
    %1190 = vmatpush1.msra.mxu0 %v634
    %1191 = vmatprep.subr.mxu0 %v631
    %1192 = vmatpush1.msra.mxu0 %v630
    %1193 = vmatprep.subr.mxu0 %v627
    %1194 = vmatpush1.msra.mxu0 %v626
    %1195 = vmatprep.subr.mxu0 %v623
    %1196 = vmatpush1.msra.mxu0 %v622
    %1197 = vmatprep.subr.mxu0 %v619
    %1198 = vmatpush1.msra.mxu0 %v618
    %1199 = vmatprep.subr.mxu0 %v615
    %1200 = vmatpush1.msra.mxu0 %v614
    %1201 = vmatprep.subr.mxu0 %v611
    %1202 = vmatpush1.msra.mxu0 %v610
    %1203 = vmatprep.subr.mxu0 %v607
    %1204 = vmatpush1.msra.mxu0 %v606
    %1205 = vmatprep.subr.mxu0 %v603
    %1206 = vmatpush1.msra.mxu0 %v602
    %1207 = vmatprep.subr.mxu0 %v599
    %1208 = vmatpush1.msra.mxu0 %v598
    %1209 = vmatprep.subr.mxu0 %v595
    %1210 = vmatpush1.msra.mxu0 %v594
    %1211 = vmatprep.subr.mxu0 %v591
    %1212 = vmatpush1.msra.mxu0 %v590
    %1213 = vmatprep.subr.mxu0 %v587
    %1214 = vmatpush1.msra.mxu0 %v586
    %1215 = vmatprep.subr.mxu0 %v583
    %1216 = vmatpush1.msra.mxu0 %v582
    %1217 = vmatprep.subr.mxu0 %v579
    %1218 = vmatpush1.msra.mxu0 %v578
    %1219 = vmatprep.subr.mxu0 %v575
    %1220 = vmatpush1.msra.mxu0 %v574
    %1221 = vmatprep.subr.mxu0 0.0
    %1222 = vmatpush2.msra.mxu0 0.0
    %1223 = vmatprep.subr.mxu0 0.0
    %1224 = vmatpush2.msra.mxu0 0.0
    %1225 = vmatprep.subr.mxu0 0.0
    %1226 = vmatpush2.msra.mxu0 0.0
    %1227 = vmatprep.subr.mxu0 0.0
    %1228 = vmatpush2.msra.mxu0 0.0
    %1229 = vmatprep.subr.mxu0 0.0
    %1230 = vmatpush2.msra.mxu0 0.0
    %1231 = vmatprep.subr.mxu0 0.0
    %1232 = vmatpush2.msra.mxu0 0.0
    %1233 = vmatprep.subr.mxu0 0.0
    %1234 = vmatpush2.msra.mxu0 0.0
    %1235 = vmatprep.subr.mxu0 0.0
    %1236 = vmatpush2.msra.mxu0 0.0
    %1237 = vmatprep.subr.mxu0 0.0
    %1238 = vmatpush2.msra.mxu0 0.0
    %1239 = vmatprep.subr.mxu0 0.0
    %1240 = vmatpush2.msra.mxu0 0.0
    %1241 = vmatprep.subr.mxu0 0.0
    %1242 = vmatpush2.msra.mxu0 0.0
    %1243 = vmatprep.subr.mxu0 0.0
    %1244 = vmatpush2.msra.mxu0 0.0
    %1245 = vmatprep.subr.mxu0 0.0
    %1246 = vmatpush2.msra.mxu0 0.0
    %1247 = vmatprep.subr.mxu0 0.0
    %1248 = vmatpush2.msra.mxu0 0.0
    %1249 = vmatprep.subr.mxu0 0.0
    %1250 = vmatpush2.msra.mxu0 0.0
    %1251 = vmatprep.subr.mxu0 0.0
    %1252 = vmatpush2.msra.mxu0 0.0
    %1253 = vmatprep.mubr.f32.mxu0 0.0
    %1254 = vmatmul.mubr.f32.gmra.mxu0 %v1117
    %v1255 = vpop.f32.mrf.mxu0
    %v1256 = vadd.f32 0.0, %v1255
    %v1257 = vpop.f32.mrf.mxu0
    %v1258 = vadd.f32 0.0, %v1257
    %1259 = vdwg.mxu0
    %1260 = vset.pattern.permute.xlu0 2
    %1261 = vperm.xlu0 %1260, %v37
    %v1262 = vpop.permute.xlu0 %1261
    %v1264 = vmul.f32 %v1262, %v53
    %v1265 = vmul.f32 %v1262, %v57
    %v1266 = vmul.f32 %v1262, %v61
    %v1267 = vmul.f32 %v1262, %v65
    %v1268 = vadd.f32 %v1264, %v78
    %v1269 = vadd.f32 %v1265, %v82
    %v1270 = vadd.f32 %v1266, %v86
    %v1271 = vadd.f32 %v1267, %v90
    %1272 = vmatprep.subr.mxu0 %v160
    %1273 = vmatpush1.msra.mxu0 %v159
    %1274 = vmatprep.subr.mxu0 %v156
    %1275 = vmatpush1.msra.mxu0 %v155
    %1276 = vmatprep.subr.mxu0 %v152
    %1277 = vmatpush1.msra.mxu0 %v151
    %1278 = vmatprep.subr.mxu0 %v148
    %1279 = vmatpush1.msra.mxu0 %v147
    %1280 = vmatprep.subr.mxu0 %v144
    %1281 = vmatpush1.msra.mxu0 %v143
    %1282 = vmatprep.subr.mxu0 %v140
    %1283 = vmatpush1.msra.mxu0 %v139
    %1284 = vmatprep.subr.mxu0 %v136
    %1285 = vmatpush1.msra.mxu0 %v135
    %1286 = vmatprep.subr.mxu0 %v132
    %1287 = vmatpush1.msra.mxu0 %v131
    %1288 = vmatprep.subr.mxu0 %v128
    %1289 = vmatpush1.msra.mxu0 %v127
    %1290 = vmatprep.subr.mxu0 %v124
    %1291 = vmatpush1.msra.mxu0 %v123
    %1292 = vmatprep.subr.mxu0 %v120
    %1293 = vmatpush1.msra.mxu0 %v119
    %1294 = vmatprep.subr.mxu0 %v116
    %1295 = vmatpush1.msra.mxu0 %v115
    %1296 = vmatprep.subr.mxu0 %v112
    %1297 = vmatpush1.msra.mxu0 %v111
    %1298 = vmatprep.subr.mxu0 %v108
    %1299 = vmatpush1.msra.mxu0 %v107
    %1300 = vmatprep.subr.mxu0 %v104
    %1301 = vmatpush1.msra.mxu0 %v103
    %1302 = vmatprep.subr.mxu0 %v100
    %1303 = vmatpush1.msra.mxu0 %v99
    %1304 = vmatprep.subr.mxu0 0.0
    %1305 = vmatpush2.msra.mxu0 0.0
    %1306 = vmatprep.subr.mxu0 0.0
    %1307 = vmatpush2.msra.mxu0 0.0
    %1308 = vmatprep.subr.mxu0 0.0
    %1309 = vmatpush2.msra.mxu0 0.0
    %1310 = vmatprep.subr.mxu0 0.0
    %1311 = vmatpush2.msra.mxu0 0.0
    %1312 = vmatprep.subr.mxu0 0.0
    %1313 = vmatpush2.msra.mxu0 0.0
    %1314 = vmatprep.subr.mxu0 0.0
    %1315 = vmatpush2.msra.mxu0 0.0
    %1316 = vmatprep.subr.mxu0 0.0
    %1317 = vmatpush2.msra.mxu0 0.0
    %1318 = vmatprep.subr.mxu0 0.0
    %1319 = vmatpush2.msra.mxu0 0.0
    %1320 = vmatprep.subr.mxu0 0.0
    %1321 = vmatpush2.msra.mxu0 0.0
    %1322 = vmatprep.subr.mxu0 0.0
    %1323 = vmatpush2.msra.mxu0 0.0
    %1324 = vmatprep.subr.mxu0 0.0
    %1325 = vmatpush2.msra.mxu0 0.0
    %1326 = vmatprep.subr.mxu0 0.0
    %1327 = vmatpush2.msra.mxu0 0.0
    %1328 = vmatprep.subr.mxu0 0.0
    %1329 = vmatpush2.msra.mxu0 0.0
    %1330 = vmatprep.subr.mxu0 0.0
    %1331 = vmatpush2.msra.mxu0 0.0
    %1332 = vmatprep.subr.mxu0 0.0
    %1333 = vmatpush2.msra.mxu0 0.0
    %1334 = vmatprep.subr.mxu0 0.0
    %1335 = vmatpush2.msra.mxu0 0.0
    %1336 = vmatprep.mubr.f32.mxu0 0.0
    %1337 = vmatmul.mubr.f32.gmra.mxu0 %v953
    %v1338 = vpop.f32.mrf.mxu0
    %v1339 = vadd.f32 0.0, %v1338
    %v1340 = vpop.f32.mrf.mxu0
    %v1341 = vadd.f32 0.0, %v1340
    %1342 = vdwg.mxu0
    %1343 = vmatprep.subr.mxu0 %v162
    %1344 = vmatpush1.msra.mxu0 %v161
    %1345 = vmatprep.subr.mxu0 %v158
    %1346 = vmatpush1.msra.mxu0 %v157
    %1347 = vmatprep.subr.mxu0 %v154
    %1348 = vmatpush1.msra.mxu0 %v153
    %1349 = vmatprep.subr.mxu0 %v150
    %1350 = vmatpush1.msra.mxu0 %v149
    %1351 = vmatprep.subr.mxu0 %v146
    %1352 = vmatpush1.msra.mxu0 %v145
    %1353 = vmatprep.subr.mxu0 %v142
    %1354 = vmatpush1.msra.mxu0 %v141
    %1355 = vmatprep.subr.mxu0 %v138
    %1356 = vmatpush1.msra.mxu0 %v137
    %1357 = vmatprep.subr.mxu0 %v134
    %1358 = vmatpush1.msra.mxu0 %v133
    %1359 = vmatprep.subr.mxu0 %v130
    %1360 = vmatpush1.msra.mxu0 %v129
    %1361 = vmatprep.subr.mxu0 %v126
    %1362 = vmatpush1.msra.mxu0 %v125
    %1363 = vmatprep.subr.mxu0 %v122
    %1364 = vmatpush1.msra.mxu0 %v121
    %1365 = vmatprep.subr.mxu0 %v118
    %1366 = vmatpush1.msra.mxu0 %v117
    %1367 = vmatprep.subr.mxu0 %v114
    %1368 = vmatpush1.msra.mxu0 %v113
    %1369 = vmatprep.subr.mxu0 %v110
    %1370 = vmatpush1.msra.mxu0 %v109
    %1371 = vmatprep.subr.mxu0 %v106
    %1372 = vmatpush1.msra.mxu0 %v105
    %1373 = vmatprep.subr.mxu0 %v102
    %1374 = vmatpush1.msra.mxu0 %v101
    %1375 = vmatprep.subr.mxu0 0.0
    %1376 = vmatpush2.msra.mxu0 0.0
    %1377 = vmatprep.subr.mxu0 0.0
    %1378 = vmatpush2.msra.mxu0 0.0
    %1379 = vmatprep.subr.mxu0 0.0
    %1380 = vmatpush2.msra.mxu0 0.0
    %1381 = vmatprep.subr.mxu0 0.0
    %1382 = vmatpush2.msra.mxu0 0.0
    %1383 = vmatprep.subr.mxu0 0.0
    %1384 = vmatpush2.msra.mxu0 0.0
    %1385 = vmatprep.subr.mxu0 0.0
    %1386 = vmatpush2.msra.mxu0 0.0
    %1387 = vmatprep.subr.mxu0 0.0
    %1388 = vmatpush2.msra.mxu0 0.0
    %1389 = vmatprep.subr.mxu0 0.0
    %1390 = vmatpush2.msra.mxu0 0.0
    %1391 = vmatprep.subr.mxu0 0.0
    %1392 = vmatpush2.msra.mxu0 0.0
    %1393 = vmatprep.subr.mxu0 0.0
    %1394 = vmatpush2.msra.mxu0 0.0
    %1395 = vmatprep.subr.mxu0 0.0
    %1396 = vmatpush2.msra.mxu0 0.0
    %1397 = vmatprep.subr.mxu0 0.0
    %1398 = vmatpush2.msra.mxu0 0.0
    %1399 = vmatprep.subr.mxu0 0.0
    %1400 = vmatpush2.msra.mxu0 0.0
    %1401 = vmatprep.subr.mxu0 0.0
    %1402 = vmatpush2.msra.mxu0 0.0
    %1403 = vmatprep.subr.mxu0 0.0
    %1404 = vmatpush2.msra.mxu0 0.0
    %1405 = vmatprep.subr.mxu0 0.0
    %1406 = vmatpush2.msra.mxu0 0.0
    %1407 = vmatprep.mubr.f32.mxu0 0.0
    %1408 = vmatmul.mubr.f32.gmra.mxu0 %v953
    %v1409 = vpop.f32.mrf.mxu0
    %v1410 = vadd.f32 0.0, %v1409
    %v1411 = vpop.f32.mrf.mxu0
    %v1412 = vadd.f32 0.0, %v1411
    %1413 = vdwg.mxu0
    %v1414 = vadd.f32 %v1268, %v1339
    %v1415 = vadd.f32 %v1269, %v1341
    %v1416 = vadd.f32 %v1270, %v1410
    %v1417 = vadd.f32 %v1271, %v1412
    %v1418 = vmul.f32 %v1414, 0.5
    %v1419 = vmul.f32 %v1415, 0.5
    %v1420 = vmul.f32 %v1416, 0.5
    %v1421 = vtanh.pop %v1418
    %v1422 = vtanh.pop %v1419
    %v1423 = vtanh.pop %v1420
    %v1424 = vmul.f32 %v1421, 0.5
    %v1425 = vmul.f32 %v1422, 0.5
    %v1426 = vmul.f32 %v1423, 0.5
    %v1427 = vadd.f32 %v1424, 0.5
    %v1428 = vadd.f32 %v1425, 0.5
    %v1429 = vadd.f32 %v1426, 0.5
    %v1430 = vtanh.pop %v1417
    %v1431 = vmul.f32 %v1428, %v951
    %v1432 = vmul.f32 %v1427, %v1430
    %v1433 = vadd.f32 %v1431, %v1432
    %v1434 = vtanh.pop %v1433
    %v1435 = vmul.f32 %v1429, %v1434
    %1436 = vmatprep.subr.mxu0 %v388
    %1437 = vmatpush1.msra.mxu0 %v387
    %1438 = vmatprep.subr.mxu0 %v384
    %1439 = vmatpush1.msra.mxu0 %v383
    %1440 = vmatprep.subr.mxu0 %v380
    %1441 = vmatpush1.msra.mxu0 %v379
    %1442 = vmatprep.subr.mxu0 %v376
    %1443 = vmatpush1.msra.mxu0 %v375
    %1444 = vmatprep.subr.mxu0 %v372
    %1445 = vmatpush1.msra.mxu0 %v371
    %1446 = vmatprep.subr.mxu0 %v368
    %1447 = vmatpush1.msra.mxu0 %v367
    %1448 = vmatprep.subr.mxu0 %v364
    %1449 = vmatpush1.msra.mxu0 %v363
    %1450 = vmatprep.subr.mxu0 %v360
    %1451 = vmatpush1.msra.mxu0 %v359
    %1452 = vmatprep.subr.mxu0 %v356
    %1453 = vmatpush1.msra.mxu0 %v355
    %1454 = vmatprep.subr.mxu0 %v352
    %1455 = vmatpush1.msra.mxu0 %v351
    %1456 = vmatprep.subr.mxu0 %v348
    %1457 = vmatpush1.msra.mxu0 %v347
    %1458 = vmatprep.subr.mxu0 %v344
    %1459 = vmatpush1.msra.mxu0 %v343
    %1460 = vmatprep.subr.mxu0 %v340
    %1461 = vmatpush1.msra.mxu0 %v339
    %1462 = vmatprep.subr.mxu0 %v336
    %1463 = vmatpush1.msra.mxu0 %v335
    %1464 = vmatprep.subr.mxu0 %v332
    %1465 = vmatpush1.msra.mxu0 %v331
    %1466 = vmatprep.subr.mxu0 %v328
    %1467 = vmatpush1.msra.mxu0 %v327
    %1468 = vmatprep.subr.mxu0 0.0
    %1469 = vmatpush2.msra.mxu0 0.0
    %1470 = vmatprep.subr.mxu0 0.0
    %1471 = vmatpush2.msra.mxu0 0.0
    %1472 = vmatprep.subr.mxu0 0.0
    %1473 = vmatpush2.msra.mxu0 0.0
    %1474 = vmatprep.subr.mxu0 0.0
    %1475 = vmatpush2.msra.mxu0 0.0
    %1476 = vmatprep.subr.mxu0 0.0
    %1477 = vmatpush2.msra.mxu0 0.0
    %1478 = vmatprep.subr.mxu0 0.0
    %1479 = vmatpush2.msra.mxu0 0.0
    %1480 = vmatprep.subr.mxu0 0.0
    %1481 = vmatpush2.msra.mxu0 0.0
    %1482 = vmatprep.subr.mxu0 0.0
    %1483 = vmatpush2.msra.mxu0 0.0
    %1484 = vmatprep.subr.mxu0 0.0
    %1485 = vmatpush2.msra.mxu0 0.0
    %1486 = vmatprep.subr.mxu0 0.0
    %1487 = vmatpush2.msra.mxu0 0.0
    %1488 = vmatprep.subr.mxu0 0.0
    %1489 = vmatpush2.msra.mxu0 0.0
    %1490 = vmatprep.subr.mxu0 0.0
    %1491 = vmatpush2.msra.mxu0 0.0
    %1492 = vmatprep.subr.mxu0 0.0
    %1493 = vmatpush2.msra.mxu0 0.0
    %1494 = vmatprep.subr.mxu0 0.0
    %1495 = vmatpush2.msra.mxu0 0.0
    %1496 = vmatprep.subr.mxu0 0.0
    %1497 = vmatpush2.msra.mxu0 0.0
    %1498 = vmatprep.subr.mxu0 0.0
    %1499 = vmatpush2.msra.mxu0 0.0
    %1500 = vmatprep.mubr.f32.mxu0 0.0
    %1501 = vmatmul.mubr.f32.gmra.mxu0 %v1435
    %v1502 = vpop.f32.mrf.mxu0
    %v1503 = vadd.f32 %v1185, %v1502
    %v1504 = vpop.f32.mrf.mxu0
    %v1505 = vadd.f32 %v1187, %v1504
    %1506 = vdwg.mxu0
    %1507 = vmatprep.subr.mxu0 %v390
    %1508 = vmatpush1.msra.mxu0 %v389
    %1509 = vmatprep.subr.mxu0 %v386
    %1510 = vmatpush1.msra.mxu0 %v385
    %1511 = vmatprep.subr.mxu0 %v382
    %1512 = vmatpush1.msra.mxu0 %v381
    %1513 = vmatprep.subr.mxu0 %v378
    %1514 = vmatpush1.msra.mxu0 %v377
    %1515 = vmatprep.subr.mxu0 %v374
    %1516 = vmatpush1.msra.mxu0 %v373
    %1517 = vmatprep.subr.mxu0 %v370
    %1518 = vmatpush1.msra.mxu0 %v369
    %1519 = vmatprep.subr.mxu0 %v366
    %1520 = vmatpush1.msra.mxu0 %v365
    %1521 = vmatprep.subr.mxu0 %v362
    %1522 = vmatpush1.msra.mxu0 %v361
    %1523 = vmatprep.subr.mxu0 %v358
    %1524 = vmatpush1.msra.mxu0 %v357
    %1525 = vmatprep.subr.mxu0 %v354
    %1526 = vmatpush1.msra.mxu0 %v353
    %1527 = vmatprep.subr.mxu0 %v350
    %1528 = vmatpush1.msra.mxu0 %v349
    %1529 = vmatprep.subr.mxu0 %v346
    %1530 = vmatpush1.msra.mxu0 %v345
    %1531 = vmatprep.subr.mxu0 %v342
    %1532 = vmatpush1.msra.mxu0 %v341
    %1533 = vmatprep.subr.mxu0 %v338
    %1534 = vmatpush1.msra.mxu0 %v337
    %1535 = vmatprep.subr.mxu0 %v334
    %1536 = vmatpush1.msra.mxu0 %v333
    %1537 = vmatprep.subr.mxu0 %v330
    %1538 = vmatpush1.msra.mxu0 %v329
    %1539 = vmatprep.subr.mxu0 0.0
    %1540 = vmatpush2.msra.mxu0 0.0
    %1541 = vmatprep.subr.mxu0 0.0
    %1542 = vmatpush2.msra.mxu0 0.0
    %1543 = vmatprep.subr.mxu0 0.0
    %1544 = vmatpush2.msra.mxu0 0.0
    %1545 = vmatprep.subr.mxu0 0.0
    %1546 = vmatpush2.msra.mxu0 0.0
    %1547 = vmatprep.subr.mxu0 0.0
    %1548 = vmatpush2.msra.mxu0 0.0
    %1549 = vmatprep.subr.mxu0 0.0
    %1550 = vmatpush2.msra.mxu0 0.0
    %1551 = vmatprep.subr.mxu0 0.0
    %1552 = vmatpush2.msra.mxu0 0.0
    %1553 = vmatprep.subr.mxu0 0.0
    %1554 = vmatpush2.msra.mxu0 0.0
    %1555 = vmatprep.subr.mxu0 0.0
    %1556 = vmatpush2.msra.mxu0 0.0
    %1557 = vmatprep.subr.mxu0 0.0
    %1558 = vmatpush2.msra.mxu0 0.0
    %1559 = vmatprep.subr.mxu0 0.0
    %1560 = vmatpush2.msra.mxu0 0.0
    %1561 = vmatprep.subr.mxu0 0.0
    %1562 = vmatpush2.msra.mxu0 0.0
    %1563 = vmatprep.subr.mxu0 0.0
    %1564 = vmatpush2.msra.mxu0 0.0
    %1565 = vmatprep.subr.mxu0 0.0
    %1566 = vmatpush2.msra.mxu0 0.0
    %1567 = vmatprep.subr.mxu0 0.0
    %1568 = vmatpush2.msra.mxu0 0.0
    %1569 = vmatprep.subr.mxu0 0.0
    %1570 = vmatpush2.msra.mxu0 0.0
    %1571 = vmatprep.mubr.f32.mxu0 0.0
    %1572 = vmatmul.mubr.f32.gmra.mxu0 %v1435
    %v1573 = vpop.f32.mrf.mxu0
    %v1574 = vadd.f32 %v1256, %v1573
    %v1575 = vpop.f32.mrf.mxu0
    %v1576 = vadd.f32 %v1258, %v1575
    %1577 = vdwg.mxu0
    %v1578 = vadd.f32 %v1503, %v395
    %v1579 = vadd.f32 %v1505, %v399
    %v1580 = vadd.f32 %v1574, %v403
    %v1581 = vadd.f32 %v1576, %v407
    %v1582 = vmul.f32 %v1578, 0.5
    %v1583 = vmul.f32 %v1579, 0.5
    %v1584 = vmul.f32 %v1580, 0.5
    %v1585 = vtanh.pop %v1582
    %v1586 = vtanh.pop %v1583
    %v1587 = vtanh.pop %v1584
    %v1588 = vmul.f32 %v1585, 0.5
    %v1589 = vmul.f32 %v1586, 0.5
    %v1590 = vmul.f32 %v1587, 0.5
    %v1591 = vadd.f32 %v1588, 0.5
    %v1592 = vadd.f32 %v1589, 0.5
    %v1593 = vadd.f32 %v1590, 0.5
    %v1594 = vtanh.pop %v1581
    %v1595 = vmul.f32 %v1592, %v1115
    %v1596 = vmul.f32 %v1591, %v1594
    %v1597 = vadd.f32 %v1595, %v1596
    %v1598 = vtanh.pop %v1597
    %v1599 = vmul.f32 %v1593, %v1598
    %1600 = vmatprep.subr.mxu0 %v633
    %1601 = vmatpush1.msra.mxu0 %v632
    %1602 = vmatprep.subr.mxu0 %v629
    %1603 = vmatpush1.msra.mxu0 %v628
    %1604 = vmatprep.subr.mxu0 %v625
    %1605 = vmatpush1.msra.mxu0 %v624
    %1606 = vmatprep.subr.mxu0 %v621
    %1607 = vmatpush1.msra.mxu0 %v620
    %1608 = vmatprep.subr.mxu0 %v617
    %1609 = vmatpush1.msra.mxu0 %v616
    %1610 = vmatprep.subr.mxu0 %v613
    %1611 = vmatpush1.msra.mxu0 %v612
    %1612 = vmatprep.subr.mxu0 %v609
    %1613 = vmatpush1.msra.mxu0 %v608
    %1614 = vmatprep.subr.mxu0 %v605
    %1615 = vmatpush1.msra.mxu0 %v604
    %1616 = vmatprep.subr.mxu0 %v601
    %1617 = vmatpush1.msra.mxu0 %v600
    %1618 = vmatprep.subr.mxu0 %v597
    %1619 = vmatpush1.msra.mxu0 %v596
    %1620 = vmatprep.subr.mxu0 %v593
    %1621 = vmatpush1.msra.mxu0 %v592
    %1622 = vmatprep.subr.mxu0 %v589
    %1623 = vmatpush1.msra.mxu0 %v588
    %1624 = vmatprep.subr.mxu0 %v585
    %1625 = vmatpush1.msra.mxu0 %v584
    %1626 = vmatprep.subr.mxu0 %v581
    %1627 = vmatpush1.msra.mxu0 %v580
    %1628 = vmatprep.subr.mxu0 %v577
    %1629 = vmatpush1.msra.mxu0 %v576
    %1630 = vmatprep.subr.mxu0 %v573
    %1631 = vmatpush1.msra.mxu0 %v572
    %1632 = vmatprep.subr.mxu0 0.0
    %1633 = vmatpush2.msra.mxu0 0.0
    %1634 = vmatprep.subr.mxu0 0.0
    %1635 = vmatpush2.msra.mxu0 0.0
    %1636 = vmatprep.subr.mxu0 0.0
    %1637 = vmatpush2.msra.mxu0 0.0
    %1638 = vmatprep.subr.mxu0 0.0
    %1639 = vmatpush2.msra.mxu0 0.0
    %1640 = vmatprep.subr.mxu0 0.0
    %1641 = vmatpush2.msra.mxu0 0.0
    %1642 = vmatprep.subr.mxu0 0.0
    %1643 = vmatpush2.msra.mxu0 0.0
    %1644 = vmatprep.subr.mxu0 0.0
    %1645 = vmatpush2.msra.mxu0 0.0
    %1646 = vmatprep.subr.mxu0 0.0
    %1647 = vmatpush2.msra.mxu0 0.0
    %1648 = vmatprep.subr.mxu0 0.0
    %1649 = vmatpush2.msra.mxu0 0.0
    %1650 = vmatprep.subr.mxu0 0.0
    %1651 = vmatpush2.msra.mxu0 0.0
    %1652 = vmatprep.subr.mxu0 0.0
    %1653 = vmatpush2.msra.mxu0 0.0
    %1654 = vmatprep.subr.mxu0 0.0
    %1655 = vmatpush2.msra.mxu0 0.0
    %1656 = vmatprep.subr.mxu0 0.0
    %1657 = vmatpush2.msra.mxu0 0.0
    %1658 = vmatprep.subr.mxu0 0.0
    %1659 = vmatpush2.msra.mxu0 0.0
    %1660 = vmatprep.subr.mxu0 0.0
    %1661 = vmatpush2.msra.mxu0 0.0
    %1662 = vmatprep.subr.mxu0 0.0
    %1663 = vmatpush2.msra.mxu0 0.0
    %1664 = vmatprep.mubr.f32.mxu0 0.0
    %1665 = vmatmul.mubr.f32.gmra.mxu0 %v1599
    %v1666 = vpop.f32.mrf.mxu0
    %v1667 = vadd.f32 0.0, %v1666
    %v1668 = vpop.f32.mrf.mxu0
    %v1669 = vadd.f32 0.0, %v1668
    %1670 = vdwg.mxu0
    %1671 = vmatprep.subr.mxu0 %v635
    %1672 = vmatpush1.msra.mxu0 %v634
    %1673 = vmatprep.subr.mxu0 %v631
    %1674 = vmatpush1.msra.mxu0 %v630
    %1675 = vmatprep.subr.mxu0 %v627
    %1676 = vmatpush1.msra.mxu0 %v626
    %1677 = vmatprep.subr.mxu0 %v623
    %1678 = vmatpush1.msra.mxu0 %v622
    %1679 = vmatprep.subr.mxu0 %v619
    %1680 = vmatpush1.msra.mxu0 %v618
    %1681 = vmatprep.subr.mxu0 %v615
    %1682 = vmatpush1.msra.mxu0 %v614
    %1683 = vmatprep.subr.mxu0 %v611
    %1684 = vmatpush1.msra.mxu0 %v610
    %1685 = vmatprep.subr.mxu0 %v607
    %1686 = vmatpush1.msra.mxu0 %v606
    %1687 = vmatprep.subr.mxu0 %v603
    %1688 = vmatpush1.msra.mxu0 %v602
    %1689 = vmatprep.subr.mxu0 %v599
    %1690 = vmatpush1.msra.mxu0 %v598
    %1691 = vmatprep.subr.mxu0 %v595
    %1692 = vmatpush1.msra.mxu0 %v594
    %1693 = vmatprep.subr.mxu0 %v591
    %1694 = vmatpush1.msra.mxu0 %v590
    %1695 = vmatprep.subr.mxu0 %v587
    %1696 = vmatpush1.msra.mxu0 %v586
    %1697 = vmatprep.subr.mxu0 %v583
    %1698 = vmatpush1.msra.mxu0 %v582
    %1699 = vmatprep.subr.mxu0 %v579
    %1700 = vmatpush1.msra.mxu0 %v578
    %1701 = vmatprep.subr.mxu0 %v575
    %1702 = vmatpush1.msra.mxu0 %v574
    %1703 = vmatprep.subr.mxu0 0.0
    %1704 = vmatpush2.msra.mxu0 0.0
    %1705 = vmatprep.subr.mxu0 0.0
    %1706 = vmatpush2.msra.mxu0 0.0
    %1707 = vmatprep.subr.mxu0 0.0
    %1708 = vmatpush2.msra.mxu0 0.0
    %1709 = vmatprep.subr.mxu0 0.0
    %1710 = vmatpush2.msra.mxu0 0.0
    %1711 = vmatprep.subr.mxu0 0.0
    %1712 = vmatpush2.msra.mxu0 0.0
    %1713 = vmatprep.subr.mxu0 0.0
    %1714 = vmatpush2.msra.mxu0 0.0
    %1715 = vmatprep.subr.mxu0 0.0
    %1716 = vmatpush2.msra.mxu0 0.0
    %1717 = vmatprep.subr.mxu0 0.0
    %1718 = vmatpush2.msra.mxu0 0.0
    %1719 = vmatprep.subr.mxu0 0.0
    %1720 = vmatpush2.msra.mxu0 0.0
    %1721 = vmatprep.subr.mxu0 0.0
    %1722 = vmatpush2.msra.mxu0 0.0
    %1723 = vmatprep.subr.mxu0 0.0
    %1724 = vmatpush2.msra.mxu0 0.0
    %1725 = vmatprep.subr.mxu0 0.0
    %1726 = vmatpush2.msra.mxu0 0.0
    %1727 = vmatprep.subr.mxu0 0.0
    %1728 = vmatpush2.msra.mxu0 0.0
    %1729 = vmatprep.subr.mxu0 0.0
    %1730 = vmatpush2.msra.mxu0 0.0
    %1731 = vmatprep.subr.mxu0 0.0
    %1732 = vmatpush2.msra.mxu0 0.0
    %1733 = vmatprep.subr.mxu0 0.0
    %1734 = vmatpush2.msra.mxu0 0.0
    %1735 = vmatprep.mubr.f32.mxu0 0.0
    %1736 = vmatmul.mubr.f32.gmra.mxu0 %v1599
    %v1737 = vpop.f32.mrf.mxu0
    %v1738 = vadd.f32 0.0, %v1737
    %v1739 = vpop.f32.mrf.mxu0
    %v1740 = vadd.f32 0.0, %v1739
    %1741 = vdwg.mxu0
    %1742 = vset.pattern.permute.xlu0 3
    %1743 = vperm.xlu0 %1742, %v37
    %v1744 = vpop.permute.xlu0 %1743
    %v1746 = vmul.f32 %v1744, %v53
    %v1747 = vmul.f32 %v1744, %v57
    %v1748 = vmul.f32 %v1744, %v61
    %v1749 = vmul.f32 %v1744, %v65
    %v1750 = vadd.f32 %v1746, %v78
    %v1751 = vadd.f32 %v1747, %v82
    %v1752 = vadd.f32 %v1748, %v86
    %v1753 = vadd.f32 %v1749, %v90
    %1754 = vmatprep.subr.mxu0 %v160
    %1755 = vmatpush1.msra.mxu0 %v159
    %1756 = vmatprep.subr.mxu0 %v156
    %1757 = vmatpush1.msra.mxu0 %v155
    %1758 = vmatprep.subr.mxu0 %v152
    %1759 = vmatpush1.msra.mxu0 %v151
    %1760 = vmatprep.subr.mxu0 %v148
    %1761 = vmatpush1.msra.mxu0 %v147
    %1762 = vmatprep.subr.mxu0 %v144
    %1763 = vmatpush1.msra.mxu0 %v143
    %1764 = vmatprep.subr.mxu0 %v140
    %1765 = vmatpush1.msra.mxu0 %v139
    %1766 = vmatprep.subr.mxu0 %v136
    %1767 = vmatpush1.msra.mxu0 %v135
    %1768 = vmatprep.subr.mxu0 %v132
    %1769 = vmatpush1.msra.mxu0 %v131
    %1770 = vmatprep.subr.mxu0 %v128
    %1771 = vmatpush1.msra.mxu0 %v127
    %1772 = vmatprep.subr.mxu0 %v124
    %1773 = vmatpush1.msra.mxu0 %v123
    %1774 = vmatprep.subr.mxu0 %v120
    %1775 = vmatpush1.msra.mxu0 %v119
    %1776 = vmatprep.subr.mxu0 %v116
    %1777 = vmatpush1.msra.mxu0 %v115
    %1778 = vmatprep.subr.mxu0 %v112
    %1779 = vmatpush1.msra.mxu0 %v111
    %1780 = vmatprep.subr.mxu0 %v108
    %1781 = vmatpush1.msra.mxu0 %v107
    %1782 = vmatprep.subr.mxu0 %v104
    %1783 = vmatpush1.msra.mxu0 %v103
    %1784 = vmatprep.subr.mxu0 %v100
    %1785 = vmatpush1.msra.mxu0 %v99
    %1786 = vmatprep.subr.mxu0 0.0
    %1787 = vmatpush2.msra.mxu0 0.0
    %1788 = vmatprep.subr.mxu0 0.0
    %1789 = vmatpush2.msra.mxu0 0.0
    %1790 = vmatprep.subr.mxu0 0.0
    %1791 = vmatpush2.msra.mxu0 0.0
    %1792 = vmatprep.subr.mxu0 0.0
    %1793 = vmatpush2.msra.mxu0 0.0
    %1794 = vmatprep.subr.mxu0 0.0
    %1795 = vmatpush2.msra.mxu0 0.0
    %1796 = vmatprep.subr.mxu0 0.0
    %1797 = vmatpush2.msra.mxu0 0.0
    %1798 = vmatprep.subr.mxu0 0.0
    %1799 = vmatpush2.msra.mxu0 0.0
    %1800 = vmatprep.subr.mxu0 0.0
    %1801 = vmatpush2.msra.mxu0 0.0
    %1802 = vmatprep.subr.mxu0 0.0
    %1803 = vmatpush2.msra.mxu0 0.0
    %1804 = vmatprep.subr.mxu0 0.0
    %1805 = vmatpush2.msra.mxu0 0.0
    %1806 = vmatprep.subr.mxu0 0.0
    %1807 = vmatpush2.msra.mxu0 0.0
    %1808 = vmatprep.subr.mxu0 0.0
    %1809 = vmatpush2.msra.mxu0 0.0
    %1810 = vmatprep.subr.mxu0 0.0
    %1811 = vmatpush2.msra.mxu0 0.0
    %1812 = vmatprep.subr.mxu0 0.0
    %1813 = vmatpush2.msra.mxu0 0.0
    %1814 = vmatprep.subr.mxu0 0.0
    %1815 = vmatpush2.msra.mxu0 0.0
    %1816 = vmatprep.subr.mxu0 0.0
    %1817 = vmatpush2.msra.mxu0 0.0
    %1818 = vmatprep.mubr.f32.mxu0 0.0
    %1819 = vmatmul.mubr.f32.gmra.mxu0 %v1435
    %v1820 = vpop.f32.mrf.mxu0
    %v1821 = vadd.f32 0.0, %v1820
    %v1822 = vpop.f32.mrf.mxu0
    %v1823 = vadd.f32 0.0, %v1822
    %1824 = vdwg.mxu0
    %1825 = vmatprep.subr.mxu0 %v162
    %1826 = vmatpush1.msra.mxu0 %v161
    %1827 = vmatprep.subr.mxu0 %v158
    %1828 = vmatpush1.msra.mxu0 %v157
    %1829 = vmatprep.subr.mxu0 %v154
    %1830 = vmatpush1.msra.mxu0 %v153
    %1831 = vmatprep.subr.mxu0 %v150
    %1832 = vmatpush1.msra.mxu0 %v149
    %1833 = vmatprep.subr.mxu0 %v146
    %1834 = vmatpush1.msra.mxu0 %v145
    %1835 = vmatprep.subr.mxu0 %v142
    %1836 = vmatpush1.msra.mxu0 %v141
    %1837 = vmatprep.subr.mxu0 %v138
    %1838 = vmatpush1.msra.mxu0 %v137
    %1839 = vmatprep.subr.mxu0 %v134
    %1840 = vmatpush1.msra.mxu0 %v133
    %1841 = vmatprep.subr.mxu0 %v130
    %1842 = vmatpush1.msra.mxu0 %v129
    %1843 = vmatprep.subr.mxu0 %v126
    %1844 = vmatpush1.msra.mxu0 %v125
    %1845 = vmatprep.subr.mxu0 %v122
    %1846 = vmatpush1.msra.mxu0 %v121
    %1847 = vmatprep.subr.mxu0 %v118
    %1848 = vmatpush1.msra.mxu0 %v117
    %1849 = vmatprep.subr.mxu0 %v114
    %1850 = vmatpush1.msra.mxu0 %v113
    %1851 = vmatprep.subr.mxu0 %v110
    %1852 = vmatpush1.msra.mxu0 %v109
    %1853 = vmatprep.subr.mxu0 %v106
    %1854 = vmatpush1.msra.mxu0 %v105
    %1855 = vmatprep.subr.mxu0 %v102
    %1856 = vmatpush1.msra.mxu0 %v101
    %1857 = vmatprep.subr.mxu0 0.0
    %1858 = vmatpush2.msra.mxu0 0.0
    %1859 = vmatprep.subr.mxu0 0.0
    %1860 = vmatpush2.msra.mxu0 0.0
    %1861 = vmatprep.subr.mxu0 0.0
    %1862 = vmatpush2.msra.mxu0 0.0
    %1863 = vmatprep.subr.mxu0 0.0
    %1864 = vmatpush2.msra.mxu0 0.0
    %1865 = vmatprep.subr.mxu0 0.0
    %1866 = vmatpush2.msra.mxu0 0.0
    %1867 = vmatprep.subr.mxu0 0.0
    %1868 = vmatpush2.msra.mxu0 0.0
    %1869 = vmatprep.subr.mxu0 0.0
    %1870 = vmatpush2.msra.mxu0 0.0
    %1871 = vmatprep.subr.mxu0 0.0
    %1872 = vmatpush2.msra.mxu0 0.0
    %1873 = vmatprep.subr.mxu0 0.0
    %1874 = vmatpush2.msra.mxu0 0.0
    %1875 = vmatprep.subr.mxu0 0.0
    %1876 = vmatpush2.msra.mxu0 0.0
    %1877 = vmatprep.subr.mxu0 0.0
    %1878 = vmatpush2.msra.mxu0 0.0
    %1879 = vmatprep.subr.mxu0 0.0
    %1880 = vmatpush2.msra.mxu0 0.0
    %1881 = vmatprep.subr.mxu0 0.0
    %1882 = vmatpush2.msra.mxu0 0.0
    %1883 = vmatprep.subr.mxu0 0.0
    %1884 = vmatpush2.msra.mxu0 0.0
    %1885 = vmatprep.subr.mxu0 0.0
    %1886 = vmatpush2.msra.mxu0 0.0
    %1887 = vmatprep.subr.mxu0 0.0
    %1888 = vmatpush2.msra.mxu0 0.0
    %1889 = vmatprep.mubr.f32.mxu0 0.0
    %1890 = vmatmul.mubr.f32.gmra.mxu0 %v1435
    %v1891 = vpop.f32.mrf.mxu0
    %v1892 = vadd.f32 0.0, %v1891
    %v1893 = vpop.f32.mrf.mxu0
    %v1894 = vadd.f32 0.0, %v1893
    %1895 = vdwg.mxu0
    %v1896 = vadd.f32 %v1750, %v1821
    %v1897 = vadd.f32 %v1751, %v1823
    %v1898 = vadd.f32 %v1752, %v1892
    %v1899 = vadd.f32 %v1753, %v1894
    %v1900 = vmul.f32 %v1896, 0.5
    %v1901 = vmul.f32 %v1897, 0.5
    %v1902 = vmul.f32 %v1898, 0.5
    %v1903 = vtanh.pop %v1900
    %v1904 = vtanh.pop %v1901
    %v1905 = vtanh.pop %v1902
    %v1906 = vmul.f32 %v1903, 0.5
    %v1907 = vmul.f32 %v1904, 0.5
    %v1908 = vmul.f32 %v1905, 0.5
    %v1909 = vadd.f32 %v1906, 0.5
    %v1910 = vadd.f32 %v1907, 0.5
    %v1911 = vadd.f32 %v1908, 0.5
    %v1912 = vtanh.pop %v1899
    %v1913 = vmul.f32 %v1910, %v1433
    %v1914 = vmul.f32 %v1909, %v1912
    %v1915 = vadd.f32 %v1913, %v1914
    %v1916 = vtanh.pop %v1915
    %v1917 = vmul.f32 %v1911, %v1916
    %1918 = vmatprep.subr.mxu0 %v388
    %1919 = vmatpush1.msra.mxu0 %v387
    %1920 = vmatprep.subr.mxu0 %v384
    %1921 = vmatpush1.msra.mxu0 %v383
    %1922 = vmatprep.subr.mxu0 %v380
    %1923 = vmatpush1.msra.mxu0 %v379
    %1924 = vmatprep.subr.mxu0 %v376
    %1925 = vmatpush1.msra.mxu0 %v375
    %1926 = vmatprep.subr.mxu0 %v372
    %1927 = vmatpush1.msra.mxu0 %v371
    %1928 = vmatprep.subr.mxu0 %v368
    %1929 = vmatpush1.msra.mxu0 %v367
    %1930 = vmatprep.subr.mxu0 %v364
    %1931 = vmatpush1.msra.mxu0 %v363
    %1932 = vmatprep.subr.mxu0 %v360
    %1933 = vmatpush1.msra.mxu0 %v359
    %1934 = vmatprep.subr.mxu0 %v356
    %1935 = vmatpush1.msra.mxu0 %v355
    %1936 = vmatprep.subr.mxu0 %v352
    %1937 = vmatpush1.msra.mxu0 %v351
    %1938 = vmatprep.subr.mxu0 %v348
    %1939 = vmatpush1.msra.mxu0 %v347
    %1940 = vmatprep.subr.mxu0 %v344
    %1941 = vmatpush1.msra.mxu0 %v343
    %1942 = vmatprep.subr.mxu0 %v340
    %1943 = vmatpush1.msra.mxu0 %v339
    %1944 = vmatprep.subr.mxu0 %v336
    %1945 = vmatpush1.msra.mxu0 %v335
    %1946 = vmatprep.subr.mxu0 %v332
    %1947 = vmatpush1.msra.mxu0 %v331
    %1948 = vmatprep.subr.mxu0 %v328
    %1949 = vmatpush1.msra.mxu0 %v327
    %1950 = vmatprep.subr.mxu0 0.0
    %1951 = vmatpush2.msra.mxu0 0.0
    %1952 = vmatprep.subr.mxu0 0.0
    %1953 = vmatpush2.msra.mxu0 0.0
    %1954 = vmatprep.subr.mxu0 0.0
    %1955 = vmatpush2.msra.mxu0 0.0
    %1956 = vmatprep.subr.mxu0 0.0
    %1957 = vmatpush2.msra.mxu0 0.0
    %1958 = vmatprep.subr.mxu0 0.0
    %1959 = vmatpush2.msra.mxu0 0.0
    %1960 = vmatprep.subr.mxu0 0.0
    %1961 = vmatpush2.msra.mxu0 0.0
    %1962 = vmatprep.subr.mxu0 0.0
    %1963 = vmatpush2.msra.mxu0 0.0
    %1964 = vmatprep.subr.mxu0 0.0
    %1965 = vmatpush2.msra.mxu0 0.0
    %1966 = vmatprep.subr.mxu0 0.0
    %1967 = vmatpush2.msra.mxu0 0.0
    %1968 = vmatprep.subr.mxu0 0.0
    %1969 = vmatpush2.msra.mxu0 0.0
    %1970 = vmatprep.subr.mxu0 0.0
    %1971 = vmatpush2.msra.mxu0 0.0
    %1972 = vmatprep.subr.mxu0 0.0
    %1973 = vmatpush2.msra.mxu0 0.0
    %1974 = vmatprep.subr.mxu0 0.0
    %1975 = vmatpush2.msra.mxu0 0.0
    %1976 = vmatprep.subr.mxu0 0.0
    %1977 = vmatpush2.msra.mxu0 0.0
    %1978 = vmatprep.subr.mxu0 0.0
    %1979 = vmatpush2.msra.mxu0 0.0
    %1980 = vmatprep.subr.mxu0 0.0
    %1981 = vmatpush2.msra.mxu0 0.0
    %1982 = vmatprep.mubr.f32.mxu0 0.0
    %1983 = vmatmul.mubr.f32.gmra.mxu0 %v1917
    %v1984 = vpop.f32.mrf.mxu0
    %v1985 = vadd.f32 %v1667, %v1984
    %v1986 = vpop.f32.mrf.mxu0
    %v1987 = vadd.f32 %v1669, %v1986
    %1988 = vdwg.mxu0
    %1989 = vmatprep.subr.mxu0 %v390
    %1990 = vmatpush1.msra.mxu0 %v389
    %1991 = vmatprep.subr.mxu0 %v386
    %1992 = vmatpush1.msra.mxu0 %v385
    %1993 = vmatprep.subr.mxu0 %v382
    %1994 = vmatpush1.msra.mxu0 %v381
    %1995 = vmatprep.subr.mxu0 %v378
    %1996 = vmatpush1.msra.mxu0 %v377
    %1997 = vmatprep.subr.mxu0 %v374
    %1998 = vmatpush1.msra.mxu0 %v373
    %1999 = vmatprep.subr.mxu0 %v370
    %2000 = vmatpush1.msra.mxu0 %v369
    %2001 = vmatprep.subr.mxu0 %v366
    %2002 = vmatpush1.msra.mxu0 %v365
    %2003 = vmatprep.subr.mxu0 %v362
    %2004 = vmatpush1.msra.mxu0 %v361
    %2005 = vmatprep.subr.mxu0 %v358
    %2006 = vmatpush1.msra.mxu0 %v357
    %2007 = vmatprep.subr.mxu0 %v354
    %2008 = vmatpush1.msra.mxu0 %v353
    %2009 = vmatprep.subr.mxu0 %v350
    %2010 = vmatpush1.msra.mxu0 %v349
    %2011 = vmatprep.subr.mxu0 %v346
    %2012 = vmatpush1.msra.mxu0 %v345
    %2013 = vmatprep.subr.mxu0 %v342
    %2014 = vmatpush1.msra.mxu0 %v341
    %2015 = vmatprep.subr.mxu0 %v338
    %2016 = vmatpush1.msra.mxu0 %v337
    %2017 = vmatprep.subr.mxu0 %v334
    %2018 = vmatpush1.msra.mxu0 %v333
    %2019 = vmatprep.subr.mxu0 %v330
    %2020 = vmatpush1.msra.mxu0 %v329
    %2021 = vmatprep.subr.mxu0 0.0
    %2022 = vmatpush2.msra.mxu0 0.0
    %2023 = vmatprep.subr.mxu0 0.0
    %2024 = vmatpush2.msra.mxu0 0.0
    %2025 = vmatprep.subr.mxu0 0.0
    %2026 = vmatpush2.msra.mxu0 0.0
    %2027 = vmatprep.subr.mxu0 0.0
    %2028 = vmatpush2.msra.mxu0 0.0
    %2029 = vmatprep.subr.mxu0 0.0
    %2030 = vmatpush2.msra.mxu0 0.0
    %2031 = vmatprep.subr.mxu0 0.0
    %2032 = vmatpush2.msra.mxu0 0.0
    %2033 = vmatprep.subr.mxu0 0.0
    %2034 = vmatpush2.msra.mxu0 0.0
    %2035 = vmatprep.subr.mxu0 0.0
    %2036 = vmatpush2.msra.mxu0 0.0
    %2037 = vmatprep.subr.mxu0 0.0
    %2038 = vmatpush2.msra.mxu0 0.0
    %2039 = vmatprep.subr.mxu0 0.0
    %2040 = vmatpush2.msra.mxu0 0.0
    %2041 = vmatprep.subr.mxu0 0.0
    %2042 = vmatpush2.msra.mxu0 0.0
    %2043 = vmatprep.subr.mxu0 0.0
    %2044 = vmatpush2.msra.mxu0 0.0
    %2045 = vmatprep.subr.mxu0 0.0
    %2046 = vmatpush2.msra.mxu0 0.0
    %2047 = vmatprep.subr.mxu0 0.0
    %2048 = vmatpush2.msra.mxu0 0.0
    %2049 = vmatprep.subr.mxu0 0.0
    %2050 = vmatpush2.msra.mxu0 0.0
    %2051 = vmatprep.subr.mxu0 0.0
    %2052 = vmatpush2.msra.mxu0 0.0
    %2053 = vmatprep.mubr.f32.mxu0 0.0
    %2054 = vmatmul.mubr.f32.gmra.mxu0 %v1917
    %v2055 = vpop.f32.mrf.mxu0
    %v2056 = vadd.f32 %v1738, %v2055
    %v2057 = vpop.f32.mrf.mxu0
    %v2058 = vadd.f32 %v1740, %v2057
    %2059 = vdwg.mxu0
    %v2060 = vadd.f32 %v1985, %v395
    %v2061 = vadd.f32 %v1987, %v399
    %v2062 = vadd.f32 %v2056, %v403
    %v2063 = vadd.f32 %v2058, %v407
    %v2064 = vmul.f32 %v2060, 0.5
    %v2065 = vmul.f32 %v2061, 0.5
    %v2066 = vmul.f32 %v2062, 0.5
    %v2067 = vtanh.pop %v2064
    %v2068 = vtanh.pop %v2065
    %v2069 = vtanh.pop %v2066
    %v2070 = vmul.f32 %v2067, 0.5
    %v2071 = vmul.f32 %v2068, 0.5
    %v2072 = vmul.f32 %v2069, 0.5
    %v2073 = vadd.f32 %v2070, 0.5
    %v2074 = vadd.f32 %v2071, 0.5
    %v2075 = vadd.f32 %v2072, 0.5
    %v2076 = vtanh.pop %v2063
    %v2077 = vmul.f32 %v2074, %v1597
    %v2078 = vmul.f32 %v2073, %v2076
    %v2079 = vadd.f32 %v2077, %v2078
    %v2080 = vtanh.pop %v2079
    %v2081 = vmul.f32 %v2075, %v2080
    %2082 = vmatprep.subr.mxu0 %v633
    %2083 = vmatpush1.msra.mxu0 %v632
    %2084 = vmatprep.subr.mxu0 %v629
    %2085 = vmatpush1.msra.mxu0 %v628
    %2086 = vmatprep.subr.mxu0 %v625
    %2087 = vmatpush1.msra.mxu0 %v624
    %2088 = vmatprep.subr.mxu0 %v621
    %2089 = vmatpush1.msra.mxu0 %v620
    %2090 = vmatprep.subr.mxu0 %v617
    %2091 = vmatpush1.msra.mxu0 %v616
    %2092 = vmatprep.subr.mxu0 %v613
    %2093 = vmatpush1.msra.mxu0 %v612
    %2094 = vmatprep.subr.mxu0 %v609
    %2095 = vmatpush1.msra.mxu0 %v608
    %2096 = vmatprep.subr.mxu0 %v605
    %2097 = vmatpush1.msra.mxu0 %v604
    %2098 = vmatprep.subr.mxu0 %v601
    %2099 = vmatpush1.msra.mxu0 %v600
    %2100 = vmatprep.subr.mxu0 %v597
    %2101 = vmatpush1.msra.mxu0 %v596
    %2102 = vmatprep.subr.mxu0 %v593
    %2103 = vmatpush1.msra.mxu0 %v592
    %2104 = vmatprep.subr.mxu0 %v589
    %2105 = vmatpush1.msra.mxu0 %v588
    %2106 = vmatprep.subr.mxu0 %v585
    %2107 = vmatpush1.msra.mxu0 %v584
    %2108 = vmatprep.subr.mxu0 %v581
    %2109 = vmatpush1.msra.mxu0 %v580
    %2110 = vmatprep.subr.mxu0 %v577
    %2111 = vmatpush1.msra.mxu0 %v576
    %2112 = vmatprep.subr.mxu0 %v573
    %2113 = vmatpush1.msra.mxu0 %v572
    %2114 = vmatprep.subr.mxu0 0.0
    %2115 = vmatpush2.msra.mxu0 0.0
    %2116 = vmatprep.subr.mxu0 0.0
    %2117 = vmatpush2.msra.mxu0 0.0
    %2118 = vmatprep.subr.mxu0 0.0
    %2119 = vmatpush2.msra.mxu0 0.0
    %2120 = vmatprep.subr.mxu0 0.0
    %2121 = vmatpush2.msra.mxu0 0.0
    %2122 = vmatprep.subr.mxu0 0.0
    %2123 = vmatpush2.msra.mxu0 0.0
    %2124 = vmatprep.subr.mxu0 0.0
    %2125 = vmatpush2.msra.mxu0 0.0
    %2126 = vmatprep.subr.mxu0 0.0
    %2127 = vmatpush2.msra.mxu0 0.0
    %2128 = vmatprep.subr.mxu0 0.0
    %2129 = vmatpush2.msra.mxu0 0.0
    %2130 = vmatprep.subr.mxu0 0.0
    %2131 = vmatpush2.msra.mxu0 0.0
    %2132 = vmatprep.subr.mxu0 0.0
    %2133 = vmatpush2.msra.mxu0 0.0
    %2134 = vmatprep.subr.mxu0 0.0
    %2135 = vmatpush2.msra.mxu0 0.0
    %2136 = vmatprep.subr.mxu0 0.0
    %2137 = vmatpush2.msra.mxu0 0.0
    %2138 = vmatprep.subr.mxu0 0.0
    %2139 = vmatpush2.msra.mxu0 0.0
    %2140 = vmatprep.subr.mxu0 0.0
    %2141 = vmatpush2.msra.mxu0 0.0
    %2142 = vmatprep.subr.mxu0 0.0
    %2143 = vmatpush2.msra.mxu0 0.0
    %2144 = vmatprep.subr.mxu0 0.0
    %2145 = vmatpush2.msra.mxu0 0.0
    %2146 = vmatprep.mubr.f32.mxu0 0.0
    %2147 = vmatmul.mubr.f32.gmra.mxu0 %v2081
    %v2148 = vpop.f32.mrf.mxu0
    %v2149 = vadd.f32 0.0, %v2148
    %v2150 = vpop.f32.mrf.mxu0
    %v2151 = vadd.f32 0.0, %v2150
    %2152 = vdwg.mxu0
    %2153 = vmatprep.subr.mxu0 %v635
    %2154 = vmatpush1.msra.mxu0 %v634
    %2155 = vmatprep.subr.mxu0 %v631
    %2156 = vmatpush1.msra.mxu0 %v630
    %2157 = vmatprep.subr.mxu0 %v627
    %2158 = vmatpush1.msra.mxu0 %v626
    %2159 = vmatprep.subr.mxu0 %v623
    %2160 = vmatpush1.msra.mxu0 %v622
    %2161 = vmatprep.subr.mxu0 %v619
    %2162 = vmatpush1.msra.mxu0 %v618
    %2163 = vmatprep.subr.mxu0 %v615
    %2164 = vmatpush1.msra.mxu0 %v614
    %2165 = vmatprep.subr.mxu0 %v611
    %2166 = vmatpush1.msra.mxu0 %v610
    %2167 = vmatprep.subr.mxu0 %v607
    %2168 = vmatpush1.msra.mxu0 %v606
    %2169 = vmatprep.subr.mxu0 %v603
    %2170 = vmatpush1.msra.mxu0 %v602
    %2171 = vmatprep.subr.mxu0 %v599
    %2172 = vmatpush1.msra.mxu0 %v598
    %2173 = vmatprep.subr.mxu0 %v595
    %2174 = vmatpush1.msra.mxu0 %v594
    %2175 = vmatprep.subr.mxu0 %v591
    %2176 = vmatpush1.msra.mxu0 %v590
    %2177 = vmatprep.subr.mxu0 %v587
    %2178 = vmatpush1.msra.mxu0 %v586
    %2179 = vmatprep.subr.mxu0 %v583
    %2180 = vmatpush1.msra.mxu0 %v582
    %2181 = vmatprep.subr.mxu0 %v579
    %2182 = vmatpush1.msra.mxu0 %v578
    %2183 = vmatprep.subr.mxu0 %v575
    %2184 = vmatpush1.msra.mxu0 %v574
    %2185 = vmatprep.subr.mxu0 0.0
    %2186 = vmatpush2.msra.mxu0 0.0
    %2187 = vmatprep.subr.mxu0 0.0
    %2188 = vmatpush2.msra.mxu0 0.0
    %2189 = vmatprep.subr.mxu0 0.0
    %2190 = vmatpush2.msra.mxu0 0.0
    %2191 = vmatprep.subr.mxu0 0.0
    %2192 = vmatpush2.msra.mxu0 0.0
    %2193 = vmatprep.subr.mxu0 0.0
    %2194 = vmatpush2.msra.mxu0 0.0
    %2195 = vmatprep.subr.mxu0 0.0
    %2196 = vmatpush2.msra.mxu0 0.0
    %2197 = vmatprep.subr.mxu0 0.0
    %2198 = vmatpush2.msra.mxu0 0.0
    %2199 = vmatprep.subr.mxu0 0.0
    %2200 = vmatpush2.msra.mxu0 0.0
    %2201 = vmatprep.subr.mxu0 0.0
    %2202 = vmatpush2.msra.mxu0 0.0
    %2203 = vmatprep.subr.mxu0 0.0
    %2204 = vmatpush2.msra.mxu0 0.0
    %2205 = vmatprep.subr.mxu0 0.0
    %2206 = vmatpush2.msra.mxu0 0.0
    %2207 = vmatprep.subr.mxu0 0.0
    %2208 = vmatpush2.msra.mxu0 0.0
    %2209 = vmatprep.subr.mxu0 0.0
    %2210 = vmatpush2.msra.mxu0 0.0
    %2211 = vmatprep.subr.mxu0 0.0
    %2212 = vmatpush2.msra.mxu0 0.0
    %2213 = vmatprep.subr.mxu0 0.0
    %2214 = vmatpush2.msra.mxu0 0.0
    %2215 = vmatprep.subr.mxu0 0.0
    %2216 = vmatpush2.msra.mxu0 0.0
    %2217 = vmatprep.mubr.f32.mxu0 0.0
    %2218 = vmatmul.mubr.f32.gmra.mxu0 %v2081
    %v2219 = vpop.f32.mrf.mxu0
    %v2220 = vadd.f32 0.0, %v2219
    %v2221 = vpop.f32.mrf.mxu0
    %v2222 = vadd.f32 0.0, %v2221
    %2223 = vdwg.mxu0
    %2224 = vset.pattern.permute.xlu0 4
    %2225 = vperm.xlu0 %2224, %v37
    %v2226 = vpop.permute.xlu0 %2225
    %v2228 = vmul.f32 %v2226, %v53
    %v2229 = vmul.f32 %v2226, %v57
    %v2230 = vmul.f32 %v2226, %v61
    %v2231 = vmul.f32 %v2226, %v65
    %v2232 = vadd.f32 %v2228, %v78
    %v2233 = vadd.f32 %v2229, %v82
    %v2234 = vadd.f32 %v2230, %v86
    %v2235 = vadd.f32 %v2231, %v90
    %2236 = vmatprep.subr.mxu0 %v160
    %2237 = vmatpush1.msra.mxu0 %v159
    %2238 = vmatprep.subr.mxu0 %v156
    %2239 = vmatpush1.msra.mxu0 %v155
    %2240 = vmatprep.subr.mxu0 %v152
    %2241 = vmatpush1.msra.mxu0 %v151
    %2242 = vmatprep.subr.mxu0 %v148
    %2243 = vmatpush1.msra.mxu0 %v147
    %2244 = vmatprep.subr.mxu0 %v144
    %2245 = vmatpush1.msra.mxu0 %v143
    %2246 = vmatprep.subr.mxu0 %v140
    %2247 = vmatpush1.msra.mxu0 %v139
    %2248 = vmatprep.subr.mxu0 %v136
    %2249 = vmatpush1.msra.mxu0 %v135
    %2250 = vmatprep.subr.mxu0 %v132
    %2251 = vmatpush1.msra.mxu0 %v131
    %2252 = vmatprep.subr.mxu0 %v128
    %2253 = vmatpush1.msra.mxu0 %v127
    %2254 = vmatprep.subr.mxu0 %v124
    %2255 = vmatpush1.msra.mxu0 %v123
    %2256 = vmatprep.subr.mxu0 %v120
    %2257 = vmatpush1.msra.mxu0 %v119
    %2258 = vmatprep.subr.mxu0 %v116
    %2259 = vmatpush1.msra.mxu0 %v115
    %2260 = vmatprep.subr.mxu0 %v112
    %2261 = vmatpush1.msra.mxu0 %v111
    %2262 = vmatprep.subr.mxu0 %v108
    %2263 = vmatpush1.msra.mxu0 %v107
    %2264 = vmatprep.subr.mxu0 %v104
    %2265 = vmatpush1.msra.mxu0 %v103
    %2266 = vmatprep.subr.mxu0 %v100
    %2267 = vmatpush1.msra.mxu0 %v99
    %2268 = vmatprep.subr.mxu0 0.0
    %2269 = vmatpush2.msra.mxu0 0.0
    %2270 = vmatprep.subr.mxu0 0.0
    %2271 = vmatpush2.msra.mxu0 0.0
    %2272 = vmatprep.subr.mxu0 0.0
    %2273 = vmatpush2.msra.mxu0 0.0
    %2274 = vmatprep.subr.mxu0 0.0
    %2275 = vmatpush2.msra.mxu0 0.0
    %2276 = vmatprep.subr.mxu0 0.0
    %2277 = vmatpush2.msra.mxu0 0.0
    %2278 = vmatprep.subr.mxu0 0.0
    %2279 = vmatpush2.msra.mxu0 0.0
    %2280 = vmatprep.subr.mxu0 0.0
    %2281 = vmatpush2.msra.mxu0 0.0
    %2282 = vmatprep.subr.mxu0 0.0
    %2283 = vmatpush2.msra.mxu0 0.0
    %2284 = vmatprep.subr.mxu0 0.0
    %2285 = vmatpush2.msra.mxu0 0.0
    %2286 = vmatprep.subr.mxu0 0.0
    %2287 = vmatpush2.msra.mxu0 0.0
    %2288 = vmatprep.subr.mxu0 0.0
    %2289 = vmatpush2.msra.mxu0 0.0
    %2290 = vmatprep.subr.mxu0 0.0
    %2291 = vmatpush2.msra.mxu0 0.0
    %2292 = vmatprep.subr.mxu0 0.0
    %2293 = vmatpush2.msra.mxu0 0.0
    %2294 = vmatprep.subr.mxu0 0.0
    %2295 = vmatpush2.msra.mxu0 0.0
    %2296 = vmatprep.subr.mxu0 0.0
    %2297 = vmatpush2.msra.mxu0 0.0
    %2298 = vmatprep.subr.mxu0 0.0
    %2299 = vmatpush2.msra.mxu0 0.0
    %2300 = vmatprep.mubr.f32.mxu0 0.0
    %2301 = vmatmul.mubr.f32.gmra.mxu0 %v1917
    %v2302 = vpop.f32.mrf.mxu0
    %v2303 = vadd.f32 0.0, %v2302
    %v2304 = vpop.f32.mrf.mxu0
    %v2305 = vadd.f32 0.0, %v2304
    %2306 = vdwg.mxu0
    %2307 = vmatprep.subr.mxu0 %v162
    %2308 = vmatpush1.msra.mxu0 %v161
    %2309 = vmatprep.subr.mxu0 %v158
    %2310 = vmatpush1.msra.mxu0 %v157
    %2311 = vmatprep.subr.mxu0 %v154
    %2312 = vmatpush1.msra.mxu0 %v153
    %2313 = vmatprep.subr.mxu0 %v150
    %2314 = vmatpush1.msra.mxu0 %v149
    %2315 = vmatprep.subr.mxu0 %v146
    %2316 = vmatpush1.msra.mxu0 %v145
    %2317 = vmatprep.subr.mxu0 %v142
    %2318 = vmatpush1.msra.mxu0 %v141
    %2319 = vmatprep.subr.mxu0 %v138
    %2320 = vmatpush1.msra.mxu0 %v137
    %2321 = vmatprep.subr.mxu0 %v134
    %2322 = vmatpush1.msra.mxu0 %v133
    %2323 = vmatprep.subr.mxu0 %v130
    %2324 = vmatpush1.msra.mxu0 %v129
    %2325 = vmatprep.subr.mxu0 %v126
    %2326 = vmatpush1.msra.mxu0 %v125
    %2327 = vmatprep.subr.mxu0 %v122
    %2328 = vmatpush1.msra.mxu0 %v121
    %2329 = vmatprep.subr.mxu0 %v118
    %2330 = vmatpush1.msra.mxu0 %v117
    %2331 = vmatprep.subr.mxu0 %v114
    %2332 = vmatpush1.msra.mxu0 %v113
    %2333 = vmatprep.subr.mxu0 %v110
    %2334 = vmatpush1.msra.mxu0 %v109
    %2335 = vmatprep.subr.mxu0 %v106
    %2336 = vmatpush1.msra.mxu0 %v105
    %2337 = vmatprep.subr.mxu0 %v102
    %2338 = vmatpush1.msra.mxu0 %v101
    %2339 = vmatprep.subr.mxu0 0.0
    %2340 = vmatpush2.msra.mxu0 0.0
    %2341 = vmatprep.subr.mxu0 0.0
    %2342 = vmatpush2.msra.mxu0 0.0
    %2343 = vmatprep.subr.mxu0 0.0
    %2344 = vmatpush2.msra.mxu0 0.0
    %2345 = vmatprep.subr.mxu0 0.0
    %2346 = vmatpush2.msra.mxu0 0.0
    %2347 = vmatprep.subr.mxu0 0.0
    %2348 = vmatpush2.msra.mxu0 0.0
    %2349 = vmatprep.subr.mxu0 0.0
    %2350 = vmatpush2.msra.mxu0 0.0
    %2351 = vmatprep.subr.mxu0 0.0
    %2352 = vmatpush2.msra.mxu0 0.0
    %2353 = vmatprep.subr.mxu0 0.0
    %2354 = vmatpush2.msra.mxu0 0.0
    %2355 = vmatprep.subr.mxu0 0.0
    %2356 = vmatpush2.msra.mxu0 0.0
    %2357 = vmatprep.subr.mxu0 0.0
    %2358 = vmatpush2.msra.mxu0 0.0
    %2359 = vmatprep.subr.mxu0 0.0
    %2360 = vmatpush2.msra.mxu0 0.0
    %2361 = vmatprep.subr.mxu0 0.0
    %2362 = vmatpush2.msra.mxu0 0.0
    %2363 = vmatprep.subr.mxu0 0.0
    %2364 = vmatpush2.msra.mxu0 0.0
    %2365 = vmatprep.subr.mxu0 0.0
    %2366 = vmatpush2.msra.mxu0 0.0
    %2367 = vmatprep.subr.mxu0 0.0
    %2368 = vmatpush2.msra.mxu0 0.0
    %2369 = vmatprep.subr.mxu0 0.0
    %2370 = vmatpush2.msra.mxu0 0.0
    %2371 = vmatprep.mubr.f32.mxu0 0.0
    %2372 = vmatmul.mubr.f32.gmra.mxu0 %v1917
    %v2373 = vpop.f32.mrf.mxu0
    %v2374 = vadd.f32 0.0, %v2373
    %v2375 = vpop.f32.mrf.mxu0
    %v2376 = vadd.f32 0.0, %v2375
    %2377 = vdwg.mxu0
    %v2378 = vadd.f32 %v2232, %v2303
    %v2379 = vadd.f32 %v2233, %v2305
    %v2380 = vadd.f32 %v2234, %v2374
    %v2381 = vadd.f32 %v2235, %v2376
    %v2382 = vmul.f32 %v2378, 0.5
    %v2383 = vmul.f32 %v2379, 0.5
    %v2384 = vmul.f32 %v2380, 0.5
    %v2385 = vtanh.pop %v2382
    %v2386 = vtanh.pop %v2383
    %v2387 = vtanh.pop %v2384
    %v2388 = vmul.f32 %v2385, 0.5
    %v2389 = vmul.f32 %v2386, 0.5
    %v2390 = vmul.f32 %v2387, 0.5
    %v2391 = vadd.f32 %v2388, 0.5
    %v2392 = vadd.f32 %v2389, 0.5
    %v2393 = vadd.f32 %v2390, 0.5
    %v2394 = vtanh.pop %v2381
    %v2395 = vmul.f32 %v2392, %v1915
    %v2396 = vmul.f32 %v2391, %v2394
    %v2397 = vadd.f32 %v2395, %v2396
    %v2398 = vtanh.pop %v2397
    %v2399 = vmul.f32 %v2393, %v2398
    %2400 = vmatprep.subr.mxu0 %v388
    %2401 = vmatpush1.msra.mxu0 %v387
    %2402 = vmatprep.subr.mxu0 %v384
    %2403 = vmatpush1.msra.mxu0 %v383
    %2404 = vmatprep.subr.mxu0 %v380
    %2405 = vmatpush1.msra.mxu0 %v379
    %2406 = vmatprep.subr.mxu0 %v376
    %2407 = vmatpush1.msra.mxu0 %v375
    %2408 = vmatprep.subr.mxu0 %v372
    %2409 = vmatpush1.msra.mxu0 %v371
    %2410 = vmatprep.subr.mxu0 %v368
    %2411 = vmatpush1.msra.mxu0 %v367
    %2412 = vmatprep.subr.mxu0 %v364
    %2413 = vmatpush1.msra.mxu0 %v363
    %2414 = vmatprep.subr.mxu0 %v360
    %2415 = vmatpush1.msra.mxu0 %v359
    %2416 = vmatprep.subr.mxu0 %v356
    %2417 = vmatpush1.msra.mxu0 %v355
    %2418 = vmatprep.subr.mxu0 %v352
    %2419 = vmatpush1.msra.mxu0 %v351
    %2420 = vmatprep.subr.mxu0 %v348
    %2421 = vmatpush1.msra.mxu0 %v347
    %2422 = vmatprep.subr.mxu0 %v344
    %2423 = vmatpush1.msra.mxu0 %v343
    %2424 = vmatprep.subr.mxu0 %v340
    %2425 = vmatpush1.msra.mxu0 %v339
    %2426 = vmatprep.subr.mxu0 %v336
    %2427 = vmatpush1.msra.mxu0 %v335
    %2428 = vmatprep.subr.mxu0 %v332
    %2429 = vmatpush1.msra.mxu0 %v331
    %2430 = vmatprep.subr.mxu0 %v328
    %2431 = vmatpush1.msra.mxu0 %v327
    %2432 = vmatprep.subr.mxu0 0.0
    %2433 = vmatpush2.msra.mxu0 0.0
    %2434 = vmatprep.subr.mxu0 0.0
    %2435 = vmatpush2.msra.mxu0 0.0
    %2436 = vmatprep.subr.mxu0 0.0
    %2437 = vmatpush2.msra.mxu0 0.0
    %2438 = vmatprep.subr.mxu0 0.0
    %2439 = vmatpush2.msra.mxu0 0.0
    %2440 = vmatprep.subr.mxu0 0.0
    %2441 = vmatpush2.msra.mxu0 0.0
    %2442 = vmatprep.subr.mxu0 0.0
    %2443 = vmatpush2.msra.mxu0 0.0
    %2444 = vmatprep.subr.mxu0 0.0
    %2445 = vmatpush2.msra.mxu0 0.0
    %2446 = vmatprep.subr.mxu0 0.0
    %2447 = vmatpush2.msra.mxu0 0.0
    %2448 = vmatprep.subr.mxu0 0.0
    %2449 = vmatpush2.msra.mxu0 0.0
    %2450 = vmatprep.subr.mxu0 0.0
    %2451 = vmatpush2.msra.mxu0 0.0
    %2452 = vmatprep.subr.mxu0 0.0
    %2453 = vmatpush2.msra.mxu0 0.0
    %2454 = vmatprep.subr.mxu0 0.0
    %2455 = vmatpush2.msra.mxu0 0.0
    %2456 = vmatprep.subr.mxu0 0.0
    %2457 = vmatpush2.msra.mxu0 0.0
    %2458 = vmatprep.subr.mxu0 0.0
    %2459 = vmatpush2.msra.mxu0 0.0
    %2460 = vmatprep.subr.mxu0 0.0
    %2461 = vmatpush2.msra.mxu0 0.0
    %2462 = vmatprep.subr.mxu0 0.0
    %2463 = vmatpush2.msra.mxu0 0.0
    %2464 = vmatprep.mubr.f32.mxu0 0.0
    %2465 = vmatmul.mubr.f32.gmra.mxu0 %v2399
    %v2466 = vpop.f32.mrf.mxu0
    %v2467 = vadd.f32 %v2149, %v2466
    %v2468 = vpop.f32.mrf.mxu0
    %v2469 = vadd.f32 %v2151, %v2468
    %2470 = vdwg.mxu0
    %2471 = vmatprep.subr.mxu0 %v390
    %2472 = vmatpush1.msra.mxu0 %v389
    %2473 = vmatprep.subr.mxu0 %v386
    %2474 = vmatpush1.msra.mxu0 %v385
    %2475 = vmatprep.subr.mxu0 %v382
    %2476 = vmatpush1.msra.mxu0 %v381
    %2477 = vmatprep.subr.mxu0 %v378
    %2478 = vmatpush1.msra.mxu0 %v377
    %2479 = vmatprep.subr.mxu0 %v374
    %2480 = vmatpush1.msra.mxu0 %v373
    %2481 = vmatprep.subr.mxu0 %v370
    %2482 = vmatpush1.msra.mxu0 %v369
    %2483 = vmatprep.subr.mxu0 %v366
    %2484 = vmatpush1.msra.mxu0 %v365
    %2485 = vmatprep.subr.mxu0 %v362
    %2486 = vmatpush1.msra.mxu0 %v361
    %2487 = vmatprep.subr.mxu0 %v358
    %2488 = vmatpush1.msra.mxu0 %v357
    %2489 = vmatprep.subr.mxu0 %v354
    %2490 = vmatpush1.msra.mxu0 %v353
    %2491 = vmatprep.subr.mxu0 %v350
    %2492 = vmatpush1.msra.mxu0 %v349
    %2493 = vmatprep.subr.mxu0 %v346
    %2494 = vmatpush1.msra.mxu0 %v345
    %2495 = vmatprep.subr.mxu0 %v342
    %2496 = vmatpush1.msra.mxu0 %v341
    %2497 = vmatprep.subr.mxu0 %v338
    %2498 = vmatpush1.msra.mxu0 %v337
    %2499 = vmatprep.subr.mxu0 %v334
    %2500 = vmatpush1.msra.mxu0 %v333
    %2501 = vmatprep.subr.mxu0 %v330
    %2502 = vmatpush1.msra.mxu0 %v329
    %2503 = vmatprep.subr.mxu0 0.0
    %2504 = vmatpush2.msra.mxu0 0.0
    %2505 = vmatprep.subr.mxu0 0.0
    %2506 = vmatpush2.msra.mxu0 0.0
    %2507 = vmatprep.subr.mxu0 0.0
    %2508 = vmatpush2.msra.mxu0 0.0
    %2509 = vmatprep.subr.mxu0 0.0
    %2510 = vmatpush2.msra.mxu0 0.0
    %2511 = vmatprep.subr.mxu0 0.0
    %2512 = vmatpush2.msra.mxu0 0.0
    %2513 = vmatprep.subr.mxu0 0.0
    %2514 = vmatpush2.msra.mxu0 0.0
    %2515 = vmatprep.subr.mxu0 0.0
    %2516 = vmatpush2.msra.mxu0 0.0
    %2517 = vmatprep.subr.mxu0 0.0
    %2518 = vmatpush2.msra.mxu0 0.0
    %2519 = vmatprep.subr.mxu0 0.0
    %2520 = vmatpush2.msra.mxu0 0.0
    %2521 = vmatprep.subr.mxu0 0.0
    %2522 = vmatpush2.msra.mxu0 0.0
    %2523 = vmatprep.subr.mxu0 0.0
    %2524 = vmatpush2.msra.mxu0 0.0
    %2525 = vmatprep.subr.mxu0 0.0
    %2526 = vmatpush2.msra.mxu0 0.0
    %2527 = vmatprep.subr.mxu0 0.0
    %2528 = vmatpush2.msra.mxu0 0.0
    %2529 = vmatprep.subr.mxu0 0.0
    %2530 = vmatpush2.msra.mxu0 0.0
    %2531 = vmatprep.subr.mxu0 0.0
    %2532 = vmatpush2.msra.mxu0 0.0
    %2533 = vmatprep.subr.mxu0 0.0
    %2534 = vmatpush2.msra.mxu0 0.0
    %2535 = vmatprep.mubr.f32.mxu0 0.0
    %2536 = vmatmul.mubr.f32.gmra.mxu0 %v2399
    %v2537 = vpop.f32.mrf.mxu0
    %v2538 = vadd.f32 %v2220, %v2537
    %v2539 = vpop.f32.mrf.mxu0
    %v2540 = vadd.f32 %v2222, %v2539
    %2541 = vdwg.mxu0
    %v2542 = vadd.f32 %v2467, %v395
    %v2543 = vadd.f32 %v2469, %v399
    %v2544 = vadd.f32 %v2538, %v403
    %v2545 = vadd.f32 %v2540, %v407
    %v2546 = vmul.f32 %v2542, 0.5
    %v2547 = vmul.f32 %v2543, 0.5
    %v2548 = vmul.f32 %v2544, 0.5
    %v2549 = vtanh.pop %v2546
    %v2550 = vtanh.pop %v2547
    %v2551 = vtanh.pop %v2548
    %v2552 = vmul.f32 %v2549, 0.5
    %v2553 = vmul.f32 %v2550, 0.5
    %v2554 = vmul.f32 %v2551, 0.5
    %v2555 = vadd.f32 %v2552, 0.5
    %v2556 = vadd.f32 %v2553, 0.5
    %v2557 = vadd.f32 %v2554, 0.5
    %v2558 = vtanh.pop %v2545
    %v2559 = vmul.f32 %v2556, %v2079
    %v2560 = vmul.f32 %v2555, %v2558
    %v2561 = vadd.f32 %v2559, %v2560
    %v2562 = vtanh.pop %v2561
    %v2563 = vmul.f32 %v2557, %v2562
    %2564 = vmatprep.subr.mxu0 %v633
    %2565 = vmatpush1.msra.mxu0 %v632
    %2566 = vmatprep.subr.mxu0 %v629
    %2567 = vmatpush1.msra.mxu0 %v628
    %2568 = vmatprep.subr.mxu0 %v625
    %2569 = vmatpush1.msra.mxu0 %v624
    %2570 = vmatprep.subr.mxu0 %v621
    %2571 = vmatpush1.msra.mxu0 %v620
    %2572 = vmatprep.subr.mxu0 %v617
    %2573 = vmatpush1.msra.mxu0 %v616
    %2574 = vmatprep.subr.mxu0 %v613
    %2575 = vmatpush1.msra.mxu0 %v612
    %2576 = vmatprep.subr.mxu0 %v609
    %2577 = vmatpush1.msra.mxu0 %v608
    %2578 = vmatprep.subr.mxu0 %v605
    %2579 = vmatpush1.msra.mxu0 %v604
    %2580 = vmatprep.subr.mxu0 %v601
    %2581 = vmatpush1.msra.mxu0 %v600
    %2582 = vmatprep.subr.mxu0 %v597
    %2583 = vmatpush1.msra.mxu0 %v596
    %2584 = vmatprep.subr.mxu0 %v593
    %2585 = vmatpush1.msra.mxu0 %v592
    %2586 = vmatprep.subr.mxu0 %v589
    %2587 = vmatpush1.msra.mxu0 %v588
    %2588 = vmatprep.subr.mxu0 %v585
    %2589 = vmatpush1.msra.mxu0 %v584
    %2590 = vmatprep.subr.mxu0 %v581
    %2591 = vmatpush1.msra.mxu0 %v580
    %2592 = vmatprep.subr.mxu0 %v577
    %2593 = vmatpush1.msra.mxu0 %v576
    %2594 = vmatprep.subr.mxu0 %v573
    %2595 = vmatpush1.msra.mxu0 %v572
    %2596 = vmatprep.subr.mxu0 0.0
    %2597 = vmatpush2.msra.mxu0 0.0
    %2598 = vmatprep.subr.mxu0 0.0
    %2599 = vmatpush2.msra.mxu0 0.0
    %2600 = vmatprep.subr.mxu0 0.0
    %2601 = vmatpush2.msra.mxu0 0.0
    %2602 = vmatprep.subr.mxu0 0.0
    %2603 = vmatpush2.msra.mxu0 0.0
    %2604 = vmatprep.subr.mxu0 0.0
    %2605 = vmatpush2.msra.mxu0 0.0
    %2606 = vmatprep.subr.mxu0 0.0
    %2607 = vmatpush2.msra.mxu0 0.0
    %2608 = vmatprep.subr.mxu0 0.0
    %2609 = vmatpush2.msra.mxu0 0.0
    %2610 = vmatprep.subr.mxu0 0.0
    %2611 = vmatpush2.msra.mxu0 0.0
    %2612 = vmatprep.subr.mxu0 0.0
    %2613 = vmatpush2.msra.mxu0 0.0
    %2614 = vmatprep.subr.mxu0 0.0
    %2615 = vmatpush2.msra.mxu0 0.0
    %2616 = vmatprep.subr.mxu0 0.0
    %2617 = vmatpush2.msra.mxu0 0.0
    %2618 = vmatprep.subr.mxu0 0.0
    %2619 = vmatpush2.msra.mxu0 0.0
    %2620 = vmatprep.subr.mxu0 0.0
    %2621 = vmatpush2.msra.mxu0 0.0
    %2622 = vmatprep.subr.mxu0 0.0
    %2623 = vmatpush2.msra.mxu0 0.0
    %2624 = vmatprep.subr.mxu0 0.0
    %2625 = vmatpush2.msra.mxu0 0.0
    %2626 = vmatprep.subr.mxu0 0.0
    %2627 = vmatpush2.msra.mxu0 0.0
    %2628 = vmatprep.mubr.f32.mxu0 0.0
    %2629 = vmatmul.mubr.f32.gmra.mxu0 %v2563
    %v2630 = vpop.f32.mrf.mxu0
    %v2631 = vadd.f32 0.0, %v2630
    %v2632 = vpop.f32.mrf.mxu0
    %v2633 = vadd.f32 0.0, %v2632
    %2634 = vdwg.mxu0
    %2635 = vmatprep.subr.mxu0 %v635
    %2636 = vmatpush1.msra.mxu0 %v634
    %2637 = vmatprep.subr.mxu0 %v631
    %2638 = vmatpush1.msra.mxu0 %v630
    %2639 = vmatprep.subr.mxu0 %v627
    %2640 = vmatpush1.msra.mxu0 %v626
    %2641 = vmatprep.subr.mxu0 %v623
    %2642 = vmatpush1.msra.mxu0 %v622
    %2643 = vmatprep.subr.mxu0 %v619
    %2644 = vmatpush1.msra.mxu0 %v618
    %2645 = vmatprep.subr.mxu0 %v615
    %2646 = vmatpush1.msra.mxu0 %v614
    %2647 = vmatprep.subr.mxu0 %v611
    %2648 = vmatpush1.msra.mxu0 %v610
    %2649 = vmatprep.subr.mxu0 %v607
    %2650 = vmatpush1.msra.mxu0 %v606
    %2651 = vmatprep.subr.mxu0 %v603
    %2652 = vmatpush1.msra.mxu0 %v602
    %2653 = vmatprep.subr.mxu0 %v599
    %2654 = vmatpush1.msra.mxu0 %v598
    %2655 = vmatprep.subr.mxu0 %v595
    %2656 = vmatpush1.msra.mxu0 %v594
    %2657 = vmatprep.subr.mxu0 %v591
    %2658 = vmatpush1.msra.mxu0 %v590
    %2659 = vmatprep.subr.mxu0 %v587
    %2660 = vmatpush1.msra.mxu0 %v586
    %2661 = vmatprep.subr.mxu0 %v583
    %2662 = vmatpush1.msra.mxu0 %v582
    %2663 = vmatprep.subr.mxu0 %v579
    %2664 = vmatpush1.msra.mxu0 %v578
    %2665 = vmatprep.subr.mxu0 %v575
    %2666 = vmatpush1.msra.mxu0 %v574
    %2667 = vmatprep.subr.mxu0 0.0
    %2668 = vmatpush2.msra.mxu0 0.0
    %2669 = vmatprep.subr.mxu0 0.0
    %2670 = vmatpush2.msra.mxu0 0.0
    %2671 = vmatprep.subr.mxu0 0.0
    %2672 = vmatpush2.msra.mxu0 0.0
    %2673 = vmatprep.subr.mxu0 0.0
    %2674 = vmatpush2.msra.mxu0 0.0
    %2675 = vmatprep.subr.mxu0 0.0
    %2676 = vmatpush2.msra.mxu0 0.0
    %2677 = vmatprep.subr.mxu0 0.0
    %2678 = vmatpush2.msra.mxu0 0.0
    %2679 = vmatprep.subr.mxu0 0.0
    %2680 = vmatpush2.msra.mxu0 0.0
    %2681 = vmatprep.subr.mxu0 0.0
    %2682 = vmatpush2.msra.mxu0 0.0
    %2683 = vmatprep.subr.mxu0 0.0
    %2684 = vmatpush2.msra.mxu0 0.0
    %2685 = vmatprep.subr.mxu0 0.0
    %2686 = vmatpush2.msra.mxu0 0.0
    %2687 = vmatprep.subr.mxu0 0.0
    %2688 = vmatpush2.msra.mxu0 0.0
    %2689 = vmatprep.subr.mxu0 0.0
    %2690 = vmatpush2.msra.mxu0 0.0
    %2691 = vmatprep.subr.mxu0 0.0
    %2692 = vmatpush2.msra.mxu0 0.0
    %2693 = vmatprep.subr.mxu0 0.0
    %2694 = vmatpush2.msra.mxu0 0.0
    %2695 = vmatprep.subr.mxu0 0.0
    %2696 = vmatpush2.msra.mxu0 0.0
    %2697 = vmatprep.subr.mxu0 0.0
    %2698 = vmatpush2.msra.mxu0 0.0
    %2699 = vmatprep.mubr.f32.mxu0 0.0
    %2700 = vmatmul.mubr.f32.gmra.mxu0 %v2563
    %v2701 = vpop.f32.mrf.mxu0
    %v2702 = vadd.f32 0.0, %v2701
    %v2703 = vpop.f32.mrf.mxu0
    %v2704 = vadd.f32 0.0, %v2703
    %2705 = vdwg.mxu0
    %2706 = vset.pattern.permute.xlu0 5
    %2707 = vperm.xlu0 %2706, %v37
    %v2708 = vpop.permute.xlu0 %2707
    %v2710 = vmul.f32 %v2708, %v53
    %v2711 = vmul.f32 %v2708, %v57
    %v2712 = vmul.f32 %v2708, %v61
    %v2713 = vmul.f32 %v2708, %v65
    %v2714 = vadd.f32 %v2710, %v78
    %v2715 = vadd.f32 %v2711, %v82
    %v2716 = vadd.f32 %v2712, %v86
    %v2717 = vadd.f32 %v2713, %v90
    %2718 = vmatprep.subr.mxu0 %v160
    %2719 = vmatpush1.msra.mxu0 %v159
    %2720 = vmatprep.subr.mxu0 %v156
    %2721 = vmatpush1.msra.mxu0 %v155
    %2722 = vmatprep.subr.mxu0 %v152
    %2723 = vmatpush1.msra.mxu0 %v151
    %2724 = vmatprep.subr.mxu0 %v148
    %2725 = vmatpush1.msra.mxu0 %v147
    %2726 = vmatprep.subr.mxu0 %v144
    %2727 = vmatpush1.msra.mxu0 %v143
    %2728 = vmatprep.subr.mxu0 %v140
    %2729 = vmatpush1.msra.mxu0 %v139
    %2730 = vmatprep.subr.mxu0 %v136
    %2731 = vmatpush1.msra.mxu0 %v135
    %2732 = vmatprep.subr.mxu0 %v132
    %2733 = vmatpush1.msra.mxu0 %v131
    %2734 = vmatprep.subr.mxu0 %v128
    %2735 = vmatpush1.msra.mxu0 %v127
    %2736 = vmatprep.subr.mxu0 %v124
    %2737 = vmatpush1.msra.mxu0 %v123
    %2738 = vmatprep.subr.mxu0 %v120
    %2739 = vmatpush1.msra.mxu0 %v119
    %2740 = vmatprep.subr.mxu0 %v116
    %2741 = vmatpush1.msra.mxu0 %v115
    %2742 = vmatprep.subr.mxu0 %v112
    %2743 = vmatpush1.msra.mxu0 %v111
    %2744 = vmatprep.subr.mxu0 %v108
    %2745 = vmatpush1.msra.mxu0 %v107
    %2746 = vmatprep.subr.mxu0 %v104
    %2747 = vmatpush1.msra.mxu0 %v103
    %2748 = vmatprep.subr.mxu0 %v100
    %2749 = vmatpush1.msra.mxu0 %v99
    %2750 = vmatprep.subr.mxu0 0.0
    %2751 = vmatpush2.msra.mxu0 0.0
    %2752 = vmatprep.subr.mxu0 0.0
    %2753 = vmatpush2.msra.mxu0 0.0
    %2754 = vmatprep.subr.mxu0 0.0
    %2755 = vmatpush2.msra.mxu0 0.0
    %2756 = vmatprep.subr.mxu0 0.0
    %2757 = vmatpush2.msra.mxu0 0.0
    %2758 = vmatprep.subr.mxu0 0.0
    %2759 = vmatpush2.msra.mxu0 0.0
    %2760 = vmatprep.subr.mxu0 0.0
    %2761 = vmatpush2.msra.mxu0 0.0
    %2762 = vmatprep.subr.mxu0 0.0
    %2763 = vmatpush2.msra.mxu0 0.0
    %2764 = vmatprep.subr.mxu0 0.0
    %2765 = vmatpush2.msra.mxu0 0.0
    %2766 = vmatprep.subr.mxu0 0.0
    %2767 = vmatpush2.msra.mxu0 0.0
    %2768 = vmatprep.subr.mxu0 0.0
    %2769 = vmatpush2.msra.mxu0 0.0
    %2770 = vmatprep.subr.mxu0 0.0
    %2771 = vmatpush2.msra.mxu0 0.0
    %2772 = vmatprep.subr.mxu0 0.0
    %2773 = vmatpush2.msra.mxu0 0.0
    %2774 = vmatprep.subr.mxu0 0.0
    %2775 = vmatpush2.msra.mxu0 0.0
    %2776 = vmatprep.subr.mxu0 0.0
    %2777 = vmatpush2.msra.mxu0 0.0
    %2778 = vmatprep.subr.mxu0 0.0
    %2779 = vmatpush2.msra.mxu0 0.0
    %2780 = vmatprep.subr.mxu0 0.0
    %2781 = vmatpush2.msra.mxu0 0.0
    %2782 = vmatprep.mubr.f32.mxu0 0.0
    %2783 = vmatmul.mubr.f32.gmra.mxu0 %v2399
    %v2784 = vpop.f32.mrf.mxu0
    %v2785 = vadd.f32 0.0, %v2784
    %v2786 = vpop.f32.mrf.mxu0
    %v2787 = vadd.f32 0.0, %v2786
    %2788 = vdwg.mxu0
    %2789 = vmatprep.subr.mxu0 %v162
    %2790 = vmatpush1.msra.mxu0 %v161
    %2791 = vmatprep.subr.mxu0 %v158
    %2792 = vmatpush1.msra.mxu0 %v157
    %2793 = vmatprep.subr.mxu0 %v154
    %2794 = vmatpush1.msra.mxu0 %v153
    %2795 = vmatprep.subr.mxu0 %v150
    %2796 = vmatpush1.msra.mxu0 %v149
    %2797 = vmatprep.subr.mxu0 %v146
    %2798 = vmatpush1.msra.mxu0 %v145
    %2799 = vmatprep.subr.mxu0 %v142
    %2800 = vmatpush1.msra.mxu0 %v141
    %2801 = vmatprep.subr.mxu0 %v138
    %2802 = vmatpush1.msra.mxu0 %v137
    %2803 = vmatprep.subr.mxu0 %v134
    %2804 = vmatpush1.msra.mxu0 %v133
    %2805 = vmatprep.subr.mxu0 %v130
    %2806 = vmatpush1.msra.mxu0 %v129
    %2807 = vmatprep.subr.mxu0 %v126
    %2808 = vmatpush1.msra.mxu0 %v125
    %2809 = vmatprep.subr.mxu0 %v122
    %2810 = vmatpush1.msra.mxu0 %v121
    %2811 = vmatprep.subr.mxu0 %v118
    %2812 = vmatpush1.msra.mxu0 %v117
    %2813 = vmatprep.subr.mxu0 %v114
    %2814 = vmatpush1.msra.mxu0 %v113
    %2815 = vmatprep.subr.mxu0 %v110
    %2816 = vmatpush1.msra.mxu0 %v109
    %2817 = vmatprep.subr.mxu0 %v106
    %2818 = vmatpush1.msra.mxu0 %v105
    %2819 = vmatprep.subr.mxu0 %v102
    %2820 = vmatpush1.msra.mxu0 %v101
    %2821 = vmatprep.subr.mxu0 0.0
    %2822 = vmatpush2.msra.mxu0 0.0
    %2823 = vmatprep.subr.mxu0 0.0
    %2824 = vmatpush2.msra.mxu0 0.0
    %2825 = vmatprep.subr.mxu0 0.0
    %2826 = vmatpush2.msra.mxu0 0.0
    %2827 = vmatprep.subr.mxu0 0.0
    %2828 = vmatpush2.msra.mxu0 0.0
    %2829 = vmatprep.subr.mxu0 0.0
    %2830 = vmatpush2.msra.mxu0 0.0
    %2831 = vmatprep.subr.mxu0 0.0
    %2832 = vmatpush2.msra.mxu0 0.0
    %2833 = vmatprep.subr.mxu0 0.0
    %2834 = vmatpush2.msra.mxu0 0.0
    %2835 = vmatprep.subr.mxu0 0.0
    %2836 = vmatpush2.msra.mxu0 0.0
    %2837 = vmatprep.subr.mxu0 0.0
    %2838 = vmatpush2.msra.mxu0 0.0
    %2839 = vmatprep.subr.mxu0 0.0
    %2840 = vmatpush2.msra.mxu0 0.0
    %2841 = vmatprep.subr.mxu0 0.0
    %2842 = vmatpush2.msra.mxu0 0.0
    %2843 = vmatprep.subr.mxu0 0.0
    %2844 = vmatpush2.msra.mxu0 0.0
    %2845 = vmatprep.subr.mxu0 0.0
    %2846 = vmatpush2.msra.mxu0 0.0
    %2847 = vmatprep.subr.mxu0 0.0
    %2848 = vmatpush2.msra.mxu0 0.0
    %2849 = vmatprep.subr.mxu0 0.0
    %2850 = vmatpush2.msra.mxu0 0.0
    %2851 = vmatprep.subr.mxu0 0.0
    %2852 = vmatpush2.msra.mxu0 0.0
    %2853 = vmatprep.mubr.f32.mxu0 0.0
    %2854 = vmatmul.mubr.f32.gmra.mxu0 %v2399
    %v2855 = vpop.f32.mrf.mxu0
    %v2856 = vadd.f32 0.0, %v2855
    %v2857 = vpop.f32.mrf.mxu0
    %v2858 = vadd.f32 0.0, %v2857
    %2859 = vdwg.mxu0
    %v2860 = vadd.f32 %v2714, %v2785
    %v2861 = vadd.f32 %v2715, %v2787
    %v2862 = vadd.f32 %v2716, %v2856
    %v2863 = vadd.f32 %v2717, %v2858
    %v2864 = vmul.f32 %v2860, 0.5
    %v2865 = vmul.f32 %v2861, 0.5
    %v2866 = vmul.f32 %v2862, 0.5
    %v2867 = vtanh.pop %v2864
    %v2868 = vtanh.pop %v2865
    %v2869 = vtanh.pop %v2866
    %v2870 = vmul.f32 %v2867, 0.5
    %v2871 = vmul.f32 %v2868, 0.5
    %v2872 = vmul.f32 %v2869, 0.5
    %v2873 = vadd.f32 %v2870, 0.5
    %v2874 = vadd.f32 %v2871, 0.5
    %v2875 = vadd.f32 %v2872, 0.5
    %v2876 = vtanh.pop %v2863
    %v2877 = vmul.f32 %v2874, %v2397
    %v2878 = vmul.f32 %v2873, %v2876
    %v2879 = vadd.f32 %v2877, %v2878
    %v2880 = vtanh.pop %v2879
    %v2881 = vmul.f32 %v2875, %v2880
    %2882 = vmatprep.subr.mxu0 %v388
    %2883 = vmatpush1.msra.mxu0 %v387
    %2884 = vmatprep.subr.mxu0 %v384
    %2885 = vmatpush1.msra.mxu0 %v383
    %2886 = vmatprep.subr.mxu0 %v380
    %2887 = vmatpush1.msra.mxu0 %v379
    %2888 = vmatprep.subr.mxu0 %v376
    %2889 = vmatpush1.msra.mxu0 %v375
    %2890 = vmatprep.subr.mxu0 %v372
    %2891 = vmatpush1.msra.mxu0 %v371
    %2892 = vmatprep.subr.mxu0 %v368
    %2893 = vmatpush1.msra.mxu0 %v367
    %2894 = vmatprep.subr.mxu0 %v364
    %2895 = vmatpush1.msra.mxu0 %v363
    %2896 = vmatprep.subr.mxu0 %v360
    %2897 = vmatpush1.msra.mxu0 %v359
    %2898 = vmatprep.subr.mxu0 %v356
    %2899 = vmatpush1.msra.mxu0 %v355
    %2900 = vmatprep.subr.mxu0 %v352
    %2901 = vmatpush1.msra.mxu0 %v351
    %2902 = vmatprep.subr.mxu0 %v348
    %2903 = vmatpush1.msra.mxu0 %v347
    %2904 = vmatprep.subr.mxu0 %v344
    %2905 = vmatpush1.msra.mxu0 %v343
    %2906 = vmatprep.subr.mxu0 %v340
    %2907 = vmatpush1.msra.mxu0 %v339
    %2908 = vmatprep.subr.mxu0 %v336
    %2909 = vmatpush1.msra.mxu0 %v335
    %2910 = vmatprep.subr.mxu0 %v332
    %2911 = vmatpush1.msra.mxu0 %v331
    %2912 = vmatprep.subr.mxu0 %v328
    %2913 = vmatpush1.msra.mxu0 %v327
    %2914 = vmatprep.subr.mxu0 0.0
    %2915 = vmatpush2.msra.mxu0 0.0
    %2916 = vmatprep.subr.mxu0 0.0
    %2917 = vmatpush2.msra.mxu0 0.0
    %2918 = vmatprep.subr.mxu0 0.0
    %2919 = vmatpush2.msra.mxu0 0.0
    %2920 = vmatprep.subr.mxu0 0.0
    %2921 = vmatpush2.msra.mxu0 0.0
    %2922 = vmatprep.subr.mxu0 0.0
    %2923 = vmatpush2.msra.mxu0 0.0
    %2924 = vmatprep.subr.mxu0 0.0
    %2925 = vmatpush2.msra.mxu0 0.0
    %2926 = vmatprep.subr.mxu0 0.0
    %2927 = vmatpush2.msra.mxu0 0.0
    %2928 = vmatprep.subr.mxu0 0.0
    %2929 = vmatpush2.msra.mxu0 0.0
    %2930 = vmatprep.subr.mxu0 0.0
    %2931 = vmatpush2.msra.mxu0 0.0
    %2932 = vmatprep.subr.mxu0 0.0
    %2933 = vmatpush2.msra.mxu0 0.0
    %2934 = vmatprep.subr.mxu0 0.0
    %2935 = vmatpush2.msra.mxu0 0.0
    %2936 = vmatprep.subr.mxu0 0.0
    %2937 = vmatpush2.msra.mxu0 0.0
    %2938 = vmatprep.subr.mxu0 0.0
    %2939 = vmatpush2.msra.mxu0 0.0
    %2940 = vmatprep.subr.mxu0 0.0
    %2941 = vmatpush2.msra.mxu0 0.0
    %2942 = vmatprep.subr.mxu0 0.0
    %2943 = vmatpush2.msra.mxu0 0.0
    %2944 = vmatprep.subr.mxu0 0.0
    %2945 = vmatpush2.msra.mxu0 0.0
    %2946 = vmatprep.mubr.f32.mxu0 0.0
    %2947 = vmatmul.mubr.f32.gmra.mxu0 %v2881
    %v2948 = vpop.f32.mrf.mxu0
    %v2949 = vadd.f32 %v2631, %v2948
    %v2950 = vpop.f32.mrf.mxu0
    %v2951 = vadd.f32 %v2633, %v2950
    %2952 = vdwg.mxu0
    %2953 = vmatprep.subr.mxu0 %v390
    %2954 = vmatpush1.msra.mxu0 %v389
    %2955 = vmatprep.subr.mxu0 %v386
    %2956 = vmatpush1.msra.mxu0 %v385
    %2957 = vmatprep.subr.mxu0 %v382
    %2958 = vmatpush1.msra.mxu0 %v381
    %2959 = vmatprep.subr.mxu0 %v378
    %2960 = vmatpush1.msra.mxu0 %v377
    %2961 = vmatprep.subr.mxu0 %v374
    %2962 = vmatpush1.msra.mxu0 %v373
    %2963 = vmatprep.subr.mxu0 %v370
    %2964 = vmatpush1.msra.mxu0 %v369
    %2965 = vmatprep.subr.mxu0 %v366
    %2966 = vmatpush1.msra.mxu0 %v365
    %2967 = vmatprep.subr.mxu0 %v362
    %2968 = vmatpush1.msra.mxu0 %v361
    %2969 = vmatprep.subr.mxu0 %v358
    %2970 = vmatpush1.msra.mxu0 %v357
    %2971 = vmatprep.subr.mxu0 %v354
    %2972 = vmatpush1.msra.mxu0 %v353
    %2973 = vmatprep.subr.mxu0 %v350
    %2974 = vmatpush1.msra.mxu0 %v349
    %2975 = vmatprep.subr.mxu0 %v346
    %2976 = vmatpush1.msra.mxu0 %v345
    %2977 = vmatprep.subr.mxu0 %v342
    %2978 = vmatpush1.msra.mxu0 %v341
    %2979 = vmatprep.subr.mxu0 %v338
    %2980 = vmatpush1.msra.mxu0 %v337
    %2981 = vmatprep.subr.mxu0 %v334
    %2982 = vmatpush1.msra.mxu0 %v333
    %2983 = vmatprep.subr.mxu0 %v330
    %2984 = vmatpush1.msra.mxu0 %v329
    %2985 = vmatprep.subr.mxu0 0.0
    %2986 = vmatpush2.msra.mxu0 0.0
    %2987 = vmatprep.subr.mxu0 0.0
    %2988 = vmatpush2.msra.mxu0 0.0
    %2989 = vmatprep.subr.mxu0 0.0
    %2990 = vmatpush2.msra.mxu0 0.0
    %2991 = vmatprep.subr.mxu0 0.0
    %2992 = vmatpush2.msra.mxu0 0.0
    %2993 = vmatprep.subr.mxu0 0.0
    %2994 = vmatpush2.msra.mxu0 0.0
    %2995 = vmatprep.subr.mxu0 0.0
    %2996 = vmatpush2.msra.mxu0 0.0
    %2997 = vmatprep.subr.mxu0 0.0
    %2998 = vmatpush2.msra.mxu0 0.0
    %2999 = vmatprep.subr.mxu0 0.0
    %3000 = vmatpush2.msra.mxu0 0.0
    %3001 = vmatprep.subr.mxu0 0.0
    %3002 = vmatpush2.msra.mxu0 0.0
    %3003 = vmatprep.subr.mxu0 0.0
    %3004 = vmatpush2.msra.mxu0 0.0
    %3005 = vmatprep.subr.mxu0 0.0
    %3006 = vmatpush2.msra.mxu0 0.0
    %3007 = vmatprep.subr.mxu0 0.0
    %3008 = vmatpush2.msra.mxu0 0.0
    %3009 = vmatprep.subr.mxu0 0.0
    %3010 = vmatpush2.msra.mxu0 0.0
    %3011 = vmatprep.subr.mxu0 0.0
    %3012 = vmatpush2.msra.mxu0 0.0
    %3013 = vmatprep.subr.mxu0 0.0
    %3014 = vmatpush2.msra.mxu0 0.0
    %3015 = vmatprep.subr.mxu0 0.0
    %3016 = vmatpush2.msra.mxu0 0.0
    %3017 = vmatprep.mubr.f32.mxu0 0.0
    %3018 = vmatmul.mubr.f32.gmra.mxu0 %v2881
    %v3019 = vpop.f32.mrf.mxu0
    %v3020 = vadd.f32 %v2702, %v3019
    %v3021 = vpop.f32.mrf.mxu0
    %v3022 = vadd.f32 %v2704, %v3021
    %3023 = vdwg.mxu0
    %v3024 = vadd.f32 %v2949, %v395
    %v3025 = vadd.f32 %v2951, %v399
    %v3026 = vadd.f32 %v3020, %v403
    %v3027 = vadd.f32 %v3022, %v407
    %v3028 = vmul.f32 %v3024, 0.5
    %v3029 = vmul.f32 %v3025, 0.5
    %v3030 = vmul.f32 %v3026, 0.5
    %v3031 = vtanh.pop %v3028
    %v3032 = vtanh.pop %v3029
    %v3033 = vtanh.pop %v3030
    %v3034 = vmul.f32 %v3031, 0.5
    %v3035 = vmul.f32 %v3032, 0.5
    %v3036 = vmul.f32 %v3033, 0.5
    %v3037 = vadd.f32 %v3034, 0.5
    %v3038 = vadd.f32 %v3035, 0.5
    %v3039 = vadd.f32 %v3036, 0.5
    %v3040 = vtanh.pop %v3027
    %v3041 = vmul.f32 %v3038, %v2561
    %v3042 = vmul.f32 %v3037, %v3040
    %v3043 = vadd.f32 %v3041, %v3042
    %v3044 = vtanh.pop %v3043
    %v3045 = vmul.f32 %v3039, %v3044
    %3046 = vmatprep.subr.mxu0 %v633
    %3047 = vmatpush1.msra.mxu0 %v632
    %3048 = vmatprep.subr.mxu0 %v629
    %3049 = vmatpush1.msra.mxu0 %v628
    %3050 = vmatprep.subr.mxu0 %v625
    %3051 = vmatpush1.msra.mxu0 %v624
    %3052 = vmatprep.subr.mxu0 %v621
    %3053 = vmatpush1.msra.mxu0 %v620
    %3054 = vmatprep.subr.mxu0 %v617
    %3055 = vmatpush1.msra.mxu0 %v616
    %3056 = vmatprep.subr.mxu0 %v613
    %3057 = vmatpush1.msra.mxu0 %v612
    %3058 = vmatprep.subr.mxu0 %v609
    %3059 = vmatpush1.msra.mxu0 %v608
    %3060 = vmatprep.subr.mxu0 %v605
    %3061 = vmatpush1.msra.mxu0 %v604
    %3062 = vmatprep.subr.mxu0 %v601
    %3063 = vmatpush1.msra.mxu0 %v600
    %3064 = vmatprep.subr.mxu0 %v597
    %3065 = vmatpush1.msra.mxu0 %v596
    %3066 = vmatprep.subr.mxu0 %v593
    %3067 = vmatpush1.msra.mxu0 %v592
    %3068 = vmatprep.subr.mxu0 %v589
    %3069 = vmatpush1.msra.mxu0 %v588
    %3070 = vmatprep.subr.mxu0 %v585
    %3071 = vmatpush1.msra.mxu0 %v584
    %3072 = vmatprep.subr.mxu0 %v581
    %3073 = vmatpush1.msra.mxu0 %v580
    %3074 = vmatprep.subr.mxu0 %v577
    %3075 = vmatpush1.msra.mxu0 %v576
    %3076 = vmatprep.subr.mxu0 %v573
    %3077 = vmatpush1.msra.mxu0 %v572
    %3078 = vmatprep.subr.mxu0 0.0
    %3079 = vmatpush2.msra.mxu0 0.0
    %3080 = vmatprep.subr.mxu0 0.0
    %3081 = vmatpush2.msra.mxu0 0.0
    %3082 = vmatprep.subr.mxu0 0.0
    %3083 = vmatpush2.msra.mxu0 0.0
    %3084 = vmatprep.subr.mxu0 0.0
    %3085 = vmatpush2.msra.mxu0 0.0
    %3086 = vmatprep.subr.mxu0 0.0
    %3087 = vmatpush2.msra.mxu0 0.0
    %3088 = vmatprep.subr.mxu0 0.0
    %3089 = vmatpush2.msra.mxu0 0.0
    %3090 = vmatprep.subr.mxu0 0.0
    %3091 = vmatpush2.msra.mxu0 0.0
    %3092 = vmatprep.subr.mxu0 0.0
    %3093 = vmatpush2.msra.mxu0 0.0
    %3094 = vmatprep.subr.mxu0 0.0
    %3095 = vmatpush2.msra.mxu0 0.0
    %3096 = vmatprep.subr.mxu0 0.0
    %3097 = vmatpush2.msra.mxu0 0.0
    %3098 = vmatprep.subr.mxu0 0.0
    %3099 = vmatpush2.msra.mxu0 0.0
    %3100 = vmatprep.subr.mxu0 0.0
    %3101 = vmatpush2.msra.mxu0 0.0
    %3102 = vmatprep.subr.mxu0 0.0
    %3103 = vmatpush2.msra.mxu0 0.0
    %3104 = vmatprep.subr.mxu0 0.0
    %3105 = vmatpush2.msra.mxu0 0.0
    %3106 = vmatprep.subr.mxu0 0.0
    %3107 = vmatpush2.msra.mxu0 0.0
    %3108 = vmatprep.subr.mxu0 0.0
    %3109 = vmatpush2.msra.mxu0 0.0
    %3110 = vmatprep.mubr.f32.mxu0 0.0
    %3111 = vmatmul.mubr.f32.gmra.mxu0 %v3045
    %v3112 = vpop.f32.mrf.mxu0
    %v3113 = vadd.f32 0.0, %v3112
    %v3114 = vpop.f32.mrf.mxu0
    %v3115 = vadd.f32 0.0, %v3114
    %3116 = vdwg.mxu0
    %3117 = vmatprep.subr.mxu0 %v635
    %3118 = vmatpush1.msra.mxu0 %v634
    %3119 = vmatprep.subr.mxu0 %v631
    %3120 = vmatpush1.msra.mxu0 %v630
    %3121 = vmatprep.subr.mxu0 %v627
    %3122 = vmatpush1.msra.mxu0 %v626
    %3123 = vmatprep.subr.mxu0 %v623
    %3124 = vmatpush1.msra.mxu0 %v622
    %3125 = vmatprep.subr.mxu0 %v619
    %3126 = vmatpush1.msra.mxu0 %v618
    %3127 = vmatprep.subr.mxu0 %v615
    %3128 = vmatpush1.msra.mxu0 %v614
    %3129 = vmatprep.subr.mxu0 %v611
    %3130 = vmatpush1.msra.mxu0 %v610
    %3131 = vmatprep.subr.mxu0 %v607
    %3132 = vmatpush1.msra.mxu0 %v606
    %3133 = vmatprep.subr.mxu0 %v603
    %3134 = vmatpush1.msra.mxu0 %v602
    %3135 = vmatprep.subr.mxu0 %v599
    %3136 = vmatpush1.msra.mxu0 %v598
    %3137 = vmatprep.subr.mxu0 %v595
    %3138 = vmatpush1.msra.mxu0 %v594
    %3139 = vmatprep.subr.mxu0 %v591
    %3140 = vmatpush1.msra.mxu0 %v590
    %3141 = vmatprep.subr.mxu0 %v587
    %3142 = vmatpush1.msra.mxu0 %v586
    %3143 = vmatprep.subr.mxu0 %v583
    %3144 = vmatpush1.msra.mxu0 %v582
    %3145 = vmatprep.subr.mxu0 %v579
    %3146 = vmatpush1.msra.mxu0 %v578
    %3147 = vmatprep.subr.mxu0 %v575
    %3148 = vmatpush1.msra.mxu0 %v574
    %3149 = vmatprep.subr.mxu0 0.0
    %3150 = vmatpush2.msra.mxu0 0.0
    %3151 = vmatprep.subr.mxu0 0.0
    %3152 = vmatpush2.msra.mxu0 0.0
    %3153 = vmatprep.subr.mxu0 0.0
    %3154 = vmatpush2.msra.mxu0 0.0
    %3155 = vmatprep.subr.mxu0 0.0
    %3156 = vmatpush2.msra.mxu0 0.0
    %3157 = vmatprep.subr.mxu0 0.0
    %3158 = vmatpush2.msra.mxu0 0.0
    %3159 = vmatprep.subr.mxu0 0.0
    %3160 = vmatpush2.msra.mxu0 0.0
    %3161 = vmatprep.subr.mxu0 0.0
    %3162 = vmatpush2.msra.mxu0 0.0
    %3163 = vmatprep.subr.mxu0 0.0
    %3164 = vmatpush2.msra.mxu0 0.0
    %3165 = vmatprep.subr.mxu0 0.0
    %3166 = vmatpush2.msra.mxu0 0.0
    %3167 = vmatprep.subr.mxu0 0.0
    %3168 = vmatpush2.msra.mxu0 0.0
    %3169 = vmatprep.subr.mxu0 0.0
    %3170 = vmatpush2.msra.mxu0 0.0
    %3171 = vmatprep.subr.mxu0 0.0
    %3172 = vmatpush2.msra.mxu0 0.0
    %3173 = vmatprep.subr.mxu0 0.0
    %3174 = vmatpush2.msra.mxu0 0.0
    %3175 = vmatprep.subr.mxu0 0.0
    %3176 = vmatpush2.msra.mxu0 0.0
    %3177 = vmatprep.subr.mxu0 0.0
    %3178 = vmatpush2.msra.mxu0 0.0
    %3179 = vmatprep.subr.mxu0 0.0
    %3180 = vmatpush2.msra.mxu0 0.0
    %3181 = vmatprep.mubr.f32.mxu0 0.0
    %3182 = vmatmul.mubr.f32.gmra.mxu0 %v3045
    %v3183 = vpop.f32.mrf.mxu0
    %v3184 = vadd.f32 0.0, %v3183
    %v3185 = vpop.f32.mrf.mxu0
    %v3186 = vadd.f32 0.0, %v3185
    %3187 = vdwg.mxu0
    %3188 = vset.pattern.permute.xlu0 6
    %3189 = vperm.xlu0 %3188, %v37
    %v3190 = vpop.permute.xlu0 %3189
    %v3192 = vmul.f32 %v3190, %v53
    %v3193 = vmul.f32 %v3190, %v57
    %v3194 = vmul.f32 %v3190, %v61
    %v3195 = vmul.f32 %v3190, %v65
    %v3196 = vadd.f32 %v3192, %v78
    %v3197 = vadd.f32 %v3193, %v82
    %v3198 = vadd.f32 %v3194, %v86
    %v3199 = vadd.f32 %v3195, %v90
    %3200 = vmatprep.subr.mxu0 %v160
    %3201 = vmatpush1.msra.mxu0 %v159
    %3202 = vmatprep.subr.mxu0 %v156
    %3203 = vmatpush1.msra.mxu0 %v155
    %3204 = vmatprep.subr.mxu0 %v152
    %3205 = vmatpush1.msra.mxu0 %v151
    %3206 = vmatprep.subr.mxu0 %v148
    %3207 = vmatpush1.msra.mxu0 %v147
    %3208 = vmatprep.subr.mxu0 %v144
    %3209 = vmatpush1.msra.mxu0 %v143
    %3210 = vmatprep.subr.mxu0 %v140
    %3211 = vmatpush1.msra.mxu0 %v139
    %3212 = vmatprep.subr.mxu0 %v136
    %3213 = vmatpush1.msra.mxu0 %v135
    %3214 = vmatprep.subr.mxu0 %v132
    %3215 = vmatpush1.msra.mxu0 %v131
    %3216 = vmatprep.subr.mxu0 %v128
    %3217 = vmatpush1.msra.mxu0 %v127
    %3218 = vmatprep.subr.mxu0 %v124
    %3219 = vmatpush1.msra.mxu0 %v123
    %3220 = vmatprep.subr.mxu0 %v120
    %3221 = vmatpush1.msra.mxu0 %v119
    %3222 = vmatprep.subr.mxu0 %v116
    %3223 = vmatpush1.msra.mxu0 %v115
    %3224 = vmatprep.subr.mxu0 %v112
    %3225 = vmatpush1.msra.mxu0 %v111
    %3226 = vmatprep.subr.mxu0 %v108
    %3227 = vmatpush1.msra.mxu0 %v107
    %3228 = vmatprep.subr.mxu0 %v104
    %3229 = vmatpush1.msra.mxu0 %v103
    %3230 = vmatprep.subr.mxu0 %v100
    %3231 = vmatpush1.msra.mxu0 %v99
    %3232 = vmatprep.subr.mxu0 0.0
    %3233 = vmatpush2.msra.mxu0 0.0
    %3234 = vmatprep.subr.mxu0 0.0
    %3235 = vmatpush2.msra.mxu0 0.0
    %3236 = vmatprep.subr.mxu0 0.0
    %3237 = vmatpush2.msra.mxu0 0.0
    %3238 = vmatprep.subr.mxu0 0.0
    %3239 = vmatpush2.msra.mxu0 0.0
    %3240 = vmatprep.subr.mxu0 0.0
    %3241 = vmatpush2.msra.mxu0 0.0
    %3242 = vmatprep.subr.mxu0 0.0
    %3243 = vmatpush2.msra.mxu0 0.0
    %3244 = vmatprep.subr.mxu0 0.0
    %3245 = vmatpush2.msra.mxu0 0.0
    %3246 = vmatprep.subr.mxu0 0.0
    %3247 = vmatpush2.msra.mxu0 0.0
    %3248 = vmatprep.subr.mxu0 0.0
    %3249 = vmatpush2.msra.mxu0 0.0
    %3250 = vmatprep.subr.mxu0 0.0
    %3251 = vmatpush2.msra.mxu0 0.0
    %3252 = vmatprep.subr.mxu0 0.0
    %3253 = vmatpush2.msra.mxu0 0.0
    %3254 = vmatprep.subr.mxu0 0.0
    %3255 = vmatpush2.msra.mxu0 0.0
    %3256 = vmatprep.subr.mxu0 0.0
    %3257 = vmatpush2.msra.mxu0 0.0
    %3258 = vmatprep.subr.mxu0 0.0
    %3259 = vmatpush2.msra.mxu0 0.0
    %3260 = vmatprep.subr.mxu0 0.0
    %3261 = vmatpush2.msra.mxu0 0.0
    %3262 = vmatprep.subr.mxu0 0.0
    %3263 = vmatpush2.msra.mxu0 0.0
    %3264 = vmatprep.mubr.f32.mxu0 0.0
    %3265 = vmatmul.mubr.f32.gmra.mxu0 %v2881
    %v3266 = vpop.f32.mrf.mxu0
    %v3267 = vadd.f32 0.0, %v3266
    %v3268 = vpop.f32.mrf.mxu0
    %v3269 = vadd.f32 0.0, %v3268
    %3270 = vdwg.mxu0
    %3271 = vmatprep.subr.mxu0 %v162
    %3272 = vmatpush1.msra.mxu0 %v161
    %3273 = vmatprep.subr.mxu0 %v158
    %3274 = vmatpush1.msra.mxu0 %v157
    %3275 = vmatprep.subr.mxu0 %v154
    %3276 = vmatpush1.msra.mxu0 %v153
    %3277 = vmatprep.subr.mxu0 %v150
    %3278 = vmatpush1.msra.mxu0 %v149
    %3279 = vmatprep.subr.mxu0 %v146
    %3280 = vmatpush1.msra.mxu0 %v145
    %3281 = vmatprep.subr.mxu0 %v142
    %3282 = vmatpush1.msra.mxu0 %v141
    %3283 = vmatprep.subr.mxu0 %v138
    %3284 = vmatpush1.msra.mxu0 %v137
    %3285 = vmatprep.subr.mxu0 %v134
    %3286 = vmatpush1.msra.mxu0 %v133
    %3287 = vmatprep.subr.mxu0 %v130
    %3288 = vmatpush1.msra.mxu0 %v129
    %3289 = vmatprep.subr.mxu0 %v126
    %3290 = vmatpush1.msra.mxu0 %v125
    %3291 = vmatprep.subr.mxu0 %v122
    %3292 = vmatpush1.msra.mxu0 %v121
    %3293 = vmatprep.subr.mxu0 %v118
    %3294 = vmatpush1.msra.mxu0 %v117
    %3295 = vmatprep.subr.mxu0 %v114
    %3296 = vmatpush1.msra.mxu0 %v113
    %3297 = vmatprep.subr.mxu0 %v110
    %3298 = vmatpush1.msra.mxu0 %v109
    %3299 = vmatprep.subr.mxu0 %v106
    %3300 = vmatpush1.msra.mxu0 %v105
    %3301 = vmatprep.subr.mxu0 %v102
    %3302 = vmatpush1.msra.mxu0 %v101
    %3303 = vmatprep.subr.mxu0 0.0
    %3304 = vmatpush2.msra.mxu0 0.0
    %3305 = vmatprep.subr.mxu0 0.0
    %3306 = vmatpush2.msra.mxu0 0.0
    %3307 = vmatprep.subr.mxu0 0.0
    %3308 = vmatpush2.msra.mxu0 0.0
    %3309 = vmatprep.subr.mxu0 0.0
    %3310 = vmatpush2.msra.mxu0 0.0
    %3311 = vmatprep.subr.mxu0 0.0
    %3312 = vmatpush2.msra.mxu0 0.0
    %3313 = vmatprep.subr.mxu0 0.0
    %3314 = vmatpush2.msra.mxu0 0.0
    %3315 = vmatprep.subr.mxu0 0.0
    %3316 = vmatpush2.msra.mxu0 0.0
    %3317 = vmatprep.subr.mxu0 0.0
    %3318 = vmatpush2.msra.mxu0 0.0
    %3319 = vmatprep.subr.mxu0 0.0
    %3320 = vmatpush2.msra.mxu0 0.0
    %3321 = vmatprep.subr.mxu0 0.0
    %3322 = vmatpush2.msra.mxu0 0.0
    %3323 = vmatprep.subr.mxu0 0.0
    %3324 = vmatpush2.msra.mxu0 0.0
    %3325 = vmatprep.subr.mxu0 0.0
    %3326 = vmatpush2.msra.mxu0 0.0
    %3327 = vmatprep.subr.mxu0 0.0
    %3328 = vmatpush2.msra.mxu0 0.0
    %3329 = vmatprep.subr.mxu0 0.0
    %3330 = vmatpush2.msra.mxu0 0.0
    %3331 = vmatprep.subr.mxu0 0.0
    %3332 = vmatpush2.msra.mxu0 0.0
    %3333 = vmatprep.subr.mxu0 0.0
    %3334 = vmatpush2.msra.mxu0 0.0
    %3335 = vmatprep.mubr.f32.mxu0 0.0
    %3336 = vmatmul.mubr.f32.gmra.mxu0 %v2881
    %v3337 = vpop.f32.mrf.mxu0
    %v3338 = vadd.f32 0.0, %v3337
    %v3339 = vpop.f32.mrf.mxu0
    %v3340 = vadd.f32 0.0, %v3339
    %3341 = vdwg.mxu0
    %v3342 = vadd.f32 %v3196, %v3267
    %v3343 = vadd.f32 %v3197, %v3269
    %v3344 = vadd.f32 %v3198, %v3338
    %v3345 = vadd.f32 %v3199, %v3340
    %v3346 = vmul.f32 %v3342, 0.5
    %v3347 = vmul.f32 %v3343, 0.5
    %v3348 = vmul.f32 %v3344, 0.5
    %v3349 = vtanh.pop %v3346
    %v3350 = vtanh.pop %v3347
    %v3351 = vtanh.pop %v3348
    %v3352 = vmul.f32 %v3349, 0.5
    %v3353 = vmul.f32 %v3350, 0.5
    %v3354 = vmul.f32 %v3351, 0.5
    %v3355 = vadd.f32 %v3352, 0.5
    %v3356 = vadd.f32 %v3353, 0.5
    %v3357 = vadd.f32 %v3354, 0.5
    %v3358 = vtanh.pop %v3345
    %v3359 = vmul.f32 %v3356, %v2879
    %v3360 = vmul.f32 %v3355, %v3358
    %v3361 = vadd.f32 %v3359, %v3360
    %v3362 = vtanh.pop %v3361
    %v3363 = vmul.f32 %v3357, %v3362
    %3364 = vmatprep.subr.mxu0 %v388
    %3365 = vmatpush1.msra.mxu0 %v387
    %3366 = vmatprep.subr.mxu0 %v384
    %3367 = vmatpush1.msra.mxu0 %v383
    %3368 = vmatprep.subr.mxu0 %v380
    %3369 = vmatpush1.msra.mxu0 %v379
    %3370 = vmatprep.subr.mxu0 %v376
    %3371 = vmatpush1.msra.mxu0 %v375
    %3372 = vmatprep.subr.mxu0 %v372
    %3373 = vmatpush1.msra.mxu0 %v371
    %3374 = vmatprep.subr.mxu0 %v368
    %3375 = vmatpush1.msra.mxu0 %v367
    %3376 = vmatprep.subr.mxu0 %v364
    %3377 = vmatpush1.msra.mxu0 %v363
    %3378 = vmatprep.subr.mxu0 %v360
    %3379 = vmatpush1.msra.mxu0 %v359
    %3380 = vmatprep.subr.mxu0 %v356
    %3381 = vmatpush1.msra.mxu0 %v355
    %3382 = vmatprep.subr.mxu0 %v352
    %3383 = vmatpush1.msra.mxu0 %v351
    %3384 = vmatprep.subr.mxu0 %v348
    %3385 = vmatpush1.msra.mxu0 %v347
    %3386 = vmatprep.subr.mxu0 %v344
    %3387 = vmatpush1.msra.mxu0 %v343
    %3388 = vmatprep.subr.mxu0 %v340
    %3389 = vmatpush1.msra.mxu0 %v339
    %3390 = vmatprep.subr.mxu0 %v336
    %3391 = vmatpush1.msra.mxu0 %v335
    %3392 = vmatprep.subr.mxu0 %v332
    %3393 = vmatpush1.msra.mxu0 %v331
    %3394 = vmatprep.subr.mxu0 %v328
    %3395 = vmatpush1.msra.mxu0 %v327
    %3396 = vmatprep.subr.mxu0 0.0
    %3397 = vmatpush2.msra.mxu0 0.0
    %3398 = vmatprep.subr.mxu0 0.0
    %3399 = vmatpush2.msra.mxu0 0.0
    %3400 = vmatprep.subr.mxu0 0.0
    %3401 = vmatpush2.msra.mxu0 0.0
    %3402 = vmatprep.subr.mxu0 0.0
    %3403 = vmatpush2.msra.mxu0 0.0
    %3404 = vmatprep.subr.mxu0 0.0
    %3405 = vmatpush2.msra.mxu0 0.0
    %3406 = vmatprep.subr.mxu0 0.0
    %3407 = vmatpush2.msra.mxu0 0.0
    %3408 = vmatprep.subr.mxu0 0.0
    %3409 = vmatpush2.msra.mxu0 0.0
    %3410 = vmatprep.subr.mxu0 0.0
    %3411 = vmatpush2.msra.mxu0 0.0
    %3412 = vmatprep.subr.mxu0 0.0
    %3413 = vmatpush2.msra.mxu0 0.0
    %3414 = vmatprep.subr.mxu0 0.0
    %3415 = vmatpush2.msra.mxu0 0.0
    %3416 = vmatprep.subr.mxu0 0.0
    %3417 = vmatpush2.msra.mxu0 0.0
    %3418 = vmatprep.subr.mxu0 0.0
    %3419 = vmatpush2.msra.mxu0 0.0
    %3420 = vmatprep.subr.mxu0 0.0
    %3421 = vmatpush2.msra.mxu0 0.0
    %3422 = vmatprep.subr.mxu0 0.0
    %3423 = vmatpush2.msra.mxu0 0.0
    %3424 = vmatprep.subr.mxu0 0.0
    %3425 = vmatpush2.msra.mxu0 0.0
    %3426 = vmatprep.subr.mxu0 0.0
    %3427 = vmatpush2.msra.mxu0 0.0
    %3428 = vmatprep.mubr.f32.mxu0 0.0
    %3429 = vmatmul.mubr.f32.gmra.mxu0 %v3363
    %v3430 = vpop.f32.mrf.mxu0
    %v3431 = vadd.f32 %v3113, %v3430
    %v3432 = vpop.f32.mrf.mxu0
    %v3433 = vadd.f32 %v3115, %v3432
    %3434 = vdwg.mxu0
    %3435 = vmatprep.subr.mxu0 %v390
    %3436 = vmatpush1.msra.mxu0 %v389
    %3437 = vmatprep.subr.mxu0 %v386
    %3438 = vmatpush1.msra.mxu0 %v385
    %3439 = vmatprep.subr.mxu0 %v382
    %3440 = vmatpush1.msra.mxu0 %v381
    %3441 = vmatprep.subr.mxu0 %v378
    %3442 = vmatpush1.msra.mxu0 %v377
    %3443 = vmatprep.subr.mxu0 %v374
    %3444 = vmatpush1.msra.mxu0 %v373
    %3445 = vmatprep.subr.mxu0 %v370
    %3446 = vmatpush1.msra.mxu0 %v369
    %3447 = vmatprep.subr.mxu0 %v366
    %3448 = vmatpush1.msra.mxu0 %v365
    %3449 = vmatprep.subr.mxu0 %v362
    %3450 = vmatpush1.msra.mxu0 %v361
    %3451 = vmatprep.subr.mxu0 %v358
    %3452 = vmatpush1.msra.mxu0 %v357
    %3453 = vmatprep.subr.mxu0 %v354
    %3454 = vmatpush1.msra.mxu0 %v353
    %3455 = vmatprep.subr.mxu0 %v350
    %3456 = vmatpush1.msra.mxu0 %v349
    %3457 = vmatprep.subr.mxu0 %v346
    %3458 = vmatpush1.msra.mxu0 %v345
    %3459 = vmatprep.subr.mxu0 %v342
    %3460 = vmatpush1.msra.mxu0 %v341
    %3461 = vmatprep.subr.mxu0 %v338
    %3462 = vmatpush1.msra.mxu0 %v337
    %3463 = vmatprep.subr.mxu0 %v334
    %3464 = vmatpush1.msra.mxu0 %v333
    %3465 = vmatprep.subr.mxu0 %v330
    %3466 = vmatpush1.msra.mxu0 %v329
    %3467 = vmatprep.subr.mxu0 0.0
    %3468 = vmatpush2.msra.mxu0 0.0
    %3469 = vmatprep.subr.mxu0 0.0
    %3470 = vmatpush2.msra.mxu0 0.0
    %3471 = vmatprep.subr.mxu0 0.0
    %3472 = vmatpush2.msra.mxu0 0.0
    %3473 = vmatprep.subr.mxu0 0.0
    %3474 = vmatpush2.msra.mxu0 0.0
    %3475 = vmatprep.subr.mxu0 0.0
    %3476 = vmatpush2.msra.mxu0 0.0
    %3477 = vmatprep.subr.mxu0 0.0
    %3478 = vmatpush2.msra.mxu0 0.0
    %3479 = vmatprep.subr.mxu0 0.0
    %3480 = vmatpush2.msra.mxu0 0.0
    %3481 = vmatprep.subr.mxu0 0.0
    %3482 = vmatpush2.msra.mxu0 0.0
    %3483 = vmatprep.subr.mxu0 0.0
    %3484 = vmatpush2.msra.mxu0 0.0
    %3485 = vmatprep.subr.mxu0 0.0
    %3486 = vmatpush2.msra.mxu0 0.0
    %3487 = vmatprep.subr.mxu0 0.0
    %3488 = vmatpush2.msra.mxu0 0.0
    %3489 = vmatprep.subr.mxu0 0.0
    %3490 = vmatpush2.msra.mxu0 0.0
    %3491 = vmatprep.subr.mxu0 0.0
    %3492 = vmatpush2.msra.mxu0 0.0
    %3493 = vmatprep.subr.mxu0 0.0
    %3494 = vmatpush2.msra.mxu0 0.0
    %3495 = vmatprep.subr.mxu0 0.0
    %3496 = vmatpush2.msra.mxu0 0.0
    %3497 = vmatprep.subr.mxu0 0.0
    %3498 = vmatpush2.msra.mxu0 0.0
    %3499 = vmatprep.mubr.f32.mxu0 0.0
    %3500 = vmatmul.mubr.f32.gmra.mxu0 %v3363
    %v3501 = vpop.f32.mrf.mxu0
    %v3502 = vadd.f32 %v3184, %v3501
    %v3503 = vpop.f32.mrf.mxu0
    %v3504 = vadd.f32 %v3186, %v3503
    %3505 = vdwg.mxu0
    %v3506 = vadd.f32 %v3431, %v395
    %v3507 = vadd.f32 %v3433, %v399
    %v3508 = vadd.f32 %v3502, %v403
    %v3509 = vadd.f32 %v3504, %v407
    %v3510 = vmul.f32 %v3506, 0.5
    %v3511 = vmul.f32 %v3507, 0.5
    %v3512 = vmul.f32 %v3508, 0.5
    %v3513 = vtanh.pop %v3510
    %v3514 = vtanh.pop %v3511
    %v3515 = vtanh.pop %v3512
    %v3516 = vmul.f32 %v3513, 0.5
    %v3517 = vmul.f32 %v3514, 0.5
    %v3518 = vmul.f32 %v3515, 0.5
    %v3519 = vadd.f32 %v3516, 0.5
    %v3520 = vadd.f32 %v3517, 0.5
    %v3521 = vadd.f32 %v3518, 0.5
    %v3522 = vtanh.pop %v3509
    %v3523 = vmul.f32 %v3520, %v3043
    %v3524 = vmul.f32 %v3519, %v3522
    %v3525 = vadd.f32 %v3523, %v3524
    %v3526 = vtanh.pop %v3525
    %v3527 = vmul.f32 %v3521, %v3526
    %3528 = vmatprep.subr.mxu0 %v633
    %3529 = vmatpush1.msra.mxu0 %v632
    %3530 = vmatprep.subr.mxu0 %v629
    %3531 = vmatpush1.msra.mxu0 %v628
    %3532 = vmatprep.subr.mxu0 %v625
    %3533 = vmatpush1.msra.mxu0 %v624
    %3534 = vmatprep.subr.mxu0 %v621
    %3535 = vmatpush1.msra.mxu0 %v620
    %3536 = vmatprep.subr.mxu0 %v617
    %3537 = vmatpush1.msra.mxu0 %v616
    %3538 = vmatprep.subr.mxu0 %v613
    %3539 = vmatpush1.msra.mxu0 %v612
    %3540 = vmatprep.subr.mxu0 %v609
    %3541 = vmatpush1.msra.mxu0 %v608
    %3542 = vmatprep.subr.mxu0 %v605
    %3543 = vmatpush1.msra.mxu0 %v604
    %3544 = vmatprep.subr.mxu0 %v601
    %3545 = vmatpush1.msra.mxu0 %v600
    %3546 = vmatprep.subr.mxu0 %v597
    %3547 = vmatpush1.msra.mxu0 %v596
    %3548 = vmatprep.subr.mxu0 %v593
    %3549 = vmatpush1.msra.mxu0 %v592
    %3550 = vmatprep.subr.mxu0 %v589
    %3551 = vmatpush1.msra.mxu0 %v588
    %3552 = vmatprep.subr.mxu0 %v585
    %3553 = vmatpush1.msra.mxu0 %v584
    %3554 = vmatprep.subr.mxu0 %v581
    %3555 = vmatpush1.msra.mxu0 %v580
    %3556 = vmatprep.subr.mxu0 %v577
    %3557 = vmatpush1.msra.mxu0 %v576
    %3558 = vmatprep.subr.mxu0 %v573
    %3559 = vmatpush1.msra.mxu0 %v572
    %3560 = vmatprep.subr.mxu0 0.0
    %3561 = vmatpush2.msra.mxu0 0.0
    %3562 = vmatprep.subr.mxu0 0.0
    %3563 = vmatpush2.msra.mxu0 0.0
    %3564 = vmatprep.subr.mxu0 0.0
    %3565 = vmatpush2.msra.mxu0 0.0
    %3566 = vmatprep.subr.mxu0 0.0
    %3567 = vmatpush2.msra.mxu0 0.0
    %3568 = vmatprep.subr.mxu0 0.0
    %3569 = vmatpush2.msra.mxu0 0.0
    %3570 = vmatprep.subr.mxu0 0.0
    %3571 = vmatpush2.msra.mxu0 0.0
    %3572 = vmatprep.subr.mxu0 0.0
    %3573 = vmatpush2.msra.mxu0 0.0
    %3574 = vmatprep.subr.mxu0 0.0
    %3575 = vmatpush2.msra.mxu0 0.0
    %3576 = vmatprep.subr.mxu0 0.0
    %3577 = vmatpush2.msra.mxu0 0.0
    %3578 = vmatprep.subr.mxu0 0.0
    %3579 = vmatpush2.msra.mxu0 0.0
    %3580 = vmatprep.subr.mxu0 0.0
    %3581 = vmatpush2.msra.mxu0 0.0
    %3582 = vmatprep.subr.mxu0 0.0
    %3583 = vmatpush2.msra.mxu0 0.0
    %3584 = vmatprep.subr.mxu0 0.0
    %3585 = vmatpush2.msra.mxu0 0.0
    %3586 = vmatprep.subr.mxu0 0.0
    %3587 = vmatpush2.msra.mxu0 0.0
    %3588 = vmatprep.subr.mxu0 0.0
    %3589 = vmatpush2.msra.mxu0 0.0
    %3590 = vmatprep.subr.mxu0 0.0
    %3591 = vmatpush2.msra.mxu0 0.0
    %3592 = vmatprep.mubr.f32.mxu0 0.0
    %3593 = vmatmul.mubr.f32.gmra.mxu0 %v3527
    %v3594 = vpop.f32.mrf.mxu0
    %v3595 = vadd.f32 0.0, %v3594
    %v3596 = vpop.f32.mrf.mxu0
    %v3597 = vadd.f32 0.0, %v3596
    %3598 = vdwg.mxu0
    %3599 = vmatprep.subr.mxu0 %v635
    %3600 = vmatpush1.msra.mxu0 %v634
    %3601 = vmatprep.subr.mxu0 %v631
    %3602 = vmatpush1.msra.mxu0 %v630
    %3603 = vmatprep.subr.mxu0 %v627
    %3604 = vmatpush1.msra.mxu0 %v626
    %3605 = vmatprep.subr.mxu0 %v623
    %3606 = vmatpush1.msra.mxu0 %v622
    %3607 = vmatprep.subr.mxu0 %v619
    %3608 = vmatpush1.msra.mxu0 %v618
    %3609 = vmatprep.subr.mxu0 %v615
    %3610 = vmatpush1.msra.mxu0 %v614
    %3611 = vmatprep.subr.mxu0 %v611
    %3612 = vmatpush1.msra.mxu0 %v610
    %3613 = vmatprep.subr.mxu0 %v607
    %3614 = vmatpush1.msra.mxu0 %v606
    %3615 = vmatprep.subr.mxu0 %v603
    %3616 = vmatpush1.msra.mxu0 %v602
    %3617 = vmatprep.subr.mxu0 %v599
    %3618 = vmatpush1.msra.mxu0 %v598
    %3619 = vmatprep.subr.mxu0 %v595
    %3620 = vmatpush1.msra.mxu0 %v594
    %3621 = vmatprep.subr.mxu0 %v591
    %3622 = vmatpush1.msra.mxu0 %v590
    %3623 = vmatprep.subr.mxu0 %v587
    %3624 = vmatpush1.msra.mxu0 %v586
    %3625 = vmatprep.subr.mxu0 %v583
    %3626 = vmatpush1.msra.mxu0 %v582
    %3627 = vmatprep.subr.mxu0 %v579
    %3628 = vmatpush1.msra.mxu0 %v578
    %3629 = vmatprep.subr.mxu0 %v575
    %3630 = vmatpush1.msra.mxu0 %v574
    %3631 = vmatprep.subr.mxu0 0.0
    %3632 = vmatpush2.msra.mxu0 0.0
    %3633 = vmatprep.subr.mxu0 0.0
    %3634 = vmatpush2.msra.mxu0 0.0
    %3635 = vmatprep.subr.mxu0 0.0
    %3636 = vmatpush2.msra.mxu0 0.0
    %3637 = vmatprep.subr.mxu0 0.0
    %3638 = vmatpush2.msra.mxu0 0.0
    %3639 = vmatprep.subr.mxu0 0.0
    %3640 = vmatpush2.msra.mxu0 0.0
    %3641 = vmatprep.subr.mxu0 0.0
    %3642 = vmatpush2.msra.mxu0 0.0
    %3643 = vmatprep.subr.mxu0 0.0
    %3644 = vmatpush2.msra.mxu0 0.0
    %3645 = vmatprep.subr.mxu0 0.0
    %3646 = vmatpush2.msra.mxu0 0.0
    %3647 = vmatprep.subr.mxu0 0.0
    %3648 = vmatpush2.msra.mxu0 0.0
    %3649 = vmatprep.subr.mxu0 0.0
    %3650 = vmatpush2.msra.mxu0 0.0
    %3651 = vmatprep.subr.mxu0 0.0
    %3652 = vmatpush2.msra.mxu0 0.0
    %3653 = vmatprep.subr.mxu0 0.0
    %3654 = vmatpush2.msra.mxu0 0.0
    %3655 = vmatprep.subr.mxu0 0.0
    %3656 = vmatpush2.msra.mxu0 0.0
    %3657 = vmatprep.subr.mxu0 0.0
    %3658 = vmatpush2.msra.mxu0 0.0
    %3659 = vmatprep.subr.mxu0 0.0
    %3660 = vmatpush2.msra.mxu0 0.0
    %3661 = vmatprep.subr.mxu0 0.0
    %3662 = vmatpush2.msra.mxu0 0.0
    %3663 = vmatprep.mubr.f32.mxu0 0.0
    %3664 = vmatmul.mubr.f32.gmra.mxu0 %v3527
    %v3665 = vpop.f32.mrf.mxu0
    %v3666 = vadd.f32 0.0, %v3665
    %v3667 = vpop.f32.mrf.mxu0
    %v3668 = vadd.f32 0.0, %v3667
    %3669 = vdwg.mxu0
    %3670 = vset.pattern.permute.xlu0 7
    %3671 = vperm.xlu0 %3670, %v37
    %v3672 = vpop.permute.xlu0 %3671
    %v3674 = vmul.f32 %v3672, %v53
    %v3675 = vmul.f32 %v3672, %v57
    %v3676 = vmul.f32 %v3672, %v61
    %v3677 = vmul.f32 %v3672, %v65
    %v3678 = vadd.f32 %v3674, %v78
    %v3679 = vadd.f32 %v3675, %v82
    %v3680 = vadd.f32 %v3676, %v86
    %v3681 = vadd.f32 %v3677, %v90
    %3682 = vmatprep.subr.mxu0 %v160
    %3683 = vmatpush1.msra.mxu0 %v159
    %3684 = vmatprep.subr.mxu0 %v156
    %3685 = vmatpush1.msra.mxu0 %v155
    %3686 = vmatprep.subr.mxu0 %v152
    %3687 = vmatpush1.msra.mxu0 %v151
    %3688 = vmatprep.subr.mxu0 %v148
    %3689 = vmatpush1.msra.mxu0 %v147
    %3690 = vmatprep.subr.mxu0 %v144
    %3691 = vmatpush1.msra.mxu0 %v143
    %3692 = vmatprep.subr.mxu0 %v140
    %3693 = vmatpush1.msra.mxu0 %v139
    %3694 = vmatprep.subr.mxu0 %v136
    %3695 = vmatpush1.msra.mxu0 %v135
    %3696 = vmatprep.subr.mxu0 %v132
    %3697 = vmatpush1.msra.mxu0 %v131
    %3698 = vmatprep.subr.mxu0 %v128
    %3699 = vmatpush1.msra.mxu0 %v127
    %3700 = vmatprep.subr.mxu0 %v124
    %3701 = vmatpush1.msra.mxu0 %v123
    %3702 = vmatprep.subr.mxu0 %v120
    %3703 = vmatpush1.msra.mxu0 %v119
    %3704 = vmatprep.subr.mxu0 %v116
    %3705 = vmatpush1.msra.mxu0 %v115
    %3706 = vmatprep.subr.mxu0 %v112
    %3707 = vmatpush1.msra.mxu0 %v111
    %3708 = vmatprep.subr.mxu0 %v108
    %3709 = vmatpush1.msra.mxu0 %v107
    %3710 = vmatprep.subr.mxu0 %v104
    %3711 = vmatpush1.msra.mxu0 %v103
    %3712 = vmatprep.subr.mxu0 %v100
    %3713 = vmatpush1.msra.mxu0 %v99
    %3714 = vmatprep.subr.mxu0 0.0
    %3715 = vmatpush2.msra.mxu0 0.0
    %3716 = vmatprep.subr.mxu0 0.0
    %3717 = vmatpush2.msra.mxu0 0.0
    %3718 = vmatprep.subr.mxu0 0.0
    %3719 = vmatpush2.msra.mxu0 0.0
    %3720 = vmatprep.subr.mxu0 0.0
    %3721 = vmatpush2.msra.mxu0 0.0
    %3722 = vmatprep.subr.mxu0 0.0
    %3723 = vmatpush2.msra.mxu0 0.0
    %3724 = vmatprep.subr.mxu0 0.0
    %3725 = vmatpush2.msra.mxu0 0.0
    %3726 = vmatprep.subr.mxu0 0.0
    %3727 = vmatpush2.msra.mxu0 0.0
    %3728 = vmatprep.subr.mxu0 0.0
    %3729 = vmatpush2.msra.mxu0 0.0
    %3730 = vmatprep.subr.mxu0 0.0
    %3731 = vmatpush2.msra.mxu0 0.0
    %3732 = vmatprep.subr.mxu0 0.0
    %3733 = vmatpush2.msra.mxu0 0.0
    %3734 = vmatprep.subr.mxu0 0.0
    %3735 = vmatpush2.msra.mxu0 0.0
    %3736 = vmatprep.subr.mxu0 0.0
    %3737 = vmatpush2.msra.mxu0 0.0
    %3738 = vmatprep.subr.mxu0 0.0
    %3739 = vmatpush2.msra.mxu0 0.0
    %3740 = vmatprep.subr.mxu0 0.0
    %3741 = vmatpush2.msra.mxu0 0.0
    %3742 = vmatprep.subr.mxu0 0.0
    %3743 = vmatpush2.msra.mxu0 0.0
    %3744 = vmatprep.subr.mxu0 0.0
    %3745 = vmatpush2.msra.mxu0 0.0
    %3746 = vmatprep.mubr.f32.mxu0 0.0
    %3747 = vmatmul.mubr.f32.gmra.mxu0 %v3363
    %v3748 = vpop.f32.mrf.mxu0
    %v3749 = vadd.f32 0.0, %v3748
    %v3750 = vpop.f32.mrf.mxu0
    %v3751 = vadd.f32 0.0, %v3750
    %3752 = vdwg.mxu0
    %3753 = vmatprep.subr.mxu0 %v162
    %3754 = vmatpush1.msra.mxu0 %v161
    %3755 = vmatprep.subr.mxu0 %v158
    %3756 = vmatpush1.msra.mxu0 %v157
    %3757 = vmatprep.subr.mxu0 %v154
    %3758 = vmatpush1.msra.mxu0 %v153
    %3759 = vmatprep.subr.mxu0 %v150
    %3760 = vmatpush1.msra.mxu0 %v149
    %3761 = vmatprep.subr.mxu0 %v146
    %3762 = vmatpush1.msra.mxu0 %v145
    %3763 = vmatprep.subr.mxu0 %v142
    %3764 = vmatpush1.msra.mxu0 %v141
    %3765 = vmatprep.subr.mxu0 %v138
    %3766 = vmatpush1.msra.mxu0 %v137
    %3767 = vmatprep.subr.mxu0 %v134
    %3768 = vmatpush1.msra.mxu0 %v133
    %3769 = vmatprep.subr.mxu0 %v130
    %3770 = vmatpush1.msra.mxu0 %v129
    %3771 = vmatprep.subr.mxu0 %v126
    %3772 = vmatpush1.msra.mxu0 %v125
    %3773 = vmatprep.subr.mxu0 %v122
    %3774 = vmatpush1.msra.mxu0 %v121
    %3775 = vmatprep.subr.mxu0 %v118
    %3776 = vmatpush1.msra.mxu0 %v117
    %3777 = vmatprep.subr.mxu0 %v114
    %3778 = vmatpush1.msra.mxu0 %v113
    %3779 = vmatprep.subr.mxu0 %v110
    %3780 = vmatpush1.msra.mxu0 %v109
    %3781 = vmatprep.subr.mxu0 %v106
    %3782 = vmatpush1.msra.mxu0 %v105
    %3783 = vmatprep.subr.mxu0 %v102
    %3784 = vmatpush1.msra.mxu0 %v101
    %3785 = vmatprep.subr.mxu0 0.0
    %3786 = vmatpush2.msra.mxu0 0.0
    %3787 = vmatprep.subr.mxu0 0.0
    %3788 = vmatpush2.msra.mxu0 0.0
    %3789 = vmatprep.subr.mxu0 0.0
    %3790 = vmatpush2.msra.mxu0 0.0
    %3791 = vmatprep.subr.mxu0 0.0
    %3792 = vmatpush2.msra.mxu0 0.0
    %3793 = vmatprep.subr.mxu0 0.0
    %3794 = vmatpush2.msra.mxu0 0.0
    %3795 = vmatprep.subr.mxu0 0.0
    %3796 = vmatpush2.msra.mxu0 0.0
    %3797 = vmatprep.subr.mxu0 0.0
    %3798 = vmatpush2.msra.mxu0 0.0
    %3799 = vmatprep.subr.mxu0 0.0
    %3800 = vmatpush2.msra.mxu0 0.0
    %3801 = vmatprep.subr.mxu0 0.0
    %3802 = vmatpush2.msra.mxu0 0.0
    %3803 = vmatprep.subr.mxu0 0.0
    %3804 = vmatpush2.msra.mxu0 0.0
    %3805 = vmatprep.subr.mxu0 0.0
    %3806 = vmatpush2.msra.mxu0 0.0
    %3807 = vmatprep.subr.mxu0 0.0
    %3808 = vmatpush2.msra.mxu0 0.0
    %3809 = vmatprep.subr.mxu0 0.0
    %3810 = vmatpush2.msra.mxu0 0.0
    %3811 = vmatprep.subr.mxu0 0.0
    %3812 = vmatpush2.msra.mxu0 0.0
    %3813 = vmatprep.subr.mxu0 0.0
    %3814 = vmatpush2.msra.mxu0 0.0
    %3815 = vmatprep.subr.mxu0 0.0
    %3816 = vmatpush2.msra.mxu0 0.0
    %3817 = vmatprep.mubr.f32.mxu0 0.0
    %3818 = vmatmul.mubr.f32.gmra.mxu0 %v3363
    %v3819 = vpop.f32.mrf.mxu0
    %v3820 = vadd.f32 0.0, %v3819
    %v3821 = vpop.f32.mrf.mxu0
    %v3822 = vadd.f32 0.0, %v3821
    %3823 = vdwg.mxu0
    %v3824 = vadd.f32 %v3678, %v3749
    %v3825 = vadd.f32 %v3679, %v3751
    %v3826 = vadd.f32 %v3680, %v3820
    %v3827 = vadd.f32 %v3681, %v3822
    %v3828 = vmul.f32 %v3824, 0.5
    %v3829 = vmul.f32 %v3825, 0.5
    %v3830 = vmul.f32 %v3826, 0.5
    %v3831 = vtanh.pop %v3828
    %v3832 = vtanh.pop %v3829
    %v3833 = vtanh.pop %v3830
    %v3834 = vmul.f32 %v3831, 0.5
    %v3835 = vmul.f32 %v3832, 0.5
    %v3836 = vmul.f32 %v3833, 0.5
    %v3837 = vadd.f32 %v3834, 0.5
    %v3838 = vadd.f32 %v3835, 0.5
    %v3839 = vadd.f32 %v3836, 0.5
    %v3840 = vtanh.pop %v3827
    %v3841 = vmul.f32 %v3838, %v3361
    %v3842 = vmul.f32 %v3837, %v3840
    %v3843 = vadd.f32 %v3841, %v3842
    %v3844 = vtanh.pop %v3843
    %v3845 = vmul.f32 %v3839, %v3844
    %3846 = vmatprep.subr.mxu0 %v388
    %3847 = vmatpush1.msra.mxu0 %v387
    %3848 = vmatprep.subr.mxu0 %v384
    %3849 = vmatpush1.msra.mxu0 %v383
    %3850 = vmatprep.subr.mxu0 %v380
    %3851 = vmatpush1.msra.mxu0 %v379
    %3852 = vmatprep.subr.mxu0 %v376
    %3853 = vmatpush1.msra.mxu0 %v375
    %3854 = vmatprep.subr.mxu0 %v372
    %3855 = vmatpush1.msra.mxu0 %v371
    %3856 = vmatprep.subr.mxu0 %v368
    %3857 = vmatpush1.msra.mxu0 %v367
    %3858 = vmatprep.subr.mxu0 %v364
    %3859 = vmatpush1.msra.mxu0 %v363
    %3860 = vmatprep.subr.mxu0 %v360
    %3861 = vmatpush1.msra.mxu0 %v359
    %3862 = vmatprep.subr.mxu0 %v356
    %3863 = vmatpush1.msra.mxu0 %v355
    %3864 = vmatprep.subr.mxu0 %v352
    %3865 = vmatpush1.msra.mxu0 %v351
    %3866 = vmatprep.subr.mxu0 %v348
    %3867 = vmatpush1.msra.mxu0 %v347
    %3868 = vmatprep.subr.mxu0 %v344
    %3869 = vmatpush1.msra.mxu0 %v343
    %3870 = vmatprep.subr.mxu0 %v340
    %3871 = vmatpush1.msra.mxu0 %v339
    %3872 = vmatprep.subr.mxu0 %v336
    %3873 = vmatpush1.msra.mxu0 %v335
    %3874 = vmatprep.subr.mxu0 %v332
    %3875 = vmatpush1.msra.mxu0 %v331
    %3876 = vmatprep.subr.mxu0 %v328
    %3877 = vmatpush1.msra.mxu0 %v327
    %3878 = vmatprep.subr.mxu0 0.0
    %3879 = vmatpush2.msra.mxu0 0.0
    %3880 = vmatprep.subr.mxu0 0.0
    %3881 = vmatpush2.msra.mxu0 0.0
    %3882 = vmatprep.subr.mxu0 0.0
    %3883 = vmatpush2.msra.mxu0 0.0
    %3884 = vmatprep.subr.mxu0 0.0
    %3885 = vmatpush2.msra.mxu0 0.0
    %3886 = vmatprep.subr.mxu0 0.0
    %3887 = vmatpush2.msra.mxu0 0.0
    %3888 = vmatprep.subr.mxu0 0.0
    %3889 = vmatpush2.msra.mxu0 0.0
    %3890 = vmatprep.subr.mxu0 0.0
    %3891 = vmatpush2.msra.mxu0 0.0
    %3892 = vmatprep.subr.mxu0 0.0
    %3893 = vmatpush2.msra.mxu0 0.0
    %3894 = vmatprep.subr.mxu0 0.0
    %3895 = vmatpush2.msra.mxu0 0.0
    %3896 = vmatprep.subr.mxu0 0.0
    %3897 = vmatpush2.msra.mxu0 0.0
    %3898 = vmatprep.subr.mxu0 0.0
    %3899 = vmatpush2.msra.mxu0 0.0
    %3900 = vmatprep.subr.mxu0 0.0
    %3901 = vmatpush2.msra.mxu0 0.0
    %3902 = vmatprep.subr.mxu0 0.0
    %3903 = vmatpush2.msra.mxu0 0.0
    %3904 = vmatprep.subr.mxu0 0.0
    %3905 = vmatpush2.msra.mxu0 0.0
    %3906 = vmatprep.subr.mxu0 0.0
    %3907 = vmatpush2.msra.mxu0 0.0
    %3908 = vmatprep.subr.mxu0 0.0
    %3909 = vmatpush2.msra.mxu0 0.0
    %3910 = vmatprep.mubr.f32.mxu0 0.0
    %3911 = vmatmul.mubr.f32.gmra.mxu0 %v3845
    %v3912 = vpop.f32.mrf.mxu0
    %v3913 = vadd.f32 %v3595, %v3912
    %v3914 = vpop.f32.mrf.mxu0
    %v3915 = vadd.f32 %v3597, %v3914
    %3916 = vdwg.mxu0
    %3917 = vmatprep.subr.mxu0 %v390
    %3918 = vmatpush1.msra.mxu0 %v389
    %3919 = vmatprep.subr.mxu0 %v386
    %3920 = vmatpush1.msra.mxu0 %v385
    %3921 = vmatprep.subr.mxu0 %v382
    %3922 = vmatpush1.msra.mxu0 %v381
    %3923 = vmatprep.subr.mxu0 %v378
    %3924 = vmatpush1.msra.mxu0 %v377
    %3925 = vmatprep.subr.mxu0 %v374
    %3926 = vmatpush1.msra.mxu0 %v373
    %3927 = vmatprep.subr.mxu0 %v370
    %3928 = vmatpush1.msra.mxu0 %v369
    %3929 = vmatprep.subr.mxu0 %v366
    %3930 = vmatpush1.msra.mxu0 %v365
    %3931 = vmatprep.subr.mxu0 %v362
    %3932 = vmatpush1.msra.mxu0 %v361
    %3933 = vmatprep.subr.mxu0 %v358
    %3934 = vmatpush1.msra.mxu0 %v357
    %3935 = vmatprep.subr.mxu0 %v354
    %3936 = vmatpush1.msra.mxu0 %v353
    %3937 = vmatprep.subr.mxu0 %v350
    %3938 = vmatpush1.msra.mxu0 %v349
    %3939 = vmatprep.subr.mxu0 %v346
    %3940 = vmatpush1.msra.mxu0 %v345
    %3941 = vmatprep.subr.mxu0 %v342
    %3942 = vmatpush1.msra.mxu0 %v341
    %3943 = vmatprep.subr.mxu0 %v338
    %3944 = vmatpush1.msra.mxu0 %v337
    %3945 = vmatprep.subr.mxu0 %v334
    %3946 = vmatpush1.msra.mxu0 %v333
    %3947 = vmatprep.subr.mxu0 %v330
    %3948 = vmatpush1.msra.mxu0 %v329
    %3949 = vmatprep.subr.mxu0 0.0
    %3950 = vmatpush2.msra.mxu0 0.0
    %3951 = vmatprep.subr.mxu0 0.0
    %3952 = vmatpush2.msra.mxu0 0.0
    %3953 = vmatprep.subr.mxu0 0.0
    %3954 = vmatpush2.msra.mxu0 0.0
    %3955 = vmatprep.subr.mxu0 0.0
    %3956 = vmatpush2.msra.mxu0 0.0
    %3957 = vmatprep.subr.mxu0 0.0
    %3958 = vmatpush2.msra.mxu0 0.0
    %3959 = vmatprep.subr.mxu0 0.0
    %3960 = vmatpush2.msra.mxu0 0.0
    %3961 = vmatprep.subr.mxu0 0.0
    %3962 = vmatpush2.msra.mxu0 0.0
    %3963 = vmatprep.subr.mxu0 0.0
    %3964 = vmatpush2.msra.mxu0 0.0
    %3965 = vmatprep.subr.mxu0 0.0
    %3966 = vmatpush2.msra.mxu0 0.0
    %3967 = vmatprep.subr.mxu0 0.0
    %3968 = vmatpush2.msra.mxu0 0.0
    %3969 = vmatprep.subr.mxu0 0.0
    %3970 = vmatpush2.msra.mxu0 0.0
    %3971 = vmatprep.subr.mxu0 0.0
    %3972 = vmatpush2.msra.mxu0 0.0
    %3973 = vmatprep.subr.mxu0 0.0
    %3974 = vmatpush2.msra.mxu0 0.0
    %3975 = vmatprep.subr.mxu0 0.0
    %3976 = vmatpush2.msra.mxu0 0.0
    %3977 = vmatprep.subr.mxu0 0.0
    %3978 = vmatpush2.msra.mxu0 0.0
    %3979 = vmatprep.subr.mxu0 0.0
    %3980 = vmatpush2.msra.mxu0 0.0
    %3981 = vmatprep.mubr.f32.mxu0 0.0
    %3982 = vmatmul.mubr.f32.gmra.mxu0 %v3845
    %v3983 = vpop.f32.mrf.mxu0
    %v3984 = vadd.f32 %v3666, %v3983
    %v3985 = vpop.f32.mrf.mxu0
    %v3986 = vadd.f32 %v3668, %v3985
    %3987 = vdwg.mxu0
    %v3988 = vadd.f32 %v3913, %v395
    %v3989 = vadd.f32 %v3915, %v399
    %v3990 = vadd.f32 %v3984, %v403
    %v3991 = vadd.f32 %v3986, %v407
    %v3992 = vmul.f32 %v3988, 0.5
    %v3993 = vmul.f32 %v3989, 0.5
    %v3994 = vmul.f32 %v3990, 0.5
    %v3995 = vtanh.pop %v3992
    %v3996 = vtanh.pop %v3993
    %v3997 = vtanh.pop %v3994
    %v3998 = vmul.f32 %v3995, 0.5
    %v3999 = vmul.f32 %v3996, 0.5
    %v4000 = vmul.f32 %v3997, 0.5
    %v4001 = vadd.f32 %v3998, 0.5
    %v4002 = vadd.f32 %v3999, 0.5
    %v4003 = vadd.f32 %v4000, 0.5
    %v4004 = vtanh.pop %v3991
    %v4005 = vmul.f32 %v4002, %v3525
    %v4006 = vmul.f32 %v4001, %v4004
    %v4007 = vadd.f32 %v4005, %v4006
    %v4008 = vtanh.pop %v4007
    %v4009 = vmul.f32 %v4003, %v4008
    %v4010 = vld [vmem:[#allocation4 + $0x603] ss:$0 sm:$0xff]
    %v4011 = vld [vmem:[#allocation4 + $0x604] ss:$0 sm:$0xff]
    %v4012 = vmul.f32 %v4009, %v4010
    %vm4013 = vcmask 1041408
    %v4014 = vsel %vm4013, %v4012, 0.0
    %4015 = vadd.xlane.f32.xlu0 %v4014
    %v4016 = vpop.xlane.xlu0 %4015
    %v4017 = vadd.f32 %v4016, %v4011
    %vm4018 = vcmask 1024
    %4019 = vst.msk [vmem:[%s2] sm:$0x3] %vm4018, %v4017
    // Predicated region
    $region18: #{lstm_model_forward.1} parent=1 // pred_check
      _
    $region19: #{lstm_model_forward.1} parent=1 // pred_check_branch
      %4021 = sbr.rel (0) target = $region21
    $region20: #{lstm_model_forward.1} parent=1 // pred_region
      _
    $region21: #{lstm_model_forward.1} parent=1 // pred_fallthru
      _
    // Predicated region
    $region22: #{lstm_model_forward.1} parent=1 // pred_check
      _
    $region23: #{lstm_model_forward.1} parent=1 // pred_check_branch
      %4023 = sbr.rel (0) target = $region25
    $region24: #{lstm_model_forward.1} parent=1 // pred_region
      _
    $region25: #{lstm_model_forward.1} parent=1 // pred_fallthru
      _
    %4024 = vsyncpa [#allocation3], 1
    %4025 = vsyncpa [#allocation5], 1

</llo_original>
